<compile_context>
chip_gen: v7x
topology: tpu7x:2x2x1
jax: 0.10.0
libtpu: 0.0.40
codegen_flags: <defaults>
</compile_context>

<pallas_src>
import functools

import jax
import jax.numpy as jnp
from jax.experimental import pallas as pl
from jax.experimental.pallas import tpu as pltpu

EPS = 1e-5                      # nn.BatchNorm2d default eps
LANE = 128                      # pad K and Cout to multiples of the lane width
SUB = 16                        # bf16 sublane packing -> M tiles multiple of 16

_CHIP_CONFIG = None


def _chip_config():
    """(tile_m, vmem_limit_bytes) derived from the chip's physical VMEM."""
    global _CHIP_CONFIG
    if _CHIP_CONFIG is None:
        vmem_phys = 64 * 1024 * 1024                       # conservative (v7x)
        try:
            info = pltpu.get_tpu_info()
            vmem_phys = int(getattr(info, "vmem_capacity_bytes", vmem_phys))
        except Exception:
            pass
        if vmem_phys >= 96 * 1024 * 1024:                  # v5e / v6e: 128 MiB
            _CHIP_CONFIG = (1024, 100 * 1024 * 1024)
        else:                                              # v7x: 64 MiB
            _CHIP_CONFIG = (512, 52 * 1024 * 1024)
    return _CHIP_CONFIG


def _round_up(x, m):
    return (x + m - 1) // m * m


def _pad2d(a, rows, cols):
    if a.shape == (rows, cols):
        return a
    return jnp.pad(a, ((0, rows - a.shape[0]), (0, cols - a.shape[1])))


# --------------------- pass 1: conv matmul + BN statistics ------------------ #
def _matmul_stats_kernel(p_ref, w_ref, y_ref, s_ref):
    # MXU: bf16 x bf16 -> f32 accumulate.
    acc = jnp.dot(p_ref[...], w_ref[...], preferred_element_type=jnp.float32)
    # Exact per-tile per-channel partial sums taken from the f32 accumulator
    # (rows 2..7 of the stats block are never read -> leave unwritten).
    s_ref[0:1, :] = jnp.sum(acc, axis=0, keepdims=True)
    s_ref[1:2, :] = jnp.sum(acc * acc, axis=0, keepdims=True)
    # bf16 writeback halves the HBM traffic of the conv output.
    y_ref[...] = acc.astype(y_ref.dtype)


def conv_matmul_stats(patches_bf16, w_bf16, m_true, tile_m, vmem_limit):
    """Tiled conv-as-matmul. Returns (bf16 conv output, mean, biased var)."""
    m_pad, k_pad = patches_bf16.shape
    c_pad = w_bf16.shape[1]
    num_tiles = m_pad // tile_m

    row_spec = pl.BlockSpec((tile_m, k_pad), lambda i: (i, 0))
    w_spec = pl.BlockSpec((k_pad, c_pad), lambda i: (0, 0))      # VMEM-resident
    y_spec = pl.BlockSpec((tile_m, c_pad), lambda i: (i, 0))
    s_spec = pl.BlockSpec((8, c_pad), lambda i: (i, 0))

    flops = 2 * m_pad * k_pad * c_pad
    bytes_acc = ((m_pad * k_pad + k_pad * c_pad + m_pad * c_pad) * 2
                 + 8 * num_tiles * c_pad * 4)

    y, stats = pl.pallas_call(
        _matmul_stats_kernel,
        out_shape=(jax.ShapeDtypeStruct((m_pad, c_pad), jnp.bfloat16),
                   jax.ShapeDtypeStruct((num_tiles * 8, c_pad), jnp.float32)),
        grid_spec=pltpu.PrefetchScalarGridSpec(
            num_scalar_prefetch=0,
            grid=(num_tiles,),
            in_specs=[row_spec, w_spec],
            out_specs=(y_spec, s_spec)),
        compiler_params=pltpu.CompilerParams(
            dimension_semantics=("parallel",),
            vmem_limit_bytes=vmem_limit,
            allow_input_fusion=[True, True]),   # fuse pad/cast producers
        cost_estimate=pl.CostEstimate(flops=int(flops), transcendentals=0,
                                      bytes_accessed=int(bytes_acc)),
    )(patches_bf16, w_bf16)

    stats = stats.reshape(num_tiles, 8, c_pad)
    col_sum = jnp.sum(stats[:, 0, :], axis=0)
    col_sumsq = jnp.sum(stats[:, 1, :], axis=0)
    mean = col_sum / float(m_true)               # padded rows contribute 0
    # Clamp: E[x^2]-E[x]^2 can go slightly negative in f32.
    var = jnp.maximum(col_sumsq / float(m_true) - mean * mean, 0.0)
    return y, mean, var


# ------------- pass 2: BN affine + (residual) + (ReLU), tiled over M -------- #
def _bn_act_kernel(*refs, apply_relu, has_residual):
    if has_residual:
        y_ref, sc_ref, sh_ref, r_ref, o_ref = refs
    else:
        y_ref, sc_ref, sh_ref, o_ref = refs
    # bf16 inputs -> f32 math (no bf16 VPU on v5e), dtype-flexible writeback.
    out = y_ref[...].astype(jnp.float32) * sc_ref[...] + sh_ref[...]
    if has_residual:
        out = out + r_ref[...].astype(jnp.float32)
    if apply_relu:
        out = jnp.maximum(out, 0.0)
    o_ref[...] = out.astype(o_ref.dtype)


def bn_act(y, scale, shift, residual, apply_relu, tile_m, vmem_limit,
           out_dtype=jnp.bfloat16):
    m_pad, c_pad = y.shape
    num_tiles = m_pad // tile_m
    has_res = residual is not None

    row_spec = pl.BlockSpec((tile_m, c_pad), lambda i: (i, 0))
    chan_spec = pl.BlockSpec((1, c_pad), lambda i: (0, 0))       # VMEM-resident

    in_specs = [row_spec, chan_spec, chan_spec]
    args = [y, scale.reshape(1, c_pad), shift.reshape(1, c_pad)]
    if has_res:
        in_specs.append(row_spec)
        args.append(residual)

    kern = functools.partial(_bn_act_kernel, apply_relu=apply_relu,
                             has_residual=has_res)
    in_bytes = y.size * y.dtype.itemsize + 2 * c_pad * 4
    if has_res:
        in_bytes += residual.size * residual.dtype.itemsize
    out_bytes = m_pad * c_pad * jnp.dtype(out_dtype).itemsize
    return pl.pallas_call(
        kern,
        out_shape=jax.ShapeDtypeStruct((m_pad, c_pad), out_dtype),
        grid_spec=pltpu.PrefetchScalarGridSpec(
            num_scalar_prefetch=0,
            grid=(num_tiles,),
            in_specs=in_specs,
            out_specs=row_spec),
        compiler_params=pltpu.CompilerParams(
            dimension_semantics=("parallel",),
            vmem_limit_bytes=vmem_limit,
            allow_input_fusion=[True] * len(args)),
        cost_estimate=pl.CostEstimate(flops=int((3 + int(has_res)) * m_pad * c_pad),
                                      transcendentals=0,
                                      bytes_accessed=int(in_bytes + out_bytes)),
    )(*args)


# --------------------------------- JAX glue --------------------------------- #
def im2col(x_nhwc, k, stride, pad):
    """x: (N,H,W,C) -> patches (N*Ho*Wo, k*k*C), tap-major / channel-minor.

    Dtype-preserving: feed bf16 so the 9x patch matrix is built in bf16.
    """
    n, h, w, c = x_nhwc.shape
    xp = jnp.pad(x_nhwc, ((0, 0), (pad, pad), (pad, pad), (0, 0)))
    ho = (h + 2 * pad - k) // stride + 1
    wo = (w + 2 * pad - k) // stride + 1
    cols = []
    for dy in range(k):
        for dx in range(k):
            sl = xp[:, dy:dy + (ho - 1) * stride + 1:stride,
                    dx:dx + (wo - 1) * stride + 1:stride, :]
            cols.append(sl)
    patches = jnp.concatenate(cols, axis=-1)           # (N, Ho, Wo, k*k*C)
    return patches.reshape(n * ho * wo, k * k * c), ho, wo


def init_basic_block_params(key, in_planes, planes, stride):
    """Deterministic synthetic parameters. Conv weights stored HWIO."""
    ks = jax.random.split(key, 10)
    p = {
        "w1": 0.1 * jax.random.normal(ks[0], (3, 3, in_planes, planes), jnp.float32),
        "g1": 1.0 + 0.1 * jax.random.normal(ks[1], (planes,), jnp.float32),
        "b1": 0.1 * jax.random.normal(ks[2], (planes,), jnp.float32),
        "w2": 0.1 * jax.random.normal(ks[3], (3, 3, planes, planes), jnp.float32),
        "g2": 1.0 + 0.1 * jax.random.normal(ks[4], (planes,), jnp.float32),
        "b2": 0.1 * jax.random.normal(ks[5], (planes,), jnp.float32),
    }
    if stride != 1 or in_planes != planes:
        p["ws"] = 0.1 * jax.random.normal(ks[6], (1, 1, in_planes, planes), jnp.float32)
        p["gs"] = 1.0 + 0.1 * jax.random.normal(ks[7], (planes,), jnp.float32)
        p["bs"] = 0.1 * jax.random.normal(ks[8], (planes,), jnp.float32)
    return p


def basic_block_forward(x_nchw, params, stride, tile_m=None):
    """Pallas implementation of BasicBlock.forward. x: NCHW f32, returns NCHW f32."""
    n, cin, h, w = x_nchw.shape
    planes = params["w2"].shape[-1]

    chip_tile, vmem_limit = _chip_config()
    if tile_m is None:
        tile_m = chip_tile

    # Single bf16 cast of the NHWC activation: feeds im2col and (if identity)
    # the residual path, halving glue traffic vs. f32 patch construction.
    x = jnp.transpose(x_nchw, (0, 2, 3, 1)).astype(jnp.bfloat16)

    ho = (h + 2 - 3) // stride + 1
    wo = (w + 2 - 3) // stride + 1
    m = n * ho * wo
    tm = min(_round_up(tile_m, SUB), _round_up(m, SUB))
    m_pad = _round_up(m, tm)
    c_pad = _round_up(planes, LANE)
    no_pad = (m_pad == m) and (c_pad == planes)

    def conv_bn(inp_nhwc_bf16, w_hwio, gamma, beta, k, s, pad, residual,
                apply_relu, out_dtype):
        patches, _, _ = im2col(inp_nhwc_bf16, k, s, pad)
        k_dim = patches.shape[1]
        k_pad = _round_up(k_dim, LANE)
        p = _pad2d(patches, m_pad, k_pad)                         # bf16
        wm = _pad2d(w_hwio.reshape(k_dim, planes).astype(jnp.bfloat16),
                    k_pad, c_pad)
        y, mean, var = conv_matmul_stats(p, wm, m, tm, vmem_limit)
        g = jnp.pad(gamma.astype(jnp.float32), (0, c_pad - planes))
        b = jnp.pad(beta.astype(jnp.float32), (0, c_pad - planes))
        scale = g * jax.lax.rsqrt(var + EPS)
        shift = b - mean * scale
        return bn_act(y, scale, shift, residual, apply_relu, tm, vmem_limit,
                      out_dtype=out_dtype)

    # conv1 -> bn1 -> relu  (bf16 output feeds conv2's im2col directly)
    out1 = conv_bn(x, params["w1"], params["g1"], params["b1"], 3, stride, 1,
                   residual=None, apply_relu=True, out_dtype=jnp.bfloat16)
    if no_pad:
        out1_nhwc = out1.reshape(n, ho, wo, planes)               # no slice copy
    else:
        out1_nhwc = out1[:m, :planes].reshape(n, ho, wo, planes)

    # shortcut (bf16): 1x1 conv+BN when the shape changes, else the activation
    if "ws" in params:
        sc = conv_bn(x, params["ws"], params["gs"], params["bs"], 1, stride, 0,
                     residual=None, apply_relu=False, out_dtype=jnp.bfloat16)
    else:
        sc = _pad2d(x.reshape(m, planes), m_pad, c_pad)           # no-op if aligned

    # conv2 -> bn2 -> (+shortcut) -> relu (residual + ReLU fused in pass 2).
    # Final output stays f32 to preserve the module's float32 interface.
    out = conv_bn(out1_nhwc, params["w2"], params["g2"], params["b2"], 3, 1, 1,
                  residual=sc, apply_relu=True, out_dtype=jnp.float32)
    if not no_pad:
        out = out[:m, :planes]
    out = out.reshape(n, ho, wo, planes)
    return jnp.transpose(out, (0, 3, 1, 2))                       # NCHW


# ---------------------------- pure-JAX reference ---------------------------- #
def _ref_block(x_nchw, params, stride):
    """Matched-precision reference: bf16 conv operands and bf16 intermediates,
    f32 accumulation and exact f32 BatchNorm statistics (same policy as the
    Pallas kernels)."""
    f32 = jnp.float32
    q = lambda t: t.astype(jnp.bfloat16).astype(f32)              # bf16 round-trip
    x = q(jnp.transpose(x_nchw, (0, 2, 3, 1)))

    def conv(y, w, s, pad):
        return jax.lax.conv_general_dilated(
            y.astype(jnp.bfloat16), w.astype(jnp.bfloat16), (s, s),
            [(pad, pad), (pad, pad)],
            dimension_numbers=("NHWC", "HWIO", "NHWC"),
            preferred_element_type=f32)

    def bn(y, g, b):
        mean = y.mean(axis=(0, 1, 2))                             # stats from f32 y
        var = y.var(axis=(0, 1, 2))
        scale = g * jax.lax.rsqrt(var + EPS)
        return q(y) * scale + (b - mean * scale)                  # affine on bf16 y

    out1 = q(jax.nn.relu(bn(conv(x, params["w1"], stride, 1),
                            params["g1"], params["b1"])))
    out2 = bn(conv(out1, params["w2"], 1, 1), params["g2"], params["b2"])
    if "ws" in params:
        sc = q(bn(conv(x, params["ws"], stride, 0), params["gs"], params["bs"]))
    else:
        sc = x
    return jnp.transpose(jax.nn.relu(out2 + sc), (0, 3, 1, 2))


# ----------------------------------- main ----------------------------------- #
if __name__ == "__main__":
    key = jax.random.PRNGKey(0)
    k_x, k_p1, k_p2 = jax.random.split(key, 3)

    N, IN_PLANES, H, W = 2, 4, 16, 16
    x = jax.random.normal(k_x, (N, IN_PLANES, H, W), jnp.float32)

    # Case 1: stride=2, in_planes != planes -> conv shortcut path (single tile)
    planes, stride = 8, 2
    params = init_basic_block_params(k_p1, IN_PLANES, planes, stride)
    fwd1 = jax.jit(lambda xx, pp: basic_block_forward(xx, pp, stride))
    out = jax.block_until_ready(fwd1(x, params))
    ref = _ref_block(x, params, stride)
    assert out.shape == (N, planes, H // stride, W // stride)
    assert jnp.allclose(out, ref, atol=1e-2, rtol=1e-2)

    # Case 2: stride=1, identity shortcut; tile_m=256 exercises the multi-tile
    # grid and the cross-tile BatchNorm statistics reduction.
    planes2, stride2 = IN_PLANES, 1
    params2 = init_basic_block_params(k_p2, IN_PLANES, planes2, stride2)
    fwd2 = jax.jit(lambda xx, pp: basic_block_forward(xx, pp, stride2, tile_m=256))
    out2 = jax.block_until_ready(fwd2(x, params2))
    ref2 = _ref_block(x, params2, stride2)
    assert out2.shape == (N, planes2, H, W)
    assert jnp.allclose(out2, ref2, atol=1e-2, rtol=1e-2)

    print("KERNEL_OK")
</pallas_src>

<mosaic_0001>
module attributes {stable_mosaic.version = 11 : i64} {
  func.func @_matmul_stats_kernel(%arg0: i32, %arg1: memref<128x128xbf16, #tpu.memory_space<vmem>>, %arg2: memref<128x128xbf16, #tpu.memory_space<vmem>>, %arg3: memref<128x128xbf16, #tpu.memory_space<vmem>>, %arg4: memref<8x128xf32, #tpu.memory_space<vmem>>) attributes {dimension_semantics = [#tpu.dimension_semantics<parallel>], iteration_bounds = array<i64: 1>, scalar_prefetch = 0 : i64, scratch_operands = 0 : i64, tpu.core_type = #tpu.core_type<tc>, window_params = [{transform_indices = @transform_0, window_bounds = array<i64: 128, 128>}, {pipeline_mode = #tpu.pipeline_mode<synchronous>, transform_indices = @transform_1, window_bounds = array<i64: 128, 128>}, {transform_indices = @transform_2, window_bounds = array<i64: 128, 128>}, {transform_indices = @transform_3, window_bounds = array<i64: 8, 128>}]} {
    %c0 = arith.constant 0 : index
    %c0_0 = arith.constant 0 : index
    %0 = vector.load %arg1[%c0, %c0_0] : memref<128x128xbf16, #tpu.memory_space<vmem>>, vector<128x128xbf16>
    %c0_1 = arith.constant 0 : index
    %c0_2 = arith.constant 0 : index
    %1 = vector.load %arg2[%c0_1, %c0_2] : memref<128x128xbf16, #tpu.memory_space<vmem>>, vector<128x128xbf16>
    %cst = arith.constant dense<0.000000e+00> : vector<128x128xf32>
    %2 = tpu.matmul %0, %1, %cst {dimension_numbers = #tpu.dot_dimension_numbers<[1], [0], [0], [1], [0, 0, 1, 1], [], []>} : vector<128x128xbf16>, vector<128x128xbf16>, vector<128x128xf32> -> vector<128x128xf32>
    %cst_3 = arith.constant dense<0.000000e+00> : vector<128xf32>
    %3 = vector.multi_reduction <add>, %2, %cst_3 [0] : vector<128x128xf32> to vector<128xf32>
    %4 = vector.shape_cast %3 : vector<128xf32> to vector<1x128xf32>
    %c0_4 = arith.constant 0 : index
    %c0_5 = arith.constant 0 : index
    %5 = vector.load %arg4[%c0_4, %c0_5] : memref<8x128xf32, #tpu.memory_space<vmem>>, vector<1x128xf32>
    tpu.vector_store %arg4[%c0_4, %c0_5], %4 {strides = array<i32>} : memref<8x128xf32, #tpu.memory_space<vmem>>, vector<1x128xf32>,
    %6 = arith.mulf %2, %2 : vector<128x128xf32>
    %cst_6 = arith.constant dense<0.000000e+00> : vector<128xf32>
    %7 = vector.multi_reduction <add>, %6, %cst_6 [0] : vector<128x128xf32> to vector<128xf32>
    %8 = vector.shape_cast %7 : vector<128xf32> to vector<1x128xf32>
    %c1 = arith.constant 1 : index
    %c0_7 = arith.constant 0 : index
    %9 = vector.load %arg4[%c1, %c0_7] : memref<8x128xf32, #tpu.memory_space<vmem>>, vector<1x128xf32>
    tpu.vector_store %arg4[%c1, %c0_7], %8 {strides = array<i32>} : memref<8x128xf32, #tpu.memory_space<vmem>>, vector<1x128xf32>,
    %10 = arith.truncf %2 : vector<128x128xf32> to vector<128x128xbf16>
    %c0_8 = arith.constant 0 : index
    %c0_9 = arith.constant 0 : index
    %11 = vector.load %arg3[%c0_8, %c0_9] : memref<128x128xbf16, #tpu.memory_space<vmem>>, vector<128x128xbf16>
    tpu.vector_store %arg3[%c0_8, %c0_9], %10 {strides = array<i32>} : memref<128x128xbf16, #tpu.memory_space<vmem>>, vector<128x128xbf16>,
    return
  }
  func.func @transform_0(%arg0: i32) -> (i32, i32) {
    %c0_i32 = arith.constant 0 : i32
    %c0_i32_0 = arith.constant 0 : i32
    return %arg0, %c0_i32 : i32, i32
  }
  func.func @transform_1(%arg0: i32) -> (i32, i32) {
    %c0_i32 = arith.constant 0 : i32
    %c0_i32_0 = arith.constant 0 : i32
    %c0_i32_1 = arith.constant 0 : i32
    return %c0_i32, %c0_i32_0 : i32, i32
  }
  func.func @transform_2(%arg0: i32) -> (i32, i32) {
    %c0_i32 = arith.constant 0 : i32
    %c0_i32_0 = arith.constant 0 : i32
    return %arg0, %c0_i32 : i32, i32
  }
  func.func @transform_3(%arg0: i32) -> (i32, i32) {
    %c0_i32 = arith.constant 0 : i32
    %c0_i32_0 = arith.constant 0 : i32
    return %arg0, %c0_i32 : i32, i32
  }
}

module attributes {stable_mosaic.version = 11 : i64} {
  func.func @_bn_act_kernel(%arg0: i32, %arg1: memref<128x128xbf16, #tpu.memory_space<vmem>>, %arg2: memref<1x128xf32, #tpu.memory_space<vmem>>, %arg3: memref<1x128xf32, #tpu.memory_space<vmem>>, %arg4: memref<128x128xbf16, #tpu.memory_space<vmem>>) attributes {dimension_semantics = [#tpu.dimension_semantics<parallel>], iteration_bounds = array<i64: 1>, scalar_prefetch = 0 : i64, scratch_operands = 0 : i64, tpu.core_type = #tpu.core_type<tc>, window_params = [{transform_indices = @transform_0, window_bounds = array<i64: 128, 128>}, {pipeline_mode = #tpu.pipeline_mode<synchronous>, transform_indices = @transform_1, window_bounds = array<i64: 1, 128>}, {pipeline_mode = #tpu.pipeline_mode<synchronous>, transform_indices = @transform_2, window_bounds = array<i64: 1, 128>}, {transform_indices = @transform_3, window_bounds = array<i64: 128, 128>}]} {
    %c0 = arith.constant 0 : index
    %c0_0 = arith.constant 0 : index
    %0 = vector.load %arg1[%c0, %c0_0] : memref<128x128xbf16, #tpu.memory_space<vmem>>, vector<128x128xbf16>
    %1 = arith.extf %0 : vector<128x128xbf16> to vector<128x128xf32>
    %c0_1 = arith.constant 0 : index
    %c0_2 = arith.constant 0 : index
    %2 = vector.load %arg2[%c0_1, %c0_2] : memref<1x128xf32, #tpu.memory_space<vmem>>, vector<1x128xf32>
    %3 = vector.broadcast %2 : vector<1x128xf32> to vector<128x128xf32>
    %4 = arith.mulf %1, %3 : vector<128x128xf32>
    %c0_3 = arith.constant 0 : index
    %c0_4 = arith.constant 0 : index
    %5 = vector.load %arg3[%c0_3, %c0_4] : memref<1x128xf32, #tpu.memory_space<vmem>>, vector<1x128xf32>
    %6 = vector.broadcast %5 : vector<1x128xf32> to vector<128x128xf32>
    %7 = arith.addf %4, %6 : vector<128x128xf32>
    %cst = arith.constant 0.000000e+00 : f32
    %8 = vector.broadcast %cst : f32 to vector<128x128xf32>
    %9 = arith.maximumf %7, %8 : vector<128x128xf32>
    %10 = arith.truncf %9 : vector<128x128xf32> to vector<128x128xbf16>
    %c0_5 = arith.constant 0 : index
    %c0_6 = arith.constant 0 : index
    %11 = vector.load %arg4[%c0_5, %c0_6] : memref<128x128xbf16, #tpu.memory_space<vmem>>, vector<128x128xbf16>
    tpu.vector_store %arg4[%c0_5, %c0_6], %10 {strides = array<i32>} : memref<128x128xbf16, #tpu.memory_space<vmem>>, vector<128x128xbf16>,
    return
  }
  func.func @transform_0(%arg0: i32) -> (i32, i32) {
    %c0_i32 = arith.constant 0 : i32
    %c0_i32_0 = arith.constant 0 : i32
    return %arg0, %c0_i32 : i32, i32
  }
  func.func @transform_1(%arg0: i32) -> (i32, i32) {
    %c0_i32 = arith.constant 0 : i32
    %c0_i32_0 = arith.constant 0 : i32
    %c0_i32_1 = arith.constant 0 : i32
    return %c0_i32, %c0_i32_0 : i32, i32
  }
  func.func @transform_2(%arg0: i32) -> (i32, i32) {
    %c0_i32 = arith.constant 0 : i32
    %c0_i32_0 = arith.constant 0 : i32
    %c0_i32_1 = arith.constant 0 : i32
    return %c0_i32, %c0_i32_0 : i32, i32
  }
  func.func @transform_3(%arg0: i32) -> (i32, i32) {
    %c0_i32 = arith.constant 0 : i32
    %c0_i32_0 = arith.constant 0 : i32
    return %arg0, %c0_i32 : i32, i32
  }
}

module attributes {stable_mosaic.version = 11 : i64} {
  func.func @_matmul_stats_kernel(%arg0: i32, %arg1: memref<128x128xbf16, #tpu.memory_space<vmem>>, %arg2: memref<128x128xbf16, #tpu.memory_space<vmem>>, %arg3: memref<128x128xbf16, #tpu.memory_space<vmem>>, %arg4: memref<8x128xf32, #tpu.memory_space<vmem>>) attributes {dimension_semantics = [#tpu.dimension_semantics<parallel>], iteration_bounds = array<i64: 1>, scalar_prefetch = 0 : i64, scratch_operands = 0 : i64, tpu.core_type = #tpu.core_type<tc>, window_params = [{transform_indices = @transform_0, window_bounds = array<i64: 128, 128>}, {pipeline_mode = #tpu.pipeline_mode<synchronous>, transform_indices = @transform_1, window_bounds = array<i64: 128, 128>}, {transform_indices = @transform_2, window_bounds = array<i64: 128, 128>}, {transform_indices = @transform_3, window_bounds = array<i64: 8, 128>}]} {
    %c0 = arith.constant 0 : index
    %c0_0 = arith.constant 0 : index
    %0 = vector.load %arg1[%c0, %c0_0] : memref<128x128xbf16, #tpu.memory_space<vmem>>, vector<128x128xbf16>
    %c0_1 = arith.constant 0 : index
    %c0_2 = arith.constant 0 : index
    %1 = vector.load %arg2[%c0_1, %c0_2] : memref<128x128xbf16, #tpu.memory_space<vmem>>, vector<128x128xbf16>
    %cst = arith.constant dense<0.000000e+00> : vector<128x128xf32>
    %2 = tpu.matmul %0, %1, %cst {dimension_numbers = #tpu.dot_dimension_numbers<[1], [0], [0], [1], [0, 0, 1, 1], [], []>} : vector<128x128xbf16>, vector<128x128xbf16>, vector<128x128xf32> -> vector<128x128xf32>
    %cst_3 = arith.constant dense<0.000000e+00> : vector<128xf32>
    %3 = vector.multi_reduction <add>, %2, %cst_3 [0] : vector<128x128xf32> to vector<128xf32>
    %4 = vector.shape_cast %3 : vector<128xf32> to vector<1x128xf32>
    %c0_4 = arith.constant 0 : index
    %c0_5 = arith.constant 0 : index
    %5 = vector.load %arg4[%c0_4, %c0_5] : memref<8x128xf32, #tpu.memory_space<vmem>>, vector<1x128xf32>
    tpu.vector_store %arg4[%c0_4, %c0_5], %4 {strides = array<i32>} : memref<8x128xf32, #tpu.memory_space<vmem>>, vector<1x128xf32>,
    %6 = arith.mulf %2, %2 : vector<128x128xf32>
    %cst_6 = arith.constant dense<0.000000e+00> : vector<128xf32>
    %7 = vector.multi_reduction <add>, %6, %cst_6 [0] : vector<128x128xf32> to vector<128xf32>
    %8 = vector.shape_cast %7 : vector<128xf32> to vector<1x128xf32>
    %c1 = arith.constant 1 : index
    %c0_7 = arith.constant 0 : index
    %9 = vector.load %arg4[%c1, %c0_7] : memref<8x128xf32, #tpu.memory_space<vmem>>, vector<1x128xf32>
    tpu.vector_store %arg4[%c1, %c0_7], %8 {strides = array<i32>} : memref<8x128xf32, #tpu.memory_space<vmem>>, vector<1x128xf32>,
    %10 = arith.truncf %2 : vector<128x128xf32> to vector<128x128xbf16>
    %c0_8 = arith.constant 0 : index
    %c0_9 = arith.constant 0 : index
    %11 = vector.load %arg3[%c0_8, %c0_9] : memref<128x128xbf16, #tpu.memory_space<vmem>>, vector<128x128xbf16>
    tpu.vector_store %arg3[%c0_8, %c0_9], %10 {strides = array<i32>} : memref<128x128xbf16, #tpu.memory_space<vmem>>, vector<128x128xbf16>,
    return
  }
  func.func @transform_0(%arg0: i32) -> (i32, i32) {
    %c0_i32 = arith.constant 0 : i32
    %c0_i32_0 = arith.constant 0 : i32
    return %arg0, %c0_i32 : i32, i32
  }
  func.func @transform_1(%arg0: i32) -> (i32, i32) {
    %c0_i32 = arith.constant 0 : i32
    %c0_i32_0 = arith.constant 0 : i32
    %c0_i32_1 = arith.constant 0 : i32
    return %c0_i32, %c0_i32_0 : i32, i32
  }
  func.func @transform_2(%arg0: i32) -> (i32, i32) {
    %c0_i32 = arith.constant 0 : i32
    %c0_i32_0 = arith.constant 0 : i32
    return %arg0, %c0_i32 : i32, i32
  }
  func.func @transform_3(%arg0: i32) -> (i32, i32) {
    %c0_i32 = arith.constant 0 : i32
    %c0_i32_0 = arith.constant 0 : i32
    return %arg0, %c0_i32 : i32, i32
  }
}

module attributes {stable_mosaic.version = 11 : i64} {
  func.func @_matmul_stats_kernel(%arg0: i32, %arg1: memref<128x128xbf16, #tpu.memory_space<vmem>>, %arg2: memref<128x128xbf16, #tpu.memory_space<vmem>>, %arg3: memref<128x128xbf16, #tpu.memory_space<vmem>>, %arg4: memref<8x128xf32, #tpu.memory_space<vmem>>) attributes {dimension_semantics = [#tpu.dimension_semantics<parallel>], iteration_bounds = array<i64: 1>, scalar_prefetch = 0 : i64, scratch_operands = 0 : i64, tpu.core_type = #tpu.core_type<tc>, window_params = [{transform_indices = @transform_0, window_bounds = array<i64: 128, 128>}, {pipeline_mode = #tpu.pipeline_mode<synchronous>, transform_indices = @transform_1, window_bounds = array<i64: 128, 128>}, {transform_indices = @transform_2, window_bounds = array<i64: 128, 128>}, {transform_indices = @transform_3, window_bounds = array<i64: 8, 128>}]} {
    %c0 = arith.constant 0 : index
    %c0_0 = arith.constant 0 : index
    %0 = vector.load %arg1[%c0, %c0_0] : memref<128x128xbf16, #tpu.memory_space<vmem>>, vector<128x128xbf16>
    %c0_1 = arith.constant 0 : index
    %c0_2 = arith.constant 0 : index
    %1 = vector.load %arg2[%c0_1, %c0_2] : memref<128x128xbf16, #tpu.memory_space<vmem>>, vector<128x128xbf16>
    %cst = arith.constant dense<0.000000e+00> : vector<128x128xf32>
    %2 = tpu.matmul %0, %1, %cst {dimension_numbers = #tpu.dot_dimension_numbers<[1], [0], [0], [1], [0, 0, 1, 1], [], []>} : vector<128x128xbf16>, vector<128x128xbf16>, vector<128x128xf32> -> vector<128x128xf32>
    %cst_3 = arith.constant dense<0.000000e+00> : vector<128xf32>
    %3 = vector.multi_reduction <add>, %2, %cst_3 [0] : vector<128x128xf32> to vector<128xf32>
    %4 = vector.shape_cast %3 : vector<128xf32> to vector<1x128xf32>
    %c0_4 = arith.constant 0 : index
    %c0_5 = arith.constant 0 : index
    %5 = vector.load %arg4[%c0_4, %c0_5] : memref<8x128xf32, #tpu.memory_space<vmem>>, vector<1x128xf32>
    tpu.vector_store %arg4[%c0_4, %c0_5], %4 {strides = array<i32>} : memref<8x128xf32, #tpu.memory_space<vmem>>, vector<1x128xf32>,
    %6 = arith.mulf %2, %2 : vector<128x128xf32>
    %cst_6 = arith.constant dense<0.000000e+00> : vector<128xf32>
    %7 = vector.multi_reduction <add>, %6, %cst_6 [0] : vector<128x128xf32> to vector<128xf32>
    %8 = vector.shape_cast %7 : vector<128xf32> to vector<1x128xf32>
    %c1 = arith.constant 1 : index
    %c0_7 = arith.constant 0 : index
    %9 = vector.load %arg4[%c1, %c0_7] : memref<8x128xf32, #tpu.memory_space<vmem>>, vector<1x128xf32>
    tpu.vector_store %arg4[%c1, %c0_7], %8 {strides = array<i32>} : memref<8x128xf32, #tpu.memory_space<vmem>>, vector<1x128xf32>,
    %10 = arith.truncf %2 : vector<128x128xf32> to vector<128x128xbf16>
    %c0_8 = arith.constant 0 : index
    %c0_9 = arith.constant 0 : index
    %11 = vector.load %arg3[%c0_8, %c0_9] : memref<128x128xbf16, #tpu.memory_space<vmem>>, vector<128x128xbf16>
    tpu.vector_store %arg3[%c0_8, %c0_9], %10 {strides = array<i32>} : memref<128x128xbf16, #tpu.memory_space<vmem>>, vector<128x128xbf16>,
    return
  }
  func.func @transform_0(%arg0: i32) -> (i32, i32) {
    %c0_i32 = arith.constant 0 : i32
    %c0_i32_0 = arith.constant 0 : i32
    return %arg0, %c0_i32 : i32, i32
  }
  func.func @transform_1(%arg0: i32) -> (i32, i32) {
    %c0_i32 = arith.constant 0 : i32
    %c0_i32_0 = arith.constant 0 : i32
    %c0_i32_1 = arith.constant 0 : i32
    return %c0_i32, %c0_i32_0 : i32, i32
  }
  func.func @transform_2(%arg0: i32) -> (i32, i32) {
    %c0_i32 = arith.constant 0 : i32
    %c0_i32_0 = arith.constant 0 : i32
    return %arg0, %c0_i32 : i32, i32
  }
  func.func @transform_3(%arg0: i32) -> (i32, i32) {
    %c0_i32 = arith.constant 0 : i32
    %c0_i32_0 = arith.constant 0 : i32
    return %arg0, %c0_i32 : i32, i32
  }
}

module attributes {stable_mosaic.version = 11 : i64} {
  func.func @_bn_act_kernel(%arg0: i32, %arg1: memref<128x128xbf16, #tpu.memory_space<vmem>>, %arg2: memref<1x128xf32, #tpu.memory_space<vmem>>, %arg3: memref<1x128xf32, #tpu.memory_space<vmem>>, %arg4: memref<128x128xbf16, #tpu.memory_space<vmem>>) attributes {dimension_semantics = [#tpu.dimension_semantics<parallel>], iteration_bounds = array<i64: 1>, scalar_prefetch = 0 : i64, scratch_operands = 0 : i64, tpu.core_type = #tpu.core_type<tc>, window_params = [{transform_indices = @transform_0, window_bounds = array<i64: 128, 128>}, {pipeline_mode = #tpu.pipeline_mode<synchronous>, transform_indices = @transform_1, window_bounds = array<i64: 1, 128>}, {pipeline_mode = #tpu.pipeline_mode<synchronous>, transform_indices = @transform_2, window_bounds = array<i64: 1, 128>}, {transform_indices = @transform_3, window_bounds = array<i64: 128, 128>}]} {
    %c0 = arith.constant 0 : index
    %c0_0 = arith.constant 0 : index
    %0 = vector.load %arg1[%c0, %c0_0] : memref<128x128xbf16, #tpu.memory_space<vmem>>, vector<128x128xbf16>
    %1 = arith.extf %0 : vector<128x128xbf16> to vector<128x128xf32>
    %c0_1 = arith.constant 0 : index
    %c0_2 = arith.constant 0 : index
    %2 = vector.load %arg2[%c0_1, %c0_2] : memref<1x128xf32, #tpu.memory_space<vmem>>, vector<1x128xf32>
    %3 = vector.broadcast %2 : vector<1x128xf32> to vector<128x128xf32>
    %4 = arith.mulf %1, %3 : vector<128x128xf32>
    %c0_3 = arith.constant 0 : index
    %c0_4 = arith.constant 0 : index
    %5 = vector.load %arg3[%c0_3, %c0_4] : memref<1x128xf32, #tpu.memory_space<vmem>>, vector<1x128xf32>
    %6 = vector.broadcast %5 : vector<1x128xf32> to vector<128x128xf32>
    %7 = arith.addf %4, %6 : vector<128x128xf32>
    %8 = arith.truncf %7 : vector<128x128xf32> to vector<128x128xbf16>
    %c0_5 = arith.constant 0 : index
    %c0_6 = arith.constant 0 : index
    %9 = vector.load %arg4[%c0_5, %c0_6] : memref<128x128xbf16, #tpu.memory_space<vmem>>, vector<128x128xbf16>
    tpu.vector_store %arg4[%c0_5, %c0_6], %8 {strides = array<i32>} : memref<128x128xbf16, #tpu.memory_space<vmem>>, vector<128x128xbf16>,
    return
  }
  func.func @transform_0(%arg0: i32) -> (i32, i32) {
    %c0_i32 = arith.constant 0 : i32
    %c0_i32_0 = arith.constant 0 : i32
    return %arg0, %c0_i32 : i32, i32
  }
  func.func @transform_1(%arg0: i32) -> (i32, i32) {
    %c0_i32 = arith.constant 0 : i32
    %c0_i32_0 = arith.constant 0 : i32
    %c0_i32_1 = arith.constant 0 : i32
    return %c0_i32, %c0_i32_0 : i32, i32
  }
  func.func @transform_2(%arg0: i32) -> (i32, i32) {
    %c0_i32 = arith.constant 0 : i32
    %c0_i32_0 = arith.constant 0 : i32
    %c0_i32_1 = arith.constant 0 : i32
    return %c0_i32, %c0_i32_0 : i32, i32
  }
  func.func @transform_3(%arg0: i32) -> (i32, i32) {
    %c0_i32 = arith.constant 0 : i32
    %c0_i32_0 = arith.constant 0 : i32
    return %arg0, %c0_i32 : i32, i32
  }
}

module attributes {stable_mosaic.version = 11 : i64} {
  func.func @_bn_act_kernel(%arg0: i32, %arg1: memref<128x128xbf16, #tpu.memory_space<vmem>>, %arg2: memref<1x128xf32, #tpu.memory_space<vmem>>, %arg3: memref<1x128xf32, #tpu.memory_space<vmem>>, %arg4: memref<128x128xbf16, #tpu.memory_space<vmem>>, %arg5: memref<128x128xf32, #tpu.memory_space<vmem>>) attributes {dimension_semantics = [#tpu.dimension_semantics<parallel>], iteration_bounds = array<i64: 1>, scalar_prefetch = 0 : i64, scratch_operands = 0 : i64, tpu.core_type = #tpu.core_type<tc>, window_params = [{transform_indices = @transform_0, window_bounds = array<i64: 128, 128>}, {pipeline_mode = #tpu.pipeline_mode<synchronous>, transform_indices = @transform_1, window_bounds = array<i64: 1, 128>}, {pipeline_mode = #tpu.pipeline_mode<synchronous>, transform_indices = @transform_2, window_bounds = array<i64: 1, 128>}, {transform_indices = @transform_3, window_bounds = array<i64: 128, 128>}, {transform_indices = @transform_4, window_bounds = array<i64: 128, 128>}]} {
    %c0 = arith.constant 0 : index
    %c0_0 = arith.constant 0 : index
    %0 = vector.load %arg1[%c0, %c0_0] : memref<128x128xbf16, #tpu.memory_space<vmem>>, vector<128x128xbf16>
    %1 = arith.extf %0 : vector<128x128xbf16> to vector<128x128xf32>
    %c0_1 = arith.constant 0 : index
    %c0_2 = arith.constant 0 : index
    %2 = vector.load %arg2[%c0_1, %c0_2] : memref<1x128xf32, #tpu.memory_space<vmem>>, vector<1x128xf32>
    %3 = vector.broadcast %2 : vector<1x128xf32> to vector<128x128xf32>
    %4 = arith.mulf %1, %3 : vector<128x128xf32>
    %c0_3 = arith.constant 0 : index
    %c0_4 = arith.constant 0 : index
    %5 = vector.load %arg3[%c0_3, %c0_4] : memref<1x128xf32, #tpu.memory_space<vmem>>, vector<1x128xf32>
    %6 = vector.broadcast %5 : vector<1x128xf32> to vector<128x128xf32>
    %7 = arith.addf %4, %6 : vector<128x128xf32>
    %c0_5 = arith.constant 0 : index
    %c0_6 = arith.constant 0 : index
    %8 = vector.load %arg4[%c0_5, %c0_6] : memref<128x128xbf16, #tpu.memory_space<vmem>>, vector<128x128xbf16>
    %9 = arith.extf %8 : vector<128x128xbf16> to vector<128x128xf32>
    %10 = arith.addf %7, %9 : vector<128x128xf32>
    %cst = arith.constant 0.000000e+00 : f32
    %11 = vector.broadcast %cst : f32 to vector<128x128xf32>
    %12 = arith.maximumf %10, %11 : vector<128x128xf32>
    %c0_7 = arith.constant 0 : index
    %c0_8 = arith.constant 0 : index
    %13 = vector.load %arg5[%c0_7, %c0_8] : memref<128x128xf32, #tpu.memory_space<vmem>>, vector<128x128xf32>
    tpu.vector_store %arg5[%c0_7, %c0_8], %12 {strides = array<i32>} : memref<128x128xf32, #tpu.memory_space<vmem>>, vector<128x128xf32>,
    return
  }
  func.func @transform_0(%arg0: i32) -> (i32, i32) {
    %c0_i32 = arith.constant 0 : i32
    %c0_i32_0 = arith.constant 0 : i32
    return %arg0, %c0_i32 : i32, i32
  }
  func.func @transform_1(%arg0: i32) -> (i32, i32) {
    %c0_i32 = arith.constant 0 : i32
    %c0_i32_0 = arith.constant 0 : i32
    %c0_i32_1 = arith.constant 0 : i32
    return %c0_i32, %c0_i32_0 : i32, i32
  }
  func.func @transform_2(%arg0: i32) -> (i32, i32) {
    %c0_i32 = arith.constant 0 : i32
    %c0_i32_0 = arith.constant 0 : i32
    %c0_i32_1 = arith.constant 0 : i32
    return %c0_i32, %c0_i32_0 : i32, i32
  }
  func.func @transform_3(%arg0: i32) -> (i32, i32) {
    %c0_i32 = arith.constant 0 : i32
    %c0_i32_0 = arith.constant 0 : i32
    return %arg0, %c0_i32 : i32, i32
  }
  func.func @transform_4(%arg0: i32) -> (i32, i32) {
    %c0_i32 = arith.constant 0 : i32
    %c0_i32_0 = arith.constant 0 : i32
    return %arg0, %c0_i32 : i32, i32
  }
}

</mosaic_0001>

<llo_original>
// kernel: _lambda_.17
$region0: #{_lambda_.17}
  #allocation0 [shape = 'u32[]', space=smem, size = 0x4, offset = 0x4, fixed_abs, tag = 'smem constant byte address 0x4 - core index']
  #allocation1 [shape = 'u32[144,128]{1,0:T(1,128)}', space=vmem, size = 0x12000, scoped, tag = 'internal scratch']
  #allocation2 [shape = 'u32[2048]{0}', space=vmem, size = 0x2000, scoped, tag = 'scoped memory for _lambda_.17']
  #allocation3 [shape = 'u32[2048]{0}', space=vmem, size = 0x2000, scoped, tag = 'scoped memory for _lambda_.17']
  #allocation4 [shape = 'u32[2048]{0}', space=vmem, size = 0x2000, scoped, tag = 'scoped memory for _lambda_.17']
  #allocation5 [shape = 'u32[2048]{0}', space=vmem, size = 0x2000, scoped, tag = 'scoped memory for _lambda_.17']
  #allocation6 [shape = 'u32[2048]{0}', space=vmem, size = 0x2000, scoped, tag = 'scoped memory for _lambda_.17']
  #allocation7 [shape = 'u32[2048]{0}', space=vmem, size = 0x2000, scoped, tag = 'scoped memory for _lambda_.17']
  #allocation8 [shape = 'u32[2048]{0}', space=vmem, size = 0x2000, scoped, tag = 'scoped memory for _lambda_.17']
  #allocation9 [shape = 'u32[2048]{0}', space=vmem, size = 0x2000, scoped, tag = 'scoped memory for _lambda_.17']
  #allocation10 [shape = 'u32[2048]{0}', space=vmem, size = 0x2000, scoped, tag = 'scoped memory for _lambda_.17']
  #allocation11 [shape = 'u32[2048]{0}', space=vmem, size = 0x2000, scoped, tag = 'scoped memory for _lambda_.17']
  #allocation12 [shape = 'u32[2048]{0}', space=vmem, size = 0x2000, scoped, tag = 'scoped memory for _lambda_.17']
  #allocation13 [shape = 'u32[2048]{0}', space=vmem, size = 0x2000, scoped, tag = 'scoped memory for _lambda_.17']
  #allocation14 [shape = 'u32[2048]{0}', space=vmem, size = 0x2000, scoped, tag = 'scoped memory for _lambda_.17']
  #allocation15 [shape = 'u32[2048]{0}', space=vmem, size = 0x2000, scoped, tag = 'scoped memory for _lambda_.17']
  #allocation16 [shape = 'u32[2048]{0}', space=vmem, size = 0x2000, scoped, tag = 'scoped memory for _lambda_.17']
  #allocation17 [shape = 'u32[2048]{0}', space=vmem, size = 0x2000, scoped, tag = 'scoped memory for _lambda_.17']
  #allocation18 [shape = 'u32[2048]{0}', space=vmem, size = 0x2000, scoped, tag = 'scoped memory for _lambda_.17']
  #allocation19 [shape = 'u32[2048]{0}', space=vmem, size = 0x2000, scoped, tag = 'scoped memory for _lambda_.17']
  #allocation20 [shape = 'u32[2048]{0}', space=vmem, size = 0x2000, scoped, tag = 'scoped memory for _lambda_.17']
  #allocation21 [shape = 'u32[2048]{0}', space=vmem, size = 0x2000, scoped, tag = 'scoped memory for _lambda_.17']
  #allocation22 [shape = 'u32[2048]{0}', space=vmem, size = 0x2000, scoped, tag = 'scoped memory for _lambda_.17']
  #allocation23 [shape = 'u32[2048]{0}', space=vmem, size = 0x2000, scoped, tag = 'scoped memory for _lambda_.17']
  #allocation24 [shape = 'u32[2048]{0}', space=vmem, size = 0x2000, scoped, tag = 'scoped memory for _lambda_.17']
  #allocation25 [shape = 'u32[2048]{0}', space=vmem, size = 0x2000, scoped, tag = 'scoped memory for _lambda_.17']
  #allocation26 [shape = 'u32[2048]{0}', space=vmem, size = 0x2000, scoped, tag = 'scoped memory for _lambda_.17']
  #allocation27 [shape = 'u32[2048]{0}', space=vmem, size = 0x2000, scoped, tag = 'scoped memory for _lambda_.17']
  #allocation28 [shape = 'u32[2048]{0}', space=vmem, size = 0x2000, scoped, tag = 'scoped memory for _lambda_.17']
  #allocation29 [shape = 'u32[2048]{0}', space=vmem, size = 0x2000, scoped, tag = 'scoped memory for _lambda_.17']
  #allocation30 [shape = 'u32[2048]{0}', space=vmem, size = 0x2000, scoped, tag = 'scoped memory for _lambda_.17']
  #allocation31 [shape = 'u32[2048]{0}', space=vmem, size = 0x2000, scoped, tag = 'scoped memory for _lambda_.17']
  #allocation32 [shape = 'u32[2048]{0}', space=vmem, size = 0x2000, scoped, tag = 'scoped memory for _lambda_.17']
  #allocation33 [shape = 'u32[2048]{0}', space=vmem, size = 0x2000, scoped, tag = 'scoped memory for _lambda_.17']
  #allocation34 [shape = 'u32[2048]{0}', space=vmem, size = 0x2000, scoped, tag = 'scoped memory for _lambda_.17']
  #allocation35 [shape = 'u32[2048]{0}', space=vmem, size = 0x2000, scoped, tag = 'scoped memory for _lambda_.17']
  #allocation36 [shape = 'u32[2048]{0}', space=vmem, size = 0x2000, scoped, tag = 'scoped memory for _lambda_.17']
  %s0 = inlined_call_operand.vmem [shape: bf16[128,128], index: 0, kind: input, shape index: {}]
  %s1 = inlined_call_operand.vmem [shape: f32[8], index: 1, kind: input, shape index: {}]
  %s2 = inlined_call_operand.<no memory space> [shape: f32[], index: 2, kind: input, shape index: {}]
  %s3 = inlined_call_operand.vmem [shape: f32[8], index: 3, kind: input, shape index: {}]
  %s4 = inlined_call_operand.vmem [shape: f32[1,8,128], index: 4, kind: input, shape index: {}]
  %s5 = inlined_call_operand.<no memory space> [shape: f32[], index: 5, kind: input, shape index: {}]
  %s6 = inlined_call_operand.<no memory space> [shape: f32[], index: 6, kind: input, shape index: {}]
  %s7 = inlined_call_operand.vmem [shape: bf16[128,128], index: 7, kind: output, shape index: {}]
  %s8 = sld [smem:[#allocation0]]
  $region42: #{_lambda_.17} parent=0
    _
  %s10 = ssub.s32 1, %s8
  %s11 = scalar_select 0, %s10, %s8
  %v12 = vstv %s2
  %v13 = vstv %s2
  %v14 = vstv %s5
  %v15 = vstv %s6
  %v16 = vstv %s2
  %v17 = vstv %s2
  %v18 = vstv %s2
  %v19 = vstv %s5
  %v20 = vstv %s6
  $region1: #{_lambda_.17} parent=0
    #allocation37 [shape = 'u8[512]{0}', space=vmem, size = 0x400, dematerialized = true, scoped, tag = 'FusionAdapter Buffer %fusion.25 = f32[1,128]{1,0:T(1,128)} fusion(%param_3.52, %param_2.102, %param_4.56, %param_5.62, %param_6.48), kind=kLoop, calls=%fused_computation.37.clone, metadata={op_name="jit(<lambda>)/reshape" stack_frame_id=59}']
    #allocation38 [shape = 'u8[512]{0}', space=vmem, size = 0x400, dematerialized = true, scoped, tag = 'FusionAdapter Buffer %fusion.24 = f32[1,128]{1,0:T(1,128)} fusion(%param_1.150, %param_2.102, %param_3.52, %param_4.56, %param_5.62, %param_6.48), kind=kLoop, calls=%fused_computation.36.clone, metadata={op_name="jit(<lambda>)/reshape" stack_frame_id=60}']
    // Predicated region
    $region2: #{_lambda_.17} parent=1 // pred_check
      _
    $region3: #{_lambda_.17} parent=1 // pred_check_branch
      %22 = sbr.rel (0) target = $region5
    $region4: #{_lambda_.17} parent=1 // pred_region
      _
    $region5: #{_lambda_.17} parent=1 // pred_fallthru
      _
    // Predicated region
    $region6: #{_lambda_.17} parent=1 // pred_check
      _
    $region7: #{_lambda_.17} parent=1 // pred_check_branch
      %24 = sbr.rel (0) target = $region9
    $region8: #{_lambda_.17} parent=1 // pred_region
      _
    $region9: #{_lambda_.17} parent=1 // pred_fallthru
      _
    // Predicated region
    $region10: #{_lambda_.17} parent=1 // pred_check
      _
    $region11: #{_lambda_.17} parent=1 // pred_check_branch
      %26 = sbr.rel (0) target = $region13
    $region12: #{_lambda_.17} parent=1 // pred_region
      _
    $region13: #{_lambda_.17} parent=1 // pred_fallthru
      _
    // Predicated region
    $region14: #{_lambda_.17} parent=1 // pred_check
      _
    $region15: #{_lambda_.17} parent=1 // pred_check_branch
      %28 = sbr.rel (0) target = $region17
    $region16: #{_lambda_.17} parent=1 // pred_region
      _
    $region17: #{_lambda_.17} parent=1 // pred_fallthru
      _
    // Predicated region
    $region18: #{_lambda_.17} parent=1 // pred_check
      _
    $region19: #{_lambda_.17} parent=1 // pred_check_branch
      %30 = sbr.rel (0) target = $region21
    $region20: #{_lambda_.17} parent=1 // pred_region
      _
    $region21: #{_lambda_.17} parent=1 // pred_fallthru
      _
    // Predicated region
    $region22: #{_lambda_.17} parent=1 // pred_check
      _
    $region23: #{_lambda_.17} parent=1 // pred_check_branch
      %32 = sbr.rel (0) target = $region25
    $region24: #{_lambda_.17} parent=1 // pred_region
      _
    $region25: #{_lambda_.17} parent=1 // pred_fallthru
      _
    // Predicated region
    $region26: #{_lambda_.17} parent=1 // pred_check
      _
    $region27: #{_lambda_.17} parent=1 // pred_check_branch
      %34 = sbr.rel (0) target = $region29
    $region28: #{_lambda_.17} parent=1 // pred_region
      _
    $region29: #{_lambda_.17} parent=1 // pred_fallthru
      _
    // Predicated region
    $region30: #{_lambda_.17} parent=1 // pred_check
      _
    $region31: #{_lambda_.17} parent=1 // pred_check_branch
      %36 = sbr.rel (0) target = $region33
    $region32: #{_lambda_.17} parent=1 // pred_region
      _
    $region33: #{_lambda_.17} parent=1 // pred_fallthru
      _
    %v37 = vld [vmem:[%s3] sm:$0x1]
    %v38 = vlaneseq
    %vm40 = vcmp.lt.s32.totalorder %v38, 8
    %v41 = vsel %vm40, %v37, %v12
    %v42 = vld [vmem:[%s4] sm:$0xff]
    %vm43 = vcmask 1040384
    %v44 = vsel %vm43, 0, %v42
    %v45 = vrot.slane %v44, 1
    %v46 = vld [vmem:[%s4] sm:$0xff]
    %47 = xla_tuple %v45, %v14
    %48 = xla_tuple %47
    %v49 = vmul.f32 %v45, %v14
    %50 = xla_tuple %v49
    %51 = xla_tuple %v46, %v14
    %52 = xla_tuple %51
    %v53 = vmul.f32 %v46, %v14
    %54 = xla_tuple %v53
    %55 = xla_tuple %v53, %v53
    %56 = xla_tuple %55
    %v57 = vmul.f32 %v53, %v53
    %58 = xla_tuple %v57
    %59 = xla_tuple %v49, %v57
    %60 = xla_tuple %59
    %v61 = vsub.f32 %v49, %v57
    %62 = xla_tuple %v61
    %63 = xla_tuple %v61, %v13
    %64 = xla_tuple %63
    %v65 = vmax.f32 %v61, %v13
    %66 = xla_tuple %v65
    %67 = xla_tuple %v65, %v15
    %68 = xla_tuple %67
    %v69 = vadd.f32 %v65, %v15
    %70 = xla_tuple %v69
    %v71 = vrsqrt.pop %v69
    %72 = xla_tuple %v41, %v71
    %73 = xla_tuple %72
    %v74 = vmul.f32 %v41, %v71
    %75 = xla_tuple %v74
    %77 = vst [vmem:[#allocation37] sm:$0x1] %v74
    %v78 = vld [vmem:[%s1] sm:$0x1]
    %v79 = vlaneseq
    %vm81 = vcmp.lt.s32.totalorder %v79, 8
    %v82 = vsel %vm81, %v78, %v16
    %v83 = vld [vmem:[%s3] sm:$0x1]
    %v84 = vlaneseq
    %vm86 = vcmp.lt.s32.totalorder %v84, 8
    %v87 = vsel %vm86, %v83, %v18
    %v88 = vld [vmem:[%s4] sm:$0xff]
    %vm89 = vcmask 1040384
    %v90 = vsel %vm89, 0, %v88
    %v91 = vrot.slane %v90, 1
    %v92 = vld [vmem:[%s4] sm:$0xff]
    %93 = xla_tuple %v92, %v19
    %94 = xla_tuple %93
    %v95 = vmul.f32 %v92, %v19
    %96 = xla_tuple %v95
    %97 = xla_tuple %v91, %v19
    %98 = xla_tuple %97
    %v99 = vmul.f32 %v91, %v19
    %100 = xla_tuple %v99
    %101 = xla_tuple %v95, %v95
    %102 = xla_tuple %101
    %v103 = vmul.f32 %v95, %v95
    %104 = xla_tuple %v103
    %105 = xla_tuple %v99, %v103
    %106 = xla_tuple %105
    %v107 = vsub.f32 %v99, %v103
    %108 = xla_tuple %v107
    %109 = xla_tuple %v107, %v17
    %110 = xla_tuple %109
    %v111 = vmax.f32 %v107, %v17
    %112 = xla_tuple %v111
    %113 = xla_tuple %v111, %v20
    %114 = xla_tuple %113
    %v115 = vadd.f32 %v111, %v20
    %116 = xla_tuple %v115
    %v117 = vrsqrt.pop %v115
    %118 = xla_tuple %v87, %v117
    %119 = xla_tuple %118
    %v120 = vmul.f32 %v87, %v117
    %121 = xla_tuple %v120
    %122 = xla_tuple %v95, %v120
    %123 = xla_tuple %122
    %v124 = vmul.f32 %v95, %v120
    %125 = xla_tuple %v124
    %126 = xla_tuple %v82, %v124
    %127 = xla_tuple %126
    %v128 = vsub.f32 %v82, %v124
    %129 = xla_tuple %v128
    %131 = vst [vmem:[#allocation38] sm:$0x1] %v128
    %v132 = vld [vmem:[%s0] sm:$0xf]
    %v133 = vld [vmem:[%s0 + $0x4] sm:$0xf]
    %v134 = vld [vmem:[%s0 + $0x8] sm:$0xf]
    %v135 = vld [vmem:[%s0 + $0xc] sm:$0xf]
    %v136 = vld [vmem:[%s0 + $0x10] sm:$0xf]
    %v137 = vld [vmem:[%s0 + $0x14] sm:$0xf]
    %v138 = vld [vmem:[%s0 + $0x18] sm:$0xf]
    %v139 = vld [vmem:[%s0 + $0x1c] sm:$0xf]
    %v140 = vld [vmem:[%s0 + $0x20] sm:$0xf]
    %v141 = vld [vmem:[%s0 + $0x24] sm:$0xf]
    %v142 = vld [vmem:[%s0 + $0x28] sm:$0xf]
    %v143 = vld [vmem:[%s0 + $0x2c] sm:$0xf]
    %v144 = vld [vmem:[%s0 + $0x30] sm:$0xf]
    %v145 = vld [vmem:[%s0 + $0x34] sm:$0xf]
    %v146 = vld [vmem:[%s0 + $0x38] sm:$0xf]
    %v147 = vld [vmem:[%s0 + $0x3c] sm:$0xf]
    %v148 = vunpack.c.l.bf16 %v132
    %v149 = vunpack.c.l.bf16 %v133
    %v150 = vunpack.c.l.bf16 %v134
    %v151 = vunpack.c.l.bf16 %v135
    %v152 = vunpack.c.l.bf16 %v136
    %v153 = vunpack.c.l.bf16 %v137
    %v154 = vunpack.c.l.bf16 %v138
    %v155 = vunpack.c.l.bf16 %v139
    %v156 = vunpack.c.l.bf16 %v140
    %v157 = vunpack.c.l.bf16 %v141
    %v158 = vunpack.c.l.bf16 %v142
    %v159 = vunpack.c.l.bf16 %v143
    %v160 = vunpack.c.l.bf16 %v144
    %v161 = vunpack.c.l.bf16 %v145
    %v162 = vunpack.c.l.bf16 %v146
    %v163 = vunpack.c.l.bf16 %v147
    %v164 = vld [vmem:[#allocation37] sm:$0x1]
    %v166 = vlaneseq
    %v167 = vshrl.u32 %v166, 7
    %v168 = vsub.s32 0, %v167
    %v169 = vrot.slane %v164, %v168
    %v171 = vmul.f32 %v148, %v169
    %v172 = vmul.f32 %v149, %v169
    %v173 = vmul.f32 %v150, %v169
    %v174 = vmul.f32 %v151, %v169
    %v175 = vmul.f32 %v152, %v169
    %v176 = vmul.f32 %v153, %v169
    %v177 = vmul.f32 %v154, %v169
    %v178 = vmul.f32 %v155, %v169
    %v179 = vmul.f32 %v156, %v169
    %v180 = vmul.f32 %v157, %v169
    %v181 = vmul.f32 %v158, %v169
    %v182 = vmul.f32 %v159, %v169
    %v183 = vmul.f32 %v160, %v169
    %v184 = vmul.f32 %v161, %v169
    %v185 = vmul.f32 %v162, %v169
    %v186 = vmul.f32 %v163, %v169
    %v187 = vld [vmem:[#allocation38] sm:$0x1]
    %v189 = vlaneseq
    %v190 = vshrl.u32 %v189, 7
    %v191 = vsub.s32 0, %v190
    %v192 = vrot.slane %v187, %v191
    %v194 = vadd.f32 %v171, %v192
    %v195 = vadd.f32 %v172, %v192
    %v196 = vadd.f32 %v173, %v192
    %v197 = vadd.f32 %v174, %v192
    %v198 = vadd.f32 %v175, %v192
    %v199 = vadd.f32 %v176, %v192
    %v200 = vadd.f32 %v177, %v192
    %v201 = vadd.f32 %v178, %v192
    %v202 = vadd.f32 %v179, %v192
    %v203 = vadd.f32 %v180, %v192
    %v204 = vadd.f32 %v181, %v192
    %v205 = vadd.f32 %v182, %v192
    %v206 = vadd.f32 %v183, %v192
    %v207 = vadd.f32 %v184, %v192
    %v208 = vadd.f32 %v185, %v192
    %v209 = vadd.f32 %v186, %v192
    %v210 = vmax.f32 %v194, 0.0
    %v211 = vmax.f32 %v195, 0.0
    %v212 = vmax.f32 %v196, 0.0
    %v213 = vmax.f32 %v197, 0.0
    %v214 = vmax.f32 %v198, 0.0
    %v215 = vmax.f32 %v199, 0.0
    %v216 = vmax.f32 %v200, 0.0
    %v217 = vmax.f32 %v201, 0.0
    %v218 = vmax.f32 %v202, 0.0
    %v219 = vmax.f32 %v203, 0.0
    %v220 = vmax.f32 %v204, 0.0
    %v221 = vmax.f32 %v205, 0.0
    %v222 = vmax.f32 %v206, 0.0
    %v223 = vmax.f32 %v207, 0.0
    %v224 = vmax.f32 %v208, 0.0
    %v225 = vmax.f32 %v209, 0.0
    %v226 = vpack.c.bf16 %v211, %v210
    %v227 = vpack.c.bf16 %v213, %v212
    %v228 = vpack.c.bf16 %v215, %v214
    %v229 = vpack.c.bf16 %v217, %v216
    %v230 = vpack.c.bf16 %v219, %v218
    %v231 = vpack.c.bf16 %v221, %v220
    %v232 = vpack.c.bf16 %v223, %v222
    %v233 = vpack.c.bf16 %v225, %v224
    %v242 = vunpack.c.l.b16 %v226
    %v243 = vunpack.c.h.b16 %v226
    %v244 = vunpack.c.l.b16 %v227
    %v245 = vunpack.c.h.b16 %v227
    %v246 = vunpack.c.l.b16 %v228
    %v247 = vunpack.c.h.b16 %v228
    %v248 = vunpack.c.l.b16 %v229
    %v249 = vunpack.c.h.b16 %v229
    %v250 = vunpack.c.l.b16 %v230
    %v251 = vunpack.c.h.b16 %v230
    %v252 = vunpack.c.l.b16 %v231
    %v253 = vunpack.c.h.b16 %v231
    %v254 = vunpack.c.l.b16 %v232
    %v255 = vunpack.c.h.b16 %v232
    %v256 = vunpack.c.l.b16 %v233
    %v257 = vunpack.c.h.b16 %v233
    %v258 = vpack.c.b16 %v242, %v242
    %v259 = vpack.c.b16 %v243, %v243
    %v260 = vpack.c.b16 %v244, %v244
    %v261 = vpack.c.b16 %v245, %v245
    %v262 = vpack.c.b16 %v246, %v246
    %v263 = vpack.c.b16 %v247, %v247
    %v264 = vpack.c.b16 %v248, %v248
    %v265 = vpack.c.b16 %v249, %v249
    %v266 = vpack.c.b16 %v250, %v250
    %v267 = vpack.c.b16 %v251, %v251
    %v268 = vpack.c.b16 %v252, %v252
    %v269 = vpack.c.b16 %v253, %v253
    %v270 = vpack.c.b16 %v254, %v254
    %v271 = vpack.c.b16 %v255, %v255
    %v272 = vpack.c.b16 %v256, %v256
    %v273 = vpack.c.b16 %v257, %v257
    %290 = vst [vmem:[%s7] sm:$0xf] %v258
    %291 = vst [vmem:[%s7 + $0x4] sm:$0xf] %v259
    %292 = vst [vmem:[%s7 + $0x8] sm:$0xf] %v260
    %293 = vst [vmem:[%s7 + $0xc] sm:$0xf] %v261
    %294 = vst [vmem:[%s7 + $0x10] sm:$0xf] %v262
    %295 = vst [vmem:[%s7 + $0x14] sm:$0xf] %v263
    %296 = vst [vmem:[%s7 + $0x18] sm:$0xf] %v264
    %297 = vst [vmem:[%s7 + $0x1c] sm:$0xf] %v265
    %298 = vst [vmem:[%s7 + $0x20] sm:$0xf] %v266
    %299 = vst [vmem:[%s7 + $0x24] sm:$0xf] %v267
    %300 = vst [vmem:[%s7 + $0x28] sm:$0xf] %v268
    %301 = vst [vmem:[%s7 + $0x2c] sm:$0xf] %v269
    %302 = vst [vmem:[%s7 + $0x30] sm:$0xf] %v270
    %303 = vst [vmem:[%s7 + $0x34] sm:$0xf] %v271
    %304 = vst [vmem:[%s7 + $0x38] sm:$0xf] %v272
    %305 = vst [vmem:[%s7 + $0x3c] sm:$0xf] %v273
    // Predicated region
    $region34: #{_lambda_.17} parent=1 // pred_check
      _
    $region35: #{_lambda_.17} parent=1 // pred_check_branch
      %307 = sbr.rel (0) target = $region37
    $region36: #{_lambda_.17} parent=1 // pred_region
      _
    $region37: #{_lambda_.17} parent=1 // pred_fallthru
      _
    // Predicated region
    $region38: #{_lambda_.17} parent=1 // pred_check
      _
    $region39: #{_lambda_.17} parent=1 // pred_check_branch
      %309 = sbr.rel (0) target = $region41
    $region40: #{_lambda_.17} parent=1 // pred_region
      _
    $region41: #{_lambda_.17} parent=1 // pred_fallthru
      _

// kernel: _lambda_.14
$region0: #{_lambda_.14}
  #allocation0 [shape = 'u32[]', space=smem, size = 0x4, offset = 0x4, fixed_abs, tag = 'smem constant byte address 0x4 - core index']
  #allocation1 [shape = 'u32[144,128]{1,0:T(1,128)}', space=vmem, size = 0x12000, scoped, tag = 'internal scratch']
  #allocation2 [shape = 'u32[2048]{0}', space=vmem, size = 0x2000, scoped, tag = 'scoped memory for _lambda_.14']
  #allocation3 [shape = 'u32[2048]{0}', space=vmem, size = 0x2000, scoped, tag = 'scoped memory for _lambda_.14']
  #allocation4 [shape = 'u32[2048]{0}', space=vmem, size = 0x2000, scoped, tag = 'scoped memory for _lambda_.14']
  #allocation5 [shape = 'u32[2048]{0}', space=vmem, size = 0x2000, scoped, tag = 'scoped memory for _lambda_.14']
  #allocation6 [shape = 'u32[2048]{0}', space=vmem, size = 0x2000, scoped, tag = 'scoped memory for _lambda_.14']
  #allocation7 [shape = 'u32[2048]{0}', space=vmem, size = 0x2000, scoped, tag = 'scoped memory for _lambda_.14']
  #allocation8 [shape = 'u32[2048]{0}', space=vmem, size = 0x2000, scoped, tag = 'scoped memory for _lambda_.14']
  #allocation9 [shape = 'u32[2048]{0}', space=vmem, size = 0x2000, scoped, tag = 'scoped memory for _lambda_.14']
  #allocation10 [shape = 'u32[2048]{0}', space=vmem, size = 0x2000, scoped, tag = 'scoped memory for _lambda_.14']
  #allocation11 [shape = 'u32[2048]{0}', space=vmem, size = 0x2000, scoped, tag = 'scoped memory for _lambda_.14']
  %s0 = inlined_call_operand.vmem [shape: bf16[36,8], index: 0, kind: input, shape index: {}]
  %s1 = inlined_call_operand.<no memory space> [shape: bf16[], index: 1, kind: input, shape index: {}]
  %s2 = inlined_call_operand.vmem [shape: bf16[128,36], index: 2, kind: input, shape index: {}]
  %s3 = inlined_call_operand.vmem [shape: bf16[128,128], index: 3, kind: output, shape index: {0}]
  %s4 = inlined_call_operand.vmem [shape: f32[8,128], index: 4, kind: output, shape index: {1}]
  %5 = xla_tuple %s3, %s4
  %s6 = sld [smem:[#allocation0]]
  $region26: #{_lambda_.14} parent=0
    _
  %s8 = ssub.s32 1, %s6
  %s9 = scalar_select 0, %s8, %s6
  %v10 = vstv %s1
  %v11 = vunpack.i.l.bf16 %v10
  %v13 = vunpack.i.h.bf16 %v10
  %v15 = vstv %s1
  %v16 = vunpack.i.l.bf16 %v15
  %v18 = vunpack.i.h.bf16 %v15
  $region1: #{_lambda_.14} parent=0
    #allocation12 [shape = 'u8[32768]{0}', space=vmem, size = 0x8000, dematerialized = true, scoped, tag = 'FusionAdapter Buffer %fusion.8 = bf16[128,128]{1,0:T(8,128)(2,1)} fusion(%param_2.5, %param_1.21), kind=kLoop, calls=%fused_computation.17.clone, metadata={op_name="jit(<lambda>)/jit(_pad)/pad" stack_frame_id=30}']
    #allocation13 [shape = 'u8[32768]{0}', space=vmem, size = 0x8000, dematerialized = true, scoped, tag = 'FusionAdapter Buffer %fusion.7 = bf16[128,128]{1,0:T(8,128)(2,1)} fusion(%param_0.28, %param_1.21), kind=kLoop, calls=%fused_computation.16.clone, metadata={op_name="jit(<lambda>)/jit(_pad)/pad" stack_frame_id=33}']
    // Predicated region
    $region2: #{_lambda_.14} parent=1 // pred_check
      _
    $region3: #{_lambda_.14} parent=1 // pred_check_branch
      %21 = sbr.rel (0) target = $region5
    $region4: #{_lambda_.14} parent=1 // pred_region
      _
    $region5: #{_lambda_.14} parent=1 // pred_fallthru
      _
    // Predicated region
    $region6: #{_lambda_.14} parent=1 // pred_check
      _
    $region7: #{_lambda_.14} parent=1 // pred_check_branch
      %23 = sbr.rel (0) target = $region9
    $region8: #{_lambda_.14} parent=1 // pred_region
      _
    $region9: #{_lambda_.14} parent=1 // pred_fallthru
      _
    %s25 = sor.u32 255, 127
    %s26 = sand.u32 %s25, 85
    %s27 = sshrl.u32 %s26, 1
    %s28 = sor.u32 %s26, %s27
    %s29 = sand.u32 51, %s28
    %s30 = sshrl.u32 %s29, 2
    %s31 = sor.u32 %s29, %s30
    %s32 = sand.u32 15, %s31
    %v33 = vld [vmem:[%s2] sm:%s32]
    %v34 = vunpack.c.l.bf16 %v33
    %v35 = vunpack.c.h.bf16 %v33
    %v36 = vlaneseq
    %v37 = vand.u32 %v36, 127
    %vm39 = vcmp.lt.s32.totalorder %v37, 36
    %v40 = vsel %vm39, %v34, %v11
    %v41 = vpack.c.bf16 0.0, %v40
    %43 = vst [vmem:[#allocation12] sm:$0xf] %v41
    %s44 = scalar_lea.vmem %s2, 4
    %s46 = sor.u32 255, 127
    %s47 = sand.u32 %s46, 85
    %s48 = sshrl.u32 %s47, 1
    %s49 = sor.u32 %s47, %s48
    %s50 = sand.u32 51, %s49
    %s51 = sshrl.u32 %s50, 2
    %s52 = sor.u32 %s50, %s51
    %s53 = sand.u32 15, %s52
    %v54 = vld [vmem:[%s44] sm:%s53]
    %v55 = vunpack.c.l.bf16 %v54
    %v56 = vunpack.c.h.bf16 %v54
    %v57 = vlaneseq
    %v58 = vand.u32 %v57, 127
    %vm60 = vcmp.lt.s32.totalorder %v58, 36
    %v61 = vsel %vm60, %v55, %v11
    %s62 = scalar_lea.vmem [#allocation12], 4
    %v63 = vpack.c.bf16 0.0, %v61
    %65 = vst [vmem:[%s62] sm:$0xf] %v63
    %s66 = scalar_lea.vmem %s2, 8
    %s68 = sor.u32 255, 127
    %s69 = sand.u32 %s68, 85
    %s70 = sshrl.u32 %s69, 1
    %s71 = sor.u32 %s69, %s70
    %s72 = sand.u32 51, %s71
    %s73 = sshrl.u32 %s72, 2
    %s74 = sor.u32 %s72, %s73
    %s75 = sand.u32 15, %s74
    %v76 = vld [vmem:[%s66] sm:%s75]
    %v77 = vunpack.c.l.bf16 %v76
    %v78 = vunpack.c.h.bf16 %v76
    %v79 = vlaneseq
    %v80 = vand.u32 %v79, 127
    %vm82 = vcmp.lt.s32.totalorder %v80, 36
    %v83 = vsel %vm82, %v77, %v11
    %s84 = scalar_lea.vmem [#allocation12], 8
    %v85 = vpack.c.bf16 0.0, %v83
    %87 = vst [vmem:[%s84] sm:$0xf] %v85
    %s88 = scalar_lea.vmem %s2, 12
    %s90 = sor.u32 255, 127
    %s91 = sand.u32 %s90, 85
    %s92 = sshrl.u32 %s91, 1
    %s93 = sor.u32 %s91, %s92
    %s94 = sand.u32 51, %s93
    %s95 = sshrl.u32 %s94, 2
    %s96 = sor.u32 %s94, %s95
    %s97 = sand.u32 15, %s96
    %v98 = vld [vmem:[%s88] sm:%s97]
    %v99 = vunpack.c.l.bf16 %v98
    %v100 = vunpack.c.h.bf16 %v98
    %v101 = vlaneseq
    %v102 = vand.u32 %v101, 127
    %vm104 = vcmp.lt.s32.totalorder %v102, 36
    %v105 = vsel %vm104, %v99, %v11
    %s106 = scalar_lea.vmem [#allocation12], 12
    %v107 = vpack.c.bf16 0.0, %v105
    %109 = vst [vmem:[%s106] sm:$0xf] %v107
    %s110 = scalar_lea.vmem %s2, 16
    %s112 = sor.u32 255, 127
    %s113 = sand.u32 %s112, 85
    %s114 = sshrl.u32 %s113, 1
    %s115 = sor.u32 %s113, %s114
    %s116 = sand.u32 51, %s115
    %s117 = sshrl.u32 %s116, 2
    %s118 = sor.u32 %s116, %s117
    %s119 = sand.u32 15, %s118
    %v120 = vld [vmem:[%s110] sm:%s119]
    %v121 = vunpack.c.l.bf16 %v120
    %v122 = vunpack.c.h.bf16 %v120
    %v123 = vlaneseq
    %v124 = vand.u32 %v123, 127
    %vm126 = vcmp.lt.s32.totalorder %v124, 36
    %v127 = vsel %vm126, %v121, %v11
    %s128 = scalar_lea.vmem [#allocation12], 16
    %v129 = vpack.c.bf16 0.0, %v127
    %131 = vst [vmem:[%s128] sm:$0xf] %v129
    %s132 = scalar_lea.vmem %s2, 20
    %s134 = sor.u32 255, 127
    %s135 = sand.u32 %s134, 85
    %s136 = sshrl.u32 %s135, 1
    %s137 = sor.u32 %s135, %s136
    %s138 = sand.u32 51, %s137
    %s139 = sshrl.u32 %s138, 2
    %s140 = sor.u32 %s138, %s139
    %s141 = sand.u32 15, %s140
    %v142 = vld [vmem:[%s132] sm:%s141]
    %v143 = vunpack.c.l.bf16 %v142
    %v144 = vunpack.c.h.bf16 %v142
    %v145 = vlaneseq
    %v146 = vand.u32 %v145, 127
    %vm148 = vcmp.lt.s32.totalorder %v146, 36
    %v149 = vsel %vm148, %v143, %v11
    %s150 = scalar_lea.vmem [#allocation12], 20
    %v151 = vpack.c.bf16 0.0, %v149
    %153 = vst [vmem:[%s150] sm:$0xf] %v151
    %s154 = scalar_lea.vmem %s2, 24
    %s156 = sor.u32 255, 127
    %s157 = sand.u32 %s156, 85
    %s158 = sshrl.u32 %s157, 1
    %s159 = sor.u32 %s157, %s158
    %s160 = sand.u32 51, %s159
    %s161 = sshrl.u32 %s160, 2
    %s162 = sor.u32 %s160, %s161
    %s163 = sand.u32 15, %s162
    %v164 = vld [vmem:[%s154] sm:%s163]
    %v165 = vunpack.c.l.bf16 %v164
    %v166 = vunpack.c.h.bf16 %v164
    %v167 = vlaneseq
    %v168 = vand.u32 %v167, 127
    %vm170 = vcmp.lt.s32.totalorder %v168, 36
    %v171 = vsel %vm170, %v165, %v11
    %s172 = scalar_lea.vmem [#allocation12], 24
    %v173 = vpack.c.bf16 0.0, %v171
    %175 = vst [vmem:[%s172] sm:$0xf] %v173
    %s176 = scalar_lea.vmem %s2, 28
    %s178 = sor.u32 255, 127
    %s179 = sand.u32 %s178, 85
    %s180 = sshrl.u32 %s179, 1
    %s181 = sor.u32 %s179, %s180
    %s182 = sand.u32 51, %s181
    %s183 = sshrl.u32 %s182, 2
    %s184 = sor.u32 %s182, %s183
    %s185 = sand.u32 15, %s184
    %v186 = vld [vmem:[%s176] sm:%s185]
    %v187 = vunpack.c.l.bf16 %v186
    %v188 = vunpack.c.h.bf16 %v186
    %v189 = vlaneseq
    %v190 = vand.u32 %v189, 127
    %vm192 = vcmp.lt.s32.totalorder %v190, 36
    %v193 = vsel %vm192, %v187, %v11
    %s194 = scalar_lea.vmem [#allocation12], 28
    %v195 = vpack.c.bf16 0.0, %v193
    %197 = vst [vmem:[%s194] sm:$0xf] %v195
    %s198 = scalar_lea.vmem %s2, 32
    %s200 = sor.u32 255, 127
    %s201 = sand.u32 %s200, 85
    %s202 = sshrl.u32 %s201, 1
    %s203 = sor.u32 %s201, %s202
    %s204 = sand.u32 51, %s203
    %s205 = sshrl.u32 %s204, 2
    %s206 = sor.u32 %s204, %s205
    %s207 = sand.u32 15, %s206
    %v208 = vld [vmem:[%s198] sm:%s207]
    %v209 = vunpack.c.l.bf16 %v208
    %v210 = vunpack.c.h.bf16 %v208
    %v211 = vlaneseq
    %v212 = vand.u32 %v211, 127
    %vm214 = vcmp.lt.s32.totalorder %v212, 36
    %v215 = vsel %vm214, %v209, %v11
    %s216 = scalar_lea.vmem [#allocation12], 32
    %v217 = vpack.c.bf16 0.0, %v215
    %219 = vst [vmem:[%s216] sm:$0xf] %v217
    %s220 = scalar_lea.vmem %s2, 36
    %s222 = sor.u32 255, 127
    %s223 = sand.u32 %s222, 85
    %s224 = sshrl.u32 %s223, 1
    %s225 = sor.u32 %s223, %s224
    %s226 = sand.u32 51, %s225
    %s227 = sshrl.u32 %s226, 2
    %s228 = sor.u32 %s226, %s227
    %s229 = sand.u32 15, %s228
    %v230 = vld [vmem:[%s220] sm:%s229]
    %v231 = vunpack.c.l.bf16 %v230
    %v232 = vunpack.c.h.bf16 %v230
    %v233 = vlaneseq
    %v234 = vand.u32 %v233, 127
    %vm236 = vcmp.lt.s32.totalorder %v234, 36
    %v237 = vsel %vm236, %v231, %v11
    %s238 = scalar_lea.vmem [#allocation12], 36
    %v239 = vpack.c.bf16 0.0, %v237
    %241 = vst [vmem:[%s238] sm:$0xf] %v239
    %s242 = scalar_lea.vmem %s2, 40
    %s244 = sor.u32 255, 127
    %s245 = sand.u32 %s244, 85
    %s246 = sshrl.u32 %s245, 1
    %s247 = sor.u32 %s245, %s246
    %s248 = sand.u32 51, %s247
    %s249 = sshrl.u32 %s248, 2
    %s250 = sor.u32 %s248, %s249
    %s251 = sand.u32 15, %s250
    %v252 = vld [vmem:[%s242] sm:%s251]
    %v253 = vunpack.c.l.bf16 %v252
    %v254 = vunpack.c.h.bf16 %v252
    %v255 = vlaneseq
    %v256 = vand.u32 %v255, 127
    %vm258 = vcmp.lt.s32.totalorder %v256, 36
    %v259 = vsel %vm258, %v253, %v11
    %s260 = scalar_lea.vmem [#allocation12], 40
    %v261 = vpack.c.bf16 0.0, %v259
    %263 = vst [vmem:[%s260] sm:$0xf] %v261
    %s264 = scalar_lea.vmem %s2, 44
    %s266 = sor.u32 255, 127
    %s267 = sand.u32 %s266, 85
    %s268 = sshrl.u32 %s267, 1
    %s269 = sor.u32 %s267, %s268
    %s270 = sand.u32 51, %s269
    %s271 = sshrl.u32 %s270, 2
    %s272 = sor.u32 %s270, %s271
    %s273 = sand.u32 15, %s272
    %v274 = vld [vmem:[%s264] sm:%s273]
    %v275 = vunpack.c.l.bf16 %v274
    %v276 = vunpack.c.h.bf16 %v274
    %v277 = vlaneseq
    %v278 = vand.u32 %v277, 127
    %vm280 = vcmp.lt.s32.totalorder %v278, 36
    %v281 = vsel %vm280, %v275, %v11
    %s282 = scalar_lea.vmem [#allocation12], 44
    %v283 = vpack.c.bf16 0.0, %v281
    %285 = vst [vmem:[%s282] sm:$0xf] %v283
    %s286 = scalar_lea.vmem %s2, 48
    %s288 = sor.u32 255, 127
    %s289 = sand.u32 %s288, 85
    %s290 = sshrl.u32 %s289, 1
    %s291 = sor.u32 %s289, %s290
    %s292 = sand.u32 51, %s291
    %s293 = sshrl.u32 %s292, 2
    %s294 = sor.u32 %s292, %s293
    %s295 = sand.u32 15, %s294
    %v296 = vld [vmem:[%s286] sm:%s295]
    %v297 = vunpack.c.l.bf16 %v296
    %v298 = vunpack.c.h.bf16 %v296
    %v299 = vlaneseq
    %v300 = vand.u32 %v299, 127
    %vm302 = vcmp.lt.s32.totalorder %v300, 36
    %v303 = vsel %vm302, %v297, %v11
    %s304 = scalar_lea.vmem [#allocation12], 48
    %v305 = vpack.c.bf16 0.0, %v303
    %307 = vst [vmem:[%s304] sm:$0xf] %v305
    %s308 = scalar_lea.vmem %s2, 52
    %s310 = sor.u32 255, 127
    %s311 = sand.u32 %s310, 85
    %s312 = sshrl.u32 %s311, 1
    %s313 = sor.u32 %s311, %s312
    %s314 = sand.u32 51, %s313
    %s315 = sshrl.u32 %s314, 2
    %s316 = sor.u32 %s314, %s315
    %s317 = sand.u32 15, %s316
    %v318 = vld [vmem:[%s308] sm:%s317]
    %v319 = vunpack.c.l.bf16 %v318
    %v320 = vunpack.c.h.bf16 %v318
    %v321 = vlaneseq
    %v322 = vand.u32 %v321, 127
    %vm324 = vcmp.lt.s32.totalorder %v322, 36
    %v325 = vsel %vm324, %v319, %v11
    %s326 = scalar_lea.vmem [#allocation12], 52
    %v327 = vpack.c.bf16 0.0, %v325
    %329 = vst [vmem:[%s326] sm:$0xf] %v327
    %s330 = scalar_lea.vmem %s2, 56
    %s332 = sor.u32 255, 127
    %s333 = sand.u32 %s332, 85
    %s334 = sshrl.u32 %s333, 1
    %s335 = sor.u32 %s333, %s334
    %s336 = sand.u32 51, %s335
    %s337 = sshrl.u32 %s336, 2
    %s338 = sor.u32 %s336, %s337
    %s339 = sand.u32 15, %s338
    %v340 = vld [vmem:[%s330] sm:%s339]
    %v341 = vunpack.c.l.bf16 %v340
    %v342 = vunpack.c.h.bf16 %v340
    %v343 = vlaneseq
    %v344 = vand.u32 %v343, 127
    %vm346 = vcmp.lt.s32.totalorder %v344, 36
    %v347 = vsel %vm346, %v341, %v11
    %s348 = scalar_lea.vmem [#allocation12], 56
    %v349 = vpack.c.bf16 0.0, %v347
    %351 = vst [vmem:[%s348] sm:$0xf] %v349
    %s352 = scalar_lea.vmem %s2, 60
    %s354 = sor.u32 255, 127
    %s355 = sand.u32 %s354, 85
    %s356 = sshrl.u32 %s355, 1
    %s357 = sor.u32 %s355, %s356
    %s358 = sand.u32 51, %s357
    %s359 = sshrl.u32 %s358, 2
    %s360 = sor.u32 %s358, %s359
    %s361 = sand.u32 15, %s360
    %v362 = vld [vmem:[%s352] sm:%s361]
    %v363 = vunpack.c.l.bf16 %v362
    %v364 = vunpack.c.h.bf16 %v362
    %v365 = vlaneseq
    %v366 = vand.u32 %v365, 127
    %vm368 = vcmp.lt.s32.totalorder %v366, 36
    %v369 = vsel %vm368, %v363, %v11
    %s370 = scalar_lea.vmem [#allocation12], 60
    %v371 = vpack.c.bf16 0.0, %v369
    %373 = vst [vmem:[%s370] sm:$0xf] %v371
    %s375 = sor.u32 255, 127
    %s376 = sand.u32 %s375, 85
    %s377 = sshrl.u32 %s376, 1
    %s378 = sor.u32 %s376, %s377
    %s379 = sand.u32 51, %s378
    %s380 = sshrl.u32 %s379, 2
    %s381 = sor.u32 %s379, %s380
    %s382 = sand.u32 15, %s381
    %v383 = vld [vmem:[%s0] sm:%s382]
    %v384 = vunpack.c.l.bf16 %v383
    %v385 = vunpack.c.h.bf16 %v383
    %v386 = vlaneseq
    %v387 = vshrl.u32 %v386, 7
    %vm389 = vcmp.lt.s32.totalorder %v387, 36
    %v390 = vsel %vm389, %v384, %v16
    %v391 = vlaneseq
    %v392 = vand.u32 %v391, 127
    %vm394 = vcmp.lt.s32.totalorder %v392, 8
    %v395 = vsel %vm394, %v390, %v16
    %v396 = vpack.c.bf16 0.0, %v395
    %398 = vst [vmem:[#allocation13] sm:$0xf] %v396
    %s399 = scalar_lea.vmem %s0, 4
    %s401 = sor.u32 255, 127
    %s402 = sand.u32 %s401, 85
    %s403 = sshrl.u32 %s402, 1
    %s404 = sor.u32 %s402, %s403
    %s405 = sand.u32 51, %s404
    %s406 = sshrl.u32 %s405, 2
    %s407 = sor.u32 %s405, %s406
    %s408 = sand.u32 15, %s407
    %v409 = vld [vmem:[%s399] sm:%s408]
    %v410 = vunpack.c.l.bf16 %v409
    %v411 = vunpack.c.h.bf16 %v409
    %v412 = vlaneseq
    %v413 = vshrl.u32 %v412, 7
    %v414 = vadd.s32 %v413, 8
    %vm415 = vcmp.lt.s32.totalorder %v414, 36
    %v416 = vsel %vm415, %v410, %v16
    %v417 = vlaneseq
    %v418 = vand.u32 %v417, 127
    %vm420 = vcmp.lt.s32.totalorder %v418, 8
    %v421 = vsel %vm420, %v416, %v16
    %s422 = scalar_lea.vmem [#allocation13], 4
    %v423 = vpack.c.bf16 0.0, %v421
    %425 = vst [vmem:[%s422] sm:$0xf] %v423
    %s426 = scalar_lea.vmem %s0, 8
    %s428 = sor.u32 255, 127
    %s429 = sand.u32 %s428, 85
    %s430 = sshrl.u32 %s429, 1
    %s431 = sor.u32 %s429, %s430
    %s432 = sand.u32 51, %s431
    %s433 = sshrl.u32 %s432, 2
    %s434 = sor.u32 %s432, %s433
    %s435 = sand.u32 15, %s434
    %v436 = vld [vmem:[%s426] sm:%s435]
    %v437 = vunpack.c.l.bf16 %v436
    %v438 = vunpack.c.h.bf16 %v436
    %v439 = vlaneseq
    %v440 = vshrl.u32 %v439, 7
    %v441 = vadd.s32 %v440, 16
    %vm442 = vcmp.lt.s32.totalorder %v441, 36
    %v443 = vsel %vm442, %v437, %v16
    %v444 = vlaneseq
    %v445 = vand.u32 %v444, 127
    %vm447 = vcmp.lt.s32.totalorder %v445, 8
    %v448 = vsel %vm447, %v443, %v16
    %s449 = scalar_lea.vmem [#allocation13], 8
    %v450 = vpack.c.bf16 0.0, %v448
    %452 = vst [vmem:[%s449] sm:$0xf] %v450
    %s453 = scalar_lea.vmem %s0, 12
    %s455 = sor.u32 255, 127
    %s456 = sand.u32 %s455, 85
    %s457 = sshrl.u32 %s456, 1
    %s458 = sor.u32 %s456, %s457
    %s459 = sand.u32 51, %s458
    %s460 = sshrl.u32 %s459, 2
    %s461 = sor.u32 %s459, %s460
    %s462 = sand.u32 15, %s461
    %v463 = vld [vmem:[%s453] sm:%s462]
    %v464 = vunpack.c.l.bf16 %v463
    %v465 = vunpack.c.h.bf16 %v463
    %v466 = vlaneseq
    %v467 = vshrl.u32 %v466, 7
    %v468 = vadd.s32 %v467, 24
    %vm469 = vcmp.lt.s32.totalorder %v468, 36
    %v470 = vsel %vm469, %v464, %v16
    %v471 = vlaneseq
    %v472 = vand.u32 %v471, 127
    %vm474 = vcmp.lt.s32.totalorder %v472, 8
    %v475 = vsel %vm474, %v470, %v16
    %s476 = scalar_lea.vmem [#allocation13], 12
    %v477 = vpack.c.bf16 0.0, %v475
    %479 = vst [vmem:[%s476] sm:$0xf] %v477
    %s480 = scalar_lea.vmem %s0, 16
    %s482 = sor.u32 255, 127
    %s483 = sand.u32 %s482, 85
    %s484 = sshrl.u32 %s483, 1
    %s485 = sor.u32 %s483, %s484
    %s486 = sand.u32 51, %s485
    %s487 = sshrl.u32 %s486, 2
    %s488 = sor.u32 %s486, %s487
    %s489 = sand.u32 15, %s488
    %v490 = vld [vmem:[%s480] sm:%s489]
    %v491 = vunpack.c.l.bf16 %v490
    %v492 = vunpack.c.h.bf16 %v490
    %v493 = vlaneseq
    %v494 = vshrl.u32 %v493, 7
    %v495 = vadd.s32 %v494, 32
    %vm496 = vcmp.lt.s32.totalorder %v495, 36
    %v497 = vsel %vm496, %v491, %v16
    %v498 = vlaneseq
    %v499 = vand.u32 %v498, 127
    %vm501 = vcmp.lt.s32.totalorder %v499, 8
    %v502 = vsel %vm501, %v497, %v16
    %s503 = scalar_lea.vmem [#allocation13], 16
    %v504 = vpack.c.bf16 0.0, %v502
    %506 = vst [vmem:[%s503] sm:$0xf] %v504
    %s507 = scalar_lea.vmem [#allocation13], 20
    %v508 = vpack.c.bf16 0.0, %v16
    %510 = vst [vmem:[%s507] sm:$0xf] %v508
    %s511 = scalar_lea.vmem [#allocation13], 24
    %v512 = vpack.c.bf16 0.0, %v16
    %514 = vst [vmem:[%s511] sm:$0xf] %v512
    %s515 = scalar_lea.vmem [#allocation13], 28
    %v516 = vpack.c.bf16 0.0, %v16
    %518 = vst [vmem:[%s515] sm:$0xf] %v516
    %s519 = scalar_lea.vmem [#allocation13], 32
    %v520 = vpack.c.bf16 0.0, %v16
    %522 = vst [vmem:[%s519] sm:$0xf] %v520
    %s523 = scalar_lea.vmem [#allocation13], 36
    %v524 = vpack.c.bf16 0.0, %v16
    %526 = vst [vmem:[%s523] sm:$0xf] %v524
    %s527 = scalar_lea.vmem [#allocation13], 40
    %v528 = vpack.c.bf16 0.0, %v16
    %530 = vst [vmem:[%s527] sm:$0xf] %v528
    %s531 = scalar_lea.vmem [#allocation13], 44
    %v532 = vpack.c.bf16 0.0, %v16
    %534 = vst [vmem:[%s531] sm:$0xf] %v532
    %s535 = scalar_lea.vmem [#allocation13], 48
    %v536 = vpack.c.bf16 0.0, %v16
    %538 = vst [vmem:[%s535] sm:$0xf] %v536
    %s539 = scalar_lea.vmem [#allocation13], 52
    %v540 = vpack.c.bf16 0.0, %v16
    %542 = vst [vmem:[%s539] sm:$0xf] %v540
    %s543 = scalar_lea.vmem [#allocation13], 56
    %v544 = vpack.c.bf16 0.0, %v16
    %546 = vst [vmem:[%s543] sm:$0xf] %v544
    %s547 = scalar_lea.vmem [#allocation13], 60
    %v548 = vpack.c.bf16 0.0, %v16
    %550 = vst [vmem:[%s547] sm:$0xf] %v548
    %v552 = vld [vmem:[#allocation12] sm:$0xf]
    %v553 = vld [vmem:[#allocation12 + $0x4] sm:$0xf]
    %v554 = vld [vmem:[#allocation12 + $0x8] sm:$0xf]
    %v555 = vld [vmem:[#allocation12 + $0xc] sm:$0xf]
    %v556 = vld [vmem:[#allocation12 + $0x10] sm:$0xf]
    %v557 = vld [vmem:[#allocation12 + $0x14] sm:$0xf]
    %v558 = vld [vmem:[#allocation12 + $0x18] sm:$0xf]
    %v559 = vld [vmem:[#allocation12 + $0x1c] sm:$0xf]
    %v560 = vld [vmem:[#allocation12 + $0x20] sm:$0xf]
    %v561 = vld [vmem:[#allocation12 + $0x24] sm:$0xf]
    %v562 = vld [vmem:[#allocation12 + $0x28] sm:$0xf]
    %v563 = vld [vmem:[#allocation12 + $0x2c] sm:$0xf]
    %v564 = vld [vmem:[#allocation12 + $0x30] sm:$0xf]
    %v565 = vld [vmem:[#allocation12 + $0x34] sm:$0xf]
    %v566 = vld [vmem:[#allocation12 + $0x38] sm:$0xf]
    %v567 = vld [vmem:[#allocation12 + $0x3c] sm:$0xf]
    %v568 = vld [vmem:[#allocation13] sm:$0xf]
    %v569 = vld [vmem:[#allocation13 + $0x4] sm:$0xf]
    %v570 = vld [vmem:[#allocation13 + $0x8] sm:$0xf]
    %v571 = vld [vmem:[#allocation13 + $0xc] sm:$0xf]
    %v572 = vld [vmem:[#allocation13 + $0x10] sm:$0xf]
    %v573 = vld [vmem:[#allocation13 + $0x14] sm:$0xf]
    %v574 = vld [vmem:[#allocation13 + $0x18] sm:$0xf]
    %v575 = vld [vmem:[#allocation13 + $0x1c] sm:$0xf]
    %v576 = vld [vmem:[#allocation13 + $0x20] sm:$0xf]
    %v577 = vld [vmem:[#allocation13 + $0x24] sm:$0xf]
    %v578 = vld [vmem:[#allocation13 + $0x28] sm:$0xf]
    %v579 = vld [vmem:[#allocation13 + $0x2c] sm:$0xf]
    %v580 = vld [vmem:[#allocation13 + $0x30] sm:$0xf]
    %v581 = vld [vmem:[#allocation13 + $0x34] sm:$0xf]
    %v582 = vld [vmem:[#allocation13 + $0x38] sm:$0xf]
    %v583 = vld [vmem:[#allocation13 + $0x3c] sm:$0xf]
    %v600 = vunpack.c.l.b16 %v552
    %v601 = vunpack.c.l.b16 %v553
    %v602 = vunpack.c.l.b16 %v554
    %v603 = vunpack.c.l.b16 %v555
    %v604 = vunpack.c.l.b16 %v556
    %v605 = vunpack.c.l.b16 %v557
    %v606 = vunpack.c.l.b16 %v558
    %v607 = vunpack.c.l.b16 %v559
    %v608 = vunpack.c.l.b16 %v560
    %v609 = vunpack.c.l.b16 %v561
    %v610 = vunpack.c.l.b16 %v562
    %v611 = vunpack.c.l.b16 %v563
    %v612 = vunpack.c.l.b16 %v564
    %v613 = vunpack.c.l.b16 %v565
    %v614 = vunpack.c.l.b16 %v566
    %v615 = vunpack.c.l.b16 %v567
    %v616 = vpack.c.b16 %v601, %v600
    %v617 = vpack.c.b16 %v603, %v602
    %v618 = vpack.c.b16 %v605, %v604
    %v619 = vpack.c.b16 %v607, %v606
    %v620 = vpack.c.b16 %v609, %v608
    %v621 = vpack.c.b16 %v611, %v610
    %v622 = vpack.c.b16 %v613, %v612
    %v623 = vpack.c.b16 %v615, %v614
    %v648 = vunpack.c.l.b16 %v568
    %v649 = vunpack.c.l.b16 %v569
    %v650 = vunpack.c.l.b16 %v570
    %v651 = vunpack.c.l.b16 %v571
    %v652 = vunpack.c.l.b16 %v572
    %v653 = vunpack.c.l.b16 %v573
    %v654 = vunpack.c.l.b16 %v574
    %v655 = vunpack.c.l.b16 %v575
    %v656 = vunpack.c.l.b16 %v576
    %v657 = vunpack.c.l.b16 %v577
    %v658 = vunpack.c.l.b16 %v578
    %v659 = vunpack.c.l.b16 %v579
    %v660 = vunpack.c.l.b16 %v580
    %v661 = vunpack.c.l.b16 %v581
    %v662 = vunpack.c.l.b16 %v582
    %v663 = vunpack.c.l.b16 %v583
    %v664 = vpack.c.b16 %v649, %v648
    %v665 = vpack.c.b16 %v651, %v650
    %v666 = vpack.c.b16 %v653, %v652
    %v667 = vpack.c.b16 %v655, %v654
    %v668 = vpack.c.b16 %v657, %v656
    %v669 = vpack.c.b16 %v659, %v658
    %v670 = vpack.c.b16 %v661, %v660
    %v671 = vpack.c.b16 %v663, %v662
    %680 = vmatprep.subr.bf16.mxu0 0
    %681 = vmatpush1.bf16.msra.mxu0 %v664
    %682 = vmatprep.subr.bf16.mxu0 0
    %683 = vmatpush1.bf16.msra.mxu0 %v665
    %684 = vmatprep.subr.bf16.mxu0 0
    %685 = vmatpush1.bf16.msra.mxu0 %v666
    %686 = vmatprep.subr.bf16.mxu0 0
    %687 = vmatpush1.bf16.msra.mxu0 %v667
    %688 = vmatprep.subr.bf16.mxu0 0
    %689 = vmatpush1.bf16.msra.mxu0 %v668
    %690 = vmatprep.subr.bf16.mxu0 0
    %691 = vmatpush1.bf16.msra.mxu0 %v669
    %692 = vmatprep.subr.bf16.mxu0 0
    %693 = vmatpush1.bf16.msra.mxu0 %v670
    %694 = vmatprep.subr.bf16.mxu0 0
    %695 = vmatpush1.bf16.msra.mxu0 %v671
    %696 = vmatprep.subr.bf16.mxu0 0
    %697 = vmatpush1.bf16.msra.mxu0 0
    %698 = vmatprep.subr.bf16.mxu0 0
    %699 = vmatpush1.bf16.msra.mxu0 0
    %700 = vmatprep.subr.bf16.mxu0 0
    %701 = vmatpush1.bf16.msra.mxu0 0
    %702 = vmatprep.subr.bf16.mxu0 0
    %703 = vmatpush1.bf16.msra.mxu0 0
    %704 = vmatprep.subr.bf16.mxu0 0
    %705 = vmatpush1.bf16.msra.mxu0 0
    %706 = vmatprep.subr.bf16.mxu0 0
    %707 = vmatpush1.bf16.msra.mxu0 0
    %708 = vmatprep.subr.bf16.mxu0 0
    %709 = vmatpush1.bf16.msra.mxu0 0
    %710 = vmatprep.subr.bf16.mxu0 0
    %711 = vmatpush1.bf16.msra.mxu0 0
    %712 = vmatprep.mubr.bf16.mxu0 0
    %713 = vmatmul.mubr.bf16.gmra.mrb[0].mxu0 %v616
    %v714 = vpop.f32.mrb[0].mxu0
    %v715 = vadd.f32 0.0, %v714
    %v716 = vpop.f32.mrb[0].mxu0
    %v717 = vpop.f32.mrb[0].mxu0
    %v718 = vadd.f32 0.0, %v717
    %v719 = vpop.f32.mrb[0].mxu0
    %720 = vmatprep.mubr.bf16.mxu0 0
    %721 = vmatmul.mubr.bf16.gmra.mrb[0].mxu0 %v617
    %v722 = vpop.f32.mrb[0].mxu0
    %v723 = vadd.f32 0.0, %v722
    %v724 = vpop.f32.mrb[0].mxu0
    %v725 = vpop.f32.mrb[0].mxu0
    %v726 = vadd.f32 0.0, %v725
    %v727 = vpop.f32.mrb[0].mxu0
    %728 = vmatprep.mubr.bf16.mxu0 0
    %729 = vmatmul.mubr.bf16.gmra.mrb[0].mxu0 %v618
    %v730 = vpop.f32.mrb[0].mxu0
    %v731 = vadd.f32 0.0, %v730
    %v732 = vpop.f32.mrb[0].mxu0
    %v733 = vpop.f32.mrb[0].mxu0
    %v734 = vadd.f32 0.0, %v733
    %v735 = vpop.f32.mrb[0].mxu0
    %736 = vmatprep.mubr.bf16.mxu0 0
    %737 = vmatmul.mubr.bf16.gmra.mrb[0].mxu0 %v619
    %v738 = vpop.f32.mrb[0].mxu0
    %v739 = vadd.f32 0.0, %v738
    %v740 = vpop.f32.mrb[0].mxu0
    %v741 = vpop.f32.mrb[0].mxu0
    %v742 = vadd.f32 0.0, %v741
    %v743 = vpop.f32.mrb[0].mxu0
    %744 = vmatprep.mubr.bf16.mxu0 0
    %745 = vmatmul.mubr.bf16.gmra.mrb[0].mxu0 %v620
    %v746 = vpop.f32.mrb[0].mxu0
    %v747 = vadd.f32 0.0, %v746
    %v748 = vpop.f32.mrb[0].mxu0
    %v749 = vpop.f32.mrb[0].mxu0
    %v750 = vadd.f32 0.0, %v749
    %v751 = vpop.f32.mrb[0].mxu0
    %752 = vmatprep.mubr.bf16.mxu0 0
    %753 = vmatmul.mubr.bf16.gmra.mrb[0].mxu0 %v621
    %v754 = vpop.f32.mrb[0].mxu0
    %v755 = vadd.f32 0.0, %v754
    %v756 = vpop.f32.mrb[0].mxu0
    %v757 = vpop.f32.mrb[0].mxu0
    %v758 = vadd.f32 0.0, %v757
    %v759 = vpop.f32.mrb[0].mxu0
    %760 = vmatprep.mubr.bf16.mxu0 0
    %761 = vmatmul.mubr.bf16.gmra.mrb[0].mxu0 %v622
    %v762 = vpop.f32.mrb[0].mxu0
    %v763 = vadd.f32 0.0, %v762
    %v764 = vpop.f32.mrb[0].mxu0
    %v765 = vpop.f32.mrb[0].mxu0
    %v766 = vadd.f32 0.0, %v765
    %v767 = vpop.f32.mrb[0].mxu0
    %768 = vmatprep.mubr.bf16.mxu0 0
    %769 = vmatmul.mubr.bf16.gmra.mrb[0].mxu0 %v623
    %v770 = vpop.f32.mrb[0].mxu0
    %v771 = vadd.f32 0.0, %v770
    %v772 = vpop.f32.mrb[0].mxu0
    %v773 = vpop.f32.mrb[0].mxu0
    %v774 = vadd.f32 0.0, %v773
    %v775 = vpop.f32.mrb[0].mxu0
    %776 = vdwg.mxu0
    %v777 = vadd.f32 %v715, %v718
    %v778 = vadd.f32 %v777, %v723
    %v779 = vadd.f32 %v778, %v726
    %v780 = vadd.f32 %v779, %v731
    %v781 = vadd.f32 %v780, %v734
    %v782 = vadd.f32 %v781, %v739
    %v783 = vadd.f32 %v782, %v742
    %v784 = vadd.f32 %v783, %v747
    %v785 = vadd.f32 %v784, %v750
    %v786 = vadd.f32 %v785, %v755
    %v787 = vadd.f32 %v786, %v758
    %v788 = vadd.f32 %v787, %v763
    %v789 = vadd.f32 %v788, %v766
    %v790 = vadd.f32 %v789, %v771
    %v791 = vadd.f32 %v790, %v774
    %v792 = vrot.slane %v791, 4
    %v793 = vadd.f32 %v791, %v792
    %v794 = vrot.slane %v793, 2
    %v795 = vadd.f32 %v793, %v794
    %v796 = vrot.slane %v795, 1
    %v797 = vadd.f32 %v795, %v796
    %798 = vst [vmem:[%s4] sm:$0x1] %v797
    %v799 = vmul.f32 %v715, %v715
    %v800 = vmul.f32 %v718, %v718
    %v801 = vmul.f32 %v723, %v723
    %v802 = vmul.f32 %v726, %v726
    %v803 = vmul.f32 %v731, %v731
    %v804 = vmul.f32 %v734, %v734
    %v805 = vmul.f32 %v739, %v739
    %v806 = vmul.f32 %v742, %v742
    %v807 = vmul.f32 %v747, %v747
    %v808 = vmul.f32 %v750, %v750
    %v809 = vmul.f32 %v755, %v755
    %v810 = vmul.f32 %v758, %v758
    %v811 = vmul.f32 %v763, %v763
    %v812 = vmul.f32 %v766, %v766
    %v813 = vmul.f32 %v771, %v771
    %v814 = vmul.f32 %v774, %v774
    %v815 = vadd.f32 %v799, %v800
    %v816 = vadd.f32 %v815, %v801
    %v817 = vadd.f32 %v816, %v802
    %v818 = vadd.f32 %v817, %v803
    %v819 = vadd.f32 %v818, %v804
    %v820 = vadd.f32 %v819, %v805
    %v821 = vadd.f32 %v820, %v806
    %v822 = vadd.f32 %v821, %v807
    %v823 = vadd.f32 %v822, %v808
    %v824 = vadd.f32 %v823, %v809
    %v825 = vadd.f32 %v824, %v810
    %v826 = vadd.f32 %v825, %v811
    %v827 = vadd.f32 %v826, %v812
    %v828 = vadd.f32 %v827, %v813
    %v829 = vadd.f32 %v828, %v814
    %v830 = vrot.slane %v829, 4
    %v831 = vadd.f32 %v829, %v830
    %v832 = vrot.slane %v831, 2
    %v833 = vadd.f32 %v831, %v832
    %v834 = vrot.slane %v833, 1
    %v835 = vadd.f32 %v833, %v834
    %836 = vst [vmem:[%s4 + $0x1] sm:$0x1] %v835
    %v837 = vpack.c.bf16 %v718, %v715
    %v838 = vpack.c.bf16 %v726, %v723
    %v839 = vpack.c.bf16 %v734, %v731
    %v840 = vpack.c.bf16 %v742, %v739
    %v841 = vpack.c.bf16 %v750, %v747
    %v842 = vpack.c.bf16 %v758, %v755
    %v843 = vpack.c.bf16 %v766, %v763
    %v844 = vpack.c.bf16 %v774, %v771
    %v853 = vunpack.c.l.b16 %v837
    %v854 = vunpack.c.h.b16 %v837
    %v855 = vunpack.c.l.b16 %v838
    %v856 = vunpack.c.h.b16 %v838
    %v857 = vunpack.c.l.b16 %v839
    %v858 = vunpack.c.h.b16 %v839
    %v859 = vunpack.c.l.b16 %v840
    %v860 = vunpack.c.h.b16 %v840
    %v861 = vunpack.c.l.b16 %v841
    %v862 = vunpack.c.h.b16 %v841
    %v863 = vunpack.c.l.b16 %v842
    %v864 = vunpack.c.h.b16 %v842
    %v865 = vunpack.c.l.b16 %v843
    %v866 = vunpack.c.h.b16 %v843
    %v867 = vunpack.c.l.b16 %v844
    %v868 = vunpack.c.h.b16 %v844
    %v869 = vpack.c.b16 %v853, %v853
    %v870 = vpack.c.b16 %v854, %v854
    %v871 = vpack.c.b16 %v855, %v855
    %v872 = vpack.c.b16 %v856, %v856
    %v873 = vpack.c.b16 %v857, %v857
    %v874 = vpack.c.b16 %v858, %v858
    %v875 = vpack.c.b16 %v859, %v859
    %v876 = vpack.c.b16 %v860, %v860
    %v877 = vpack.c.b16 %v861, %v861
    %v878 = vpack.c.b16 %v862, %v862
    %v879 = vpack.c.b16 %v863, %v863
    %v880 = vpack.c.b16 %v864, %v864
    %v881 = vpack.c.b16 %v865, %v865
    %v882 = vpack.c.b16 %v866, %v866
    %v883 = vpack.c.b16 %v867, %v867
    %v884 = vpack.c.b16 %v868, %v868
    %901 = vst [vmem:[%s3] sm:$0xf] %v869
    %902 = vst [vmem:[%s3 + $0x4] sm:$0xf] %v870
    %903 = vst [vmem:[%s3 + $0x8] sm:$0xf] %v871
    %904 = vst [vmem:[%s3 + $0xc] sm:$0xf] %v872
    %905 = vst [vmem:[%s3 + $0x10] sm:$0xf] %v873
    %906 = vst [vmem:[%s3 + $0x14] sm:$0xf] %v874
    %907 = vst [vmem:[%s3 + $0x18] sm:$0xf] %v875
    %908 = vst [vmem:[%s3 + $0x1c] sm:$0xf] %v876
    %909 = vst [vmem:[%s3 + $0x20] sm:$0xf] %v877
    %910 = vst [vmem:[%s3 + $0x24] sm:$0xf] %v878
    %911 = vst [vmem:[%s3 + $0x28] sm:$0xf] %v879
    %912 = vst [vmem:[%s3 + $0x2c] sm:$0xf] %v880
    %913 = vst [vmem:[%s3 + $0x30] sm:$0xf] %v881
    %914 = vst [vmem:[%s3 + $0x34] sm:$0xf] %v882
    %915 = vst [vmem:[%s3 + $0x38] sm:$0xf] %v883
    %916 = vst [vmem:[%s3 + $0x3c] sm:$0xf] %v884
    // Predicated region
    $region10: #{_lambda_.14} parent=1 // pred_check
      _
    $region11: #{_lambda_.14} parent=1 // pred_check_branch
      %918 = sbr.rel (0) target = $region13
    $region12: #{_lambda_.14} parent=1 // pred_region
      _
    $region13: #{_lambda_.14} parent=1 // pred_fallthru
      _
    // Predicated region
    $region14: #{_lambda_.14} parent=1 // pred_check
      _
    $region15: #{_lambda_.14} parent=1 // pred_check_branch
      %920 = sbr.rel (0) target = $region17
    $region16: #{_lambda_.14} parent=1 // pred_region
      _
    $region17: #{_lambda_.14} parent=1 // pred_fallthru
      _
    // Predicated region
    $region18: #{_lambda_.14} parent=1 // pred_check
      _
    $region19: #{_lambda_.14} parent=1 // pred_check_branch
      %922 = sbr.rel (0) target = $region21
    $region20: #{_lambda_.14} parent=1 // pred_region
      _
    $region21: #{_lambda_.14} parent=1 // pred_fallthru
      _
    // Predicated region
    $region22: #{_lambda_.14} parent=1 // pred_check
      _
    $region23: #{_lambda_.14} parent=1 // pred_check_branch
      %924 = sbr.rel (0) target = $region25
    $region24: #{_lambda_.14} parent=1 // pred_region
      _
    $region25: #{_lambda_.14} parent=1 // pred_fallthru
      _

// kernel: _lambda_.13
$region0: #{_lambda_.13}
  #allocation0 [shape = 'u32[]', space=smem, size = 0x4, offset = 0x4, fixed_abs, tag = 'smem constant byte address 0x4 - core index']
  #allocation1 [shape = 'u32[144,128]{1,0:T(1,128)}', space=vmem, size = 0x12000, scoped, tag = 'internal scratch']
  #allocation2 [shape = 'u32[2048]{0}', space=vmem, size = 0x2000, scoped, tag = 'scoped memory for _lambda_.13']
  #allocation3 [shape = 'u32[2048]{0}', space=vmem, size = 0x2000, scoped, tag = 'scoped memory for _lambda_.13']
  #allocation4 [shape = 'u32[2048]{0}', space=vmem, size = 0x2000, scoped, tag = 'scoped memory for _lambda_.13']
  #allocation5 [shape = 'u32[2048]{0}', space=vmem, size = 0x2000, scoped, tag = 'scoped memory for _lambda_.13']
  #allocation6 [shape = 'u32[2048]{0}', space=vmem, size = 0x2000, scoped, tag = 'scoped memory for _lambda_.13']
  #allocation7 [shape = 'u32[2048]{0}', space=vmem, size = 0x2000, scoped, tag = 'scoped memory for _lambda_.13']
  #allocation8 [shape = 'u32[2048]{0}', space=vmem, size = 0x2000, scoped, tag = 'scoped memory for _lambda_.13']
  #allocation9 [shape = 'u32[2048]{0}', space=vmem, size = 0x2000, scoped, tag = 'scoped memory for _lambda_.13']
  #allocation10 [shape = 'u32[2048]{0}', space=vmem, size = 0x2000, scoped, tag = 'scoped memory for _lambda_.13']
  #allocation11 [shape = 'u32[2048]{0}', space=vmem, size = 0x2000, scoped, tag = 'scoped memory for _lambda_.13']
  %s0 = inlined_call_operand.vmem [shape: bf16[72,8], index: 0, kind: input, shape index: {}]
  %s1 = inlined_call_operand.<no memory space> [shape: bf16[], index: 1, kind: input, shape index: {}]
  %s2 = inlined_call_operand.vmem [shape: bf16[128,72], index: 2, kind: input, shape index: {}]
  %s3 = inlined_call_operand.vmem [shape: bf16[128,128], index: 3, kind: output, shape index: {0}]
  %s4 = inlined_call_operand.vmem [shape: f32[8,128], index: 4, kind: output, shape index: {1}]
  %5 = xla_tuple %s3, %s4
  %s6 = sld [smem:[#allocation0]]
  $region26: #{_lambda_.13} parent=0
    _
  %s8 = ssub.s32 1, %s6
  %s9 = scalar_select 0, %s8, %s6
  %v10 = vstv %s1
  %v11 = vunpack.i.l.bf16 %v10
  %v13 = vunpack.i.h.bf16 %v10
  %v15 = vstv %s1
  %v16 = vunpack.i.l.bf16 %v15
  %v18 = vunpack.i.h.bf16 %v15
  $region1: #{_lambda_.13} parent=0
    #allocation12 [shape = 'u8[32768]{0}', space=vmem, size = 0x8000, dematerialized = true, scoped, tag = 'FusionAdapter Buffer %fusion.5 = bf16[128,128]{1,0:T(8,128)(2,1)} fusion(%param_2.3, %param_1.16), kind=kLoop, calls=%fused_computation.14.clone, metadata={op_name="jit(<lambda>)/jit(_pad)/pad" stack_frame_id=108}']
    #allocation13 [shape = 'u8[32768]{0}', space=vmem, size = 0x8000, dematerialized = true, scoped, tag = 'FusionAdapter Buffer %fusion.4 = bf16[128,128]{1,0:T(8,128)(2,1)} fusion(%param_0.24, %param_1.16), kind=kLoop, calls=%fused_computation.13.clone, metadata={op_name="jit(<lambda>)/jit(_pad)/pad" stack_frame_id=111}']
    // Predicated region
    $region2: #{_lambda_.13} parent=1 // pred_check
      _
    $region3: #{_lambda_.13} parent=1 // pred_check_branch
      %21 = sbr.rel (0) target = $region5
    $region4: #{_lambda_.13} parent=1 // pred_region
      _
    $region5: #{_lambda_.13} parent=1 // pred_fallthru
      _
    // Predicated region
    $region6: #{_lambda_.13} parent=1 // pred_check
      _
    $region7: #{_lambda_.13} parent=1 // pred_check_branch
      %23 = sbr.rel (0) target = $region9
    $region8: #{_lambda_.13} parent=1 // pred_region
      _
    $region9: #{_lambda_.13} parent=1 // pred_fallthru
      _
    %s25 = sor.u32 255, 127
    %s26 = sand.u32 %s25, 85
    %s27 = sshrl.u32 %s26, 1
    %s28 = sor.u32 %s26, %s27
    %s29 = sand.u32 51, %s28
    %s30 = sshrl.u32 %s29, 2
    %s31 = sor.u32 %s29, %s30
    %s32 = sand.u32 15, %s31
    %v33 = vld [vmem:[%s2] sm:%s32]
    %v34 = vunpack.c.l.bf16 %v33
    %v35 = vunpack.c.h.bf16 %v33
    %v36 = vlaneseq
    %v37 = vand.u32 %v36, 127
    %vm39 = vcmp.lt.s32.totalorder %v37, 72
    %v40 = vsel %vm39, %v34, %v11
    %v41 = vpack.c.bf16 0.0, %v40
    %43 = vst [vmem:[#allocation12] sm:$0xf] %v41
    %s44 = scalar_lea.vmem %s2, 4
    %s46 = sor.u32 255, 127
    %s47 = sand.u32 %s46, 85
    %s48 = sshrl.u32 %s47, 1
    %s49 = sor.u32 %s47, %s48
    %s50 = sand.u32 51, %s49
    %s51 = sshrl.u32 %s50, 2
    %s52 = sor.u32 %s50, %s51
    %s53 = sand.u32 15, %s52
    %v54 = vld [vmem:[%s44] sm:%s53]
    %v55 = vunpack.c.l.bf16 %v54
    %v56 = vunpack.c.h.bf16 %v54
    %v57 = vlaneseq
    %v58 = vand.u32 %v57, 127
    %vm60 = vcmp.lt.s32.totalorder %v58, 72
    %v61 = vsel %vm60, %v55, %v11
    %s62 = scalar_lea.vmem [#allocation12], 4
    %v63 = vpack.c.bf16 0.0, %v61
    %65 = vst [vmem:[%s62] sm:$0xf] %v63
    %s66 = scalar_lea.vmem %s2, 8
    %s68 = sor.u32 255, 127
    %s69 = sand.u32 %s68, 85
    %s70 = sshrl.u32 %s69, 1
    %s71 = sor.u32 %s69, %s70
    %s72 = sand.u32 51, %s71
    %s73 = sshrl.u32 %s72, 2
    %s74 = sor.u32 %s72, %s73
    %s75 = sand.u32 15, %s74
    %v76 = vld [vmem:[%s66] sm:%s75]
    %v77 = vunpack.c.l.bf16 %v76
    %v78 = vunpack.c.h.bf16 %v76
    %v79 = vlaneseq
    %v80 = vand.u32 %v79, 127
    %vm82 = vcmp.lt.s32.totalorder %v80, 72
    %v83 = vsel %vm82, %v77, %v11
    %s84 = scalar_lea.vmem [#allocation12], 8
    %v85 = vpack.c.bf16 0.0, %v83
    %87 = vst [vmem:[%s84] sm:$0xf] %v85
    %s88 = scalar_lea.vmem %s2, 12
    %s90 = sor.u32 255, 127
    %s91 = sand.u32 %s90, 85
    %s92 = sshrl.u32 %s91, 1
    %s93 = sor.u32 %s91, %s92
    %s94 = sand.u32 51, %s93
    %s95 = sshrl.u32 %s94, 2
    %s96 = sor.u32 %s94, %s95
    %s97 = sand.u32 15, %s96
    %v98 = vld [vmem:[%s88] sm:%s97]
    %v99 = vunpack.c.l.bf16 %v98
    %v100 = vunpack.c.h.bf16 %v98
    %v101 = vlaneseq
    %v102 = vand.u32 %v101, 127
    %vm104 = vcmp.lt.s32.totalorder %v102, 72
    %v105 = vsel %vm104, %v99, %v11
    %s106 = scalar_lea.vmem [#allocation12], 12
    %v107 = vpack.c.bf16 0.0, %v105
    %109 = vst [vmem:[%s106] sm:$0xf] %v107
    %s110 = scalar_lea.vmem %s2, 16
    %s112 = sor.u32 255, 127
    %s113 = sand.u32 %s112, 85
    %s114 = sshrl.u32 %s113, 1
    %s115 = sor.u32 %s113, %s114
    %s116 = sand.u32 51, %s115
    %s117 = sshrl.u32 %s116, 2
    %s118 = sor.u32 %s116, %s117
    %s119 = sand.u32 15, %s118
    %v120 = vld [vmem:[%s110] sm:%s119]
    %v121 = vunpack.c.l.bf16 %v120
    %v122 = vunpack.c.h.bf16 %v120
    %v123 = vlaneseq
    %v124 = vand.u32 %v123, 127
    %vm126 = vcmp.lt.s32.totalorder %v124, 72
    %v127 = vsel %vm126, %v121, %v11
    %s128 = scalar_lea.vmem [#allocation12], 16
    %v129 = vpack.c.bf16 0.0, %v127
    %131 = vst [vmem:[%s128] sm:$0xf] %v129
    %s132 = scalar_lea.vmem %s2, 20
    %s134 = sor.u32 255, 127
    %s135 = sand.u32 %s134, 85
    %s136 = sshrl.u32 %s135, 1
    %s137 = sor.u32 %s135, %s136
    %s138 = sand.u32 51, %s137
    %s139 = sshrl.u32 %s138, 2
    %s140 = sor.u32 %s138, %s139
    %s141 = sand.u32 15, %s140
    %v142 = vld [vmem:[%s132] sm:%s141]
    %v143 = vunpack.c.l.bf16 %v142
    %v144 = vunpack.c.h.bf16 %v142
    %v145 = vlaneseq
    %v146 = vand.u32 %v145, 127
    %vm148 = vcmp.lt.s32.totalorder %v146, 72
    %v149 = vsel %vm148, %v143, %v11
    %s150 = scalar_lea.vmem [#allocation12], 20
    %v151 = vpack.c.bf16 0.0, %v149
    %153 = vst [vmem:[%s150] sm:$0xf] %v151
    %s154 = scalar_lea.vmem %s2, 24
    %s156 = sor.u32 255, 127
    %s157 = sand.u32 %s156, 85
    %s158 = sshrl.u32 %s157, 1
    %s159 = sor.u32 %s157, %s158
    %s160 = sand.u32 51, %s159
    %s161 = sshrl.u32 %s160, 2
    %s162 = sor.u32 %s160, %s161
    %s163 = sand.u32 15, %s162
    %v164 = vld [vmem:[%s154] sm:%s163]
    %v165 = vunpack.c.l.bf16 %v164
    %v166 = vunpack.c.h.bf16 %v164
    %v167 = vlaneseq
    %v168 = vand.u32 %v167, 127
    %vm170 = vcmp.lt.s32.totalorder %v168, 72
    %v171 = vsel %vm170, %v165, %v11
    %s172 = scalar_lea.vmem [#allocation12], 24
    %v173 = vpack.c.bf16 0.0, %v171
    %175 = vst [vmem:[%s172] sm:$0xf] %v173
    %s176 = scalar_lea.vmem %s2, 28
    %s178 = sor.u32 255, 127
    %s179 = sand.u32 %s178, 85
    %s180 = sshrl.u32 %s179, 1
    %s181 = sor.u32 %s179, %s180
    %s182 = sand.u32 51, %s181
    %s183 = sshrl.u32 %s182, 2
    %s184 = sor.u32 %s182, %s183
    %s185 = sand.u32 15, %s184
    %v186 = vld [vmem:[%s176] sm:%s185]
    %v187 = vunpack.c.l.bf16 %v186
    %v188 = vunpack.c.h.bf16 %v186
    %v189 = vlaneseq
    %v190 = vand.u32 %v189, 127
    %vm192 = vcmp.lt.s32.totalorder %v190, 72
    %v193 = vsel %vm192, %v187, %v11
    %s194 = scalar_lea.vmem [#allocation12], 28
    %v195 = vpack.c.bf16 0.0, %v193
    %197 = vst [vmem:[%s194] sm:$0xf] %v195
    %s198 = scalar_lea.vmem %s2, 32
    %s200 = sor.u32 255, 127
    %s201 = sand.u32 %s200, 85
    %s202 = sshrl.u32 %s201, 1
    %s203 = sor.u32 %s201, %s202
    %s204 = sand.u32 51, %s203
    %s205 = sshrl.u32 %s204, 2
    %s206 = sor.u32 %s204, %s205
    %s207 = sand.u32 15, %s206
    %v208 = vld [vmem:[%s198] sm:%s207]
    %v209 = vunpack.c.l.bf16 %v208
    %v210 = vunpack.c.h.bf16 %v208
    %v211 = vlaneseq
    %v212 = vand.u32 %v211, 127
    %vm214 = vcmp.lt.s32.totalorder %v212, 72
    %v215 = vsel %vm214, %v209, %v11
    %s216 = scalar_lea.vmem [#allocation12], 32
    %v217 = vpack.c.bf16 0.0, %v215
    %219 = vst [vmem:[%s216] sm:$0xf] %v217
    %s220 = scalar_lea.vmem %s2, 36
    %s222 = sor.u32 255, 127
    %s223 = sand.u32 %s222, 85
    %s224 = sshrl.u32 %s223, 1
    %s225 = sor.u32 %s223, %s224
    %s226 = sand.u32 51, %s225
    %s227 = sshrl.u32 %s226, 2
    %s228 = sor.u32 %s226, %s227
    %s229 = sand.u32 15, %s228
    %v230 = vld [vmem:[%s220] sm:%s229]
    %v231 = vunpack.c.l.bf16 %v230
    %v232 = vunpack.c.h.bf16 %v230
    %v233 = vlaneseq
    %v234 = vand.u32 %v233, 127
    %vm236 = vcmp.lt.s32.totalorder %v234, 72
    %v237 = vsel %vm236, %v231, %v11
    %s238 = scalar_lea.vmem [#allocation12], 36
    %v239 = vpack.c.bf16 0.0, %v237
    %241 = vst [vmem:[%s238] sm:$0xf] %v239
    %s242 = scalar_lea.vmem %s2, 40
    %s244 = sor.u32 255, 127
    %s245 = sand.u32 %s244, 85
    %s246 = sshrl.u32 %s245, 1
    %s247 = sor.u32 %s245, %s246
    %s248 = sand.u32 51, %s247
    %s249 = sshrl.u32 %s248, 2
    %s250 = sor.u32 %s248, %s249
    %s251 = sand.u32 15, %s250
    %v252 = vld [vmem:[%s242] sm:%s251]
    %v253 = vunpack.c.l.bf16 %v252
    %v254 = vunpack.c.h.bf16 %v252
    %v255 = vlaneseq
    %v256 = vand.u32 %v255, 127
    %vm258 = vcmp.lt.s32.totalorder %v256, 72
    %v259 = vsel %vm258, %v253, %v11
    %s260 = scalar_lea.vmem [#allocation12], 40
    %v261 = vpack.c.bf16 0.0, %v259
    %263 = vst [vmem:[%s260] sm:$0xf] %v261
    %s264 = scalar_lea.vmem %s2, 44
    %s266 = sor.u32 255, 127
    %s267 = sand.u32 %s266, 85
    %s268 = sshrl.u32 %s267, 1
    %s269 = sor.u32 %s267, %s268
    %s270 = sand.u32 51, %s269
    %s271 = sshrl.u32 %s270, 2
    %s272 = sor.u32 %s270, %s271
    %s273 = sand.u32 15, %s272
    %v274 = vld [vmem:[%s264] sm:%s273]
    %v275 = vunpack.c.l.bf16 %v274
    %v276 = vunpack.c.h.bf16 %v274
    %v277 = vlaneseq
    %v278 = vand.u32 %v277, 127
    %vm280 = vcmp.lt.s32.totalorder %v278, 72
    %v281 = vsel %vm280, %v275, %v11
    %s282 = scalar_lea.vmem [#allocation12], 44
    %v283 = vpack.c.bf16 0.0, %v281
    %285 = vst [vmem:[%s282] sm:$0xf] %v283
    %s286 = scalar_lea.vmem %s2, 48
    %s288 = sor.u32 255, 127
    %s289 = sand.u32 %s288, 85
    %s290 = sshrl.u32 %s289, 1
    %s291 = sor.u32 %s289, %s290
    %s292 = sand.u32 51, %s291
    %s293 = sshrl.u32 %s292, 2
    %s294 = sor.u32 %s292, %s293
    %s295 = sand.u32 15, %s294
    %v296 = vld [vmem:[%s286] sm:%s295]
    %v297 = vunpack.c.l.bf16 %v296
    %v298 = vunpack.c.h.bf16 %v296
    %v299 = vlaneseq
    %v300 = vand.u32 %v299, 127
    %vm302 = vcmp.lt.s32.totalorder %v300, 72
    %v303 = vsel %vm302, %v297, %v11
    %s304 = scalar_lea.vmem [#allocation12], 48
    %v305 = vpack.c.bf16 0.0, %v303
    %307 = vst [vmem:[%s304] sm:$0xf] %v305
    %s308 = scalar_lea.vmem %s2, 52
    %s310 = sor.u32 255, 127
    %s311 = sand.u32 %s310, 85
    %s312 = sshrl.u32 %s311, 1
    %s313 = sor.u32 %s311, %s312
    %s314 = sand.u32 51, %s313
    %s315 = sshrl.u32 %s314, 2
    %s316 = sor.u32 %s314, %s315
    %s317 = sand.u32 15, %s316
    %v318 = vld [vmem:[%s308] sm:%s317]
    %v319 = vunpack.c.l.bf16 %v318
    %v320 = vunpack.c.h.bf16 %v318
    %v321 = vlaneseq
    %v322 = vand.u32 %v321, 127
    %vm324 = vcmp.lt.s32.totalorder %v322, 72
    %v325 = vsel %vm324, %v319, %v11
    %s326 = scalar_lea.vmem [#allocation12], 52
    %v327 = vpack.c.bf16 0.0, %v325
    %329 = vst [vmem:[%s326] sm:$0xf] %v327
    %s330 = scalar_lea.vmem %s2, 56
    %s332 = sor.u32 255, 127
    %s333 = sand.u32 %s332, 85
    %s334 = sshrl.u32 %s333, 1
    %s335 = sor.u32 %s333, %s334
    %s336 = sand.u32 51, %s335
    %s337 = sshrl.u32 %s336, 2
    %s338 = sor.u32 %s336, %s337
    %s339 = sand.u32 15, %s338
    %v340 = vld [vmem:[%s330] sm:%s339]
    %v341 = vunpack.c.l.bf16 %v340
    %v342 = vunpack.c.h.bf16 %v340
    %v343 = vlaneseq
    %v344 = vand.u32 %v343, 127
    %vm346 = vcmp.lt.s32.totalorder %v344, 72
    %v347 = vsel %vm346, %v341, %v11
    %s348 = scalar_lea.vmem [#allocation12], 56
    %v349 = vpack.c.bf16 0.0, %v347
    %351 = vst [vmem:[%s348] sm:$0xf] %v349
    %s352 = scalar_lea.vmem %s2, 60
    %s354 = sor.u32 255, 127
    %s355 = sand.u32 %s354, 85
    %s356 = sshrl.u32 %s355, 1
    %s357 = sor.u32 %s355, %s356
    %s358 = sand.u32 51, %s357
    %s359 = sshrl.u32 %s358, 2
    %s360 = sor.u32 %s358, %s359
    %s361 = sand.u32 15, %s360
    %v362 = vld [vmem:[%s352] sm:%s361]
    %v363 = vunpack.c.l.bf16 %v362
    %v364 = vunpack.c.h.bf16 %v362
    %v365 = vlaneseq
    %v366 = vand.u32 %v365, 127
    %vm368 = vcmp.lt.s32.totalorder %v366, 72
    %v369 = vsel %vm368, %v363, %v11
    %s370 = scalar_lea.vmem [#allocation12], 60
    %v371 = vpack.c.bf16 0.0, %v369
    %373 = vst [vmem:[%s370] sm:$0xf] %v371
    %s375 = sor.u32 255, 127
    %s376 = sand.u32 %s375, 85
    %s377 = sshrl.u32 %s376, 1
    %s378 = sor.u32 %s376, %s377
    %s379 = sand.u32 51, %s378
    %s380 = sshrl.u32 %s379, 2
    %s381 = sor.u32 %s379, %s380
    %s382 = sand.u32 15, %s381
    %v383 = vld [vmem:[%s0] sm:%s382]
    %v384 = vunpack.c.l.bf16 %v383
    %v385 = vunpack.c.h.bf16 %v383
    %v386 = vlaneseq
    %v387 = vand.u32 %v386, 127
    %vm389 = vcmp.lt.s32.totalorder %v387, 8
    %v390 = vsel %vm389, %v384, %v16
    %v391 = vpack.c.bf16 0.0, %v390
    %393 = vst [vmem:[#allocation13] sm:$0xf] %v391
    %s394 = scalar_lea.vmem %s0, 4
    %s396 = sor.u32 255, 127
    %s397 = sand.u32 %s396, 85
    %s398 = sshrl.u32 %s397, 1
    %s399 = sor.u32 %s397, %s398
    %s400 = sand.u32 51, %s399
    %s401 = sshrl.u32 %s400, 2
    %s402 = sor.u32 %s400, %s401
    %s403 = sand.u32 15, %s402
    %v404 = vld [vmem:[%s394] sm:%s403]
    %v405 = vunpack.c.l.bf16 %v404
    %v406 = vunpack.c.h.bf16 %v404
    %v407 = vlaneseq
    %v408 = vand.u32 %v407, 127
    %vm410 = vcmp.lt.s32.totalorder %v408, 8
    %v411 = vsel %vm410, %v405, %v16
    %s412 = scalar_lea.vmem [#allocation13], 4
    %v413 = vpack.c.bf16 0.0, %v411
    %415 = vst [vmem:[%s412] sm:$0xf] %v413
    %s416 = scalar_lea.vmem %s0, 8
    %s418 = sor.u32 255, 127
    %s419 = sand.u32 %s418, 85
    %s420 = sshrl.u32 %s419, 1
    %s421 = sor.u32 %s419, %s420
    %s422 = sand.u32 51, %s421
    %s423 = sshrl.u32 %s422, 2
    %s424 = sor.u32 %s422, %s423
    %s425 = sand.u32 15, %s424
    %v426 = vld [vmem:[%s416] sm:%s425]
    %v427 = vunpack.c.l.bf16 %v426
    %v428 = vunpack.c.h.bf16 %v426
    %v429 = vlaneseq
    %v430 = vand.u32 %v429, 127
    %vm432 = vcmp.lt.s32.totalorder %v430, 8
    %v433 = vsel %vm432, %v427, %v16
    %s434 = scalar_lea.vmem [#allocation13], 8
    %v435 = vpack.c.bf16 0.0, %v433
    %437 = vst [vmem:[%s434] sm:$0xf] %v435
    %s438 = scalar_lea.vmem %s0, 12
    %s440 = sor.u32 255, 127
    %s441 = sand.u32 %s440, 85
    %s442 = sshrl.u32 %s441, 1
    %s443 = sor.u32 %s441, %s442
    %s444 = sand.u32 51, %s443
    %s445 = sshrl.u32 %s444, 2
    %s446 = sor.u32 %s444, %s445
    %s447 = sand.u32 15, %s446
    %v448 = vld [vmem:[%s438] sm:%s447]
    %v449 = vunpack.c.l.bf16 %v448
    %v450 = vunpack.c.h.bf16 %v448
    %v451 = vlaneseq
    %v452 = vand.u32 %v451, 127
    %vm454 = vcmp.lt.s32.totalorder %v452, 8
    %v455 = vsel %vm454, %v449, %v16
    %s456 = scalar_lea.vmem [#allocation13], 12
    %v457 = vpack.c.bf16 0.0, %v455
    %459 = vst [vmem:[%s456] sm:$0xf] %v457
    %s460 = scalar_lea.vmem %s0, 16
    %s462 = sor.u32 255, 127
    %s463 = sand.u32 %s462, 85
    %s464 = sshrl.u32 %s463, 1
    %s465 = sor.u32 %s463, %s464
    %s466 = sand.u32 51, %s465
    %s467 = sshrl.u32 %s466, 2
    %s468 = sor.u32 %s466, %s467
    %s469 = sand.u32 15, %s468
    %v470 = vld [vmem:[%s460] sm:%s469]
    %v471 = vunpack.c.l.bf16 %v470
    %v472 = vunpack.c.h.bf16 %v470
    %v473 = vlaneseq
    %v474 = vand.u32 %v473, 127
    %vm476 = vcmp.lt.s32.totalorder %v474, 8
    %v477 = vsel %vm476, %v471, %v16
    %s478 = scalar_lea.vmem [#allocation13], 16
    %v479 = vpack.c.bf16 0.0, %v477
    %481 = vst [vmem:[%s478] sm:$0xf] %v479
    %s482 = scalar_lea.vmem %s0, 20
    %s484 = sor.u32 255, 127
    %s485 = sand.u32 %s484, 85
    %s486 = sshrl.u32 %s485, 1
    %s487 = sor.u32 %s485, %s486
    %s488 = sand.u32 51, %s487
    %s489 = sshrl.u32 %s488, 2
    %s490 = sor.u32 %s488, %s489
    %s491 = sand.u32 15, %s490
    %v492 = vld [vmem:[%s482] sm:%s491]
    %v493 = vunpack.c.l.bf16 %v492
    %v494 = vunpack.c.h.bf16 %v492
    %v495 = vlaneseq
    %v496 = vand.u32 %v495, 127
    %vm498 = vcmp.lt.s32.totalorder %v496, 8
    %v499 = vsel %vm498, %v493, %v16
    %s500 = scalar_lea.vmem [#allocation13], 20
    %v501 = vpack.c.bf16 0.0, %v499
    %503 = vst [vmem:[%s500] sm:$0xf] %v501
    %s504 = scalar_lea.vmem %s0, 24
    %s506 = sor.u32 255, 127
    %s507 = sand.u32 %s506, 85
    %s508 = sshrl.u32 %s507, 1
    %s509 = sor.u32 %s507, %s508
    %s510 = sand.u32 51, %s509
    %s511 = sshrl.u32 %s510, 2
    %s512 = sor.u32 %s510, %s511
    %s513 = sand.u32 15, %s512
    %v514 = vld [vmem:[%s504] sm:%s513]
    %v515 = vunpack.c.l.bf16 %v514
    %v516 = vunpack.c.h.bf16 %v514
    %v517 = vlaneseq
    %v518 = vand.u32 %v517, 127
    %vm520 = vcmp.lt.s32.totalorder %v518, 8
    %v521 = vsel %vm520, %v515, %v16
    %s522 = scalar_lea.vmem [#allocation13], 24
    %v523 = vpack.c.bf16 0.0, %v521
    %525 = vst [vmem:[%s522] sm:$0xf] %v523
    %s526 = scalar_lea.vmem %s0, 28
    %s528 = sor.u32 255, 127
    %s529 = sand.u32 %s528, 85
    %s530 = sshrl.u32 %s529, 1
    %s531 = sor.u32 %s529, %s530
    %s532 = sand.u32 51, %s531
    %s533 = sshrl.u32 %s532, 2
    %s534 = sor.u32 %s532, %s533
    %s535 = sand.u32 15, %s534
    %v536 = vld [vmem:[%s526] sm:%s535]
    %v537 = vunpack.c.l.bf16 %v536
    %v538 = vunpack.c.h.bf16 %v536
    %v539 = vlaneseq
    %v540 = vand.u32 %v539, 127
    %vm542 = vcmp.lt.s32.totalorder %v540, 8
    %v543 = vsel %vm542, %v537, %v16
    %s544 = scalar_lea.vmem [#allocation13], 28
    %v545 = vpack.c.bf16 0.0, %v543
    %547 = vst [vmem:[%s544] sm:$0xf] %v545
    %s548 = scalar_lea.vmem %s0, 32
    %s550 = sor.u32 255, 127
    %s551 = sand.u32 %s550, 85
    %s552 = sshrl.u32 %s551, 1
    %s553 = sor.u32 %s551, %s552
    %s554 = sand.u32 51, %s553
    %s555 = sshrl.u32 %s554, 2
    %s556 = sor.u32 %s554, %s555
    %s557 = sand.u32 15, %s556
    %v558 = vld [vmem:[%s548] sm:%s557]
    %v559 = vunpack.c.l.bf16 %v558
    %v560 = vunpack.c.h.bf16 %v558
    %v561 = vlaneseq
    %v562 = vand.u32 %v561, 127
    %vm564 = vcmp.lt.s32.totalorder %v562, 8
    %v565 = vsel %vm564, %v559, %v16
    %s566 = scalar_lea.vmem [#allocation13], 32
    %v567 = vpack.c.bf16 0.0, %v565
    %569 = vst [vmem:[%s566] sm:$0xf] %v567
    %s570 = scalar_lea.vmem [#allocation13], 36
    %v571 = vpack.c.bf16 0.0, %v16
    %573 = vst [vmem:[%s570] sm:$0xf] %v571
    %s574 = scalar_lea.vmem [#allocation13], 40
    %v575 = vpack.c.bf16 0.0, %v16
    %577 = vst [vmem:[%s574] sm:$0xf] %v575
    %s578 = scalar_lea.vmem [#allocation13], 44
    %v579 = vpack.c.bf16 0.0, %v16
    %581 = vst [vmem:[%s578] sm:$0xf] %v579
    %s582 = scalar_lea.vmem [#allocation13], 48
    %v583 = vpack.c.bf16 0.0, %v16
    %585 = vst [vmem:[%s582] sm:$0xf] %v583
    %s586 = scalar_lea.vmem [#allocation13], 52
    %v587 = vpack.c.bf16 0.0, %v16
    %589 = vst [vmem:[%s586] sm:$0xf] %v587
    %s590 = scalar_lea.vmem [#allocation13], 56
    %v591 = vpack.c.bf16 0.0, %v16
    %593 = vst [vmem:[%s590] sm:$0xf] %v591
    %s594 = scalar_lea.vmem [#allocation13], 60
    %v595 = vpack.c.bf16 0.0, %v16
    %597 = vst [vmem:[%s594] sm:$0xf] %v595
    %v599 = vld [vmem:[#allocation12] sm:$0xf]
    %v600 = vld [vmem:[#allocation12 + $0x4] sm:$0xf]
    %v601 = vld [vmem:[#allocation12 + $0x8] sm:$0xf]
    %v602 = vld [vmem:[#allocation12 + $0xc] sm:$0xf]
    %v603 = vld [vmem:[#allocation12 + $0x10] sm:$0xf]
    %v604 = vld [vmem:[#allocation12 + $0x14] sm:$0xf]
    %v605 = vld [vmem:[#allocation12 + $0x18] sm:$0xf]
    %v606 = vld [vmem:[#allocation12 + $0x1c] sm:$0xf]
    %v607 = vld [vmem:[#allocation12 + $0x20] sm:$0xf]
    %v608 = vld [vmem:[#allocation12 + $0x24] sm:$0xf]
    %v609 = vld [vmem:[#allocation12 + $0x28] sm:$0xf]
    %v610 = vld [vmem:[#allocation12 + $0x2c] sm:$0xf]
    %v611 = vld [vmem:[#allocation12 + $0x30] sm:$0xf]
    %v612 = vld [vmem:[#allocation12 + $0x34] sm:$0xf]
    %v613 = vld [vmem:[#allocation12 + $0x38] sm:$0xf]
    %v614 = vld [vmem:[#allocation12 + $0x3c] sm:$0xf]
    %v615 = vld [vmem:[#allocation13] sm:$0xf]
    %v616 = vld [vmem:[#allocation13 + $0x4] sm:$0xf]
    %v617 = vld [vmem:[#allocation13 + $0x8] sm:$0xf]
    %v618 = vld [vmem:[#allocation13 + $0xc] sm:$0xf]
    %v619 = vld [vmem:[#allocation13 + $0x10] sm:$0xf]
    %v620 = vld [vmem:[#allocation13 + $0x14] sm:$0xf]
    %v621 = vld [vmem:[#allocation13 + $0x18] sm:$0xf]
    %v622 = vld [vmem:[#allocation13 + $0x1c] sm:$0xf]
    %v623 = vld [vmem:[#allocation13 + $0x20] sm:$0xf]
    %v624 = vld [vmem:[#allocation13 + $0x24] sm:$0xf]
    %v625 = vld [vmem:[#allocation13 + $0x28] sm:$0xf]
    %v626 = vld [vmem:[#allocation13 + $0x2c] sm:$0xf]
    %v627 = vld [vmem:[#allocation13 + $0x30] sm:$0xf]
    %v628 = vld [vmem:[#allocation13 + $0x34] sm:$0xf]
    %v629 = vld [vmem:[#allocation13 + $0x38] sm:$0xf]
    %v630 = vld [vmem:[#allocation13 + $0x3c] sm:$0xf]
    %v647 = vunpack.c.l.b16 %v599
    %v648 = vunpack.c.l.b16 %v600
    %v649 = vunpack.c.l.b16 %v601
    %v650 = vunpack.c.l.b16 %v602
    %v651 = vunpack.c.l.b16 %v603
    %v652 = vunpack.c.l.b16 %v604
    %v653 = vunpack.c.l.b16 %v605
    %v654 = vunpack.c.l.b16 %v606
    %v655 = vunpack.c.l.b16 %v607
    %v656 = vunpack.c.l.b16 %v608
    %v657 = vunpack.c.l.b16 %v609
    %v658 = vunpack.c.l.b16 %v610
    %v659 = vunpack.c.l.b16 %v611
    %v660 = vunpack.c.l.b16 %v612
    %v661 = vunpack.c.l.b16 %v613
    %v662 = vunpack.c.l.b16 %v614
    %v663 = vpack.c.b16 %v648, %v647
    %v664 = vpack.c.b16 %v650, %v649
    %v665 = vpack.c.b16 %v652, %v651
    %v666 = vpack.c.b16 %v654, %v653
    %v667 = vpack.c.b16 %v656, %v655
    %v668 = vpack.c.b16 %v658, %v657
    %v669 = vpack.c.b16 %v660, %v659
    %v670 = vpack.c.b16 %v662, %v661
    %v695 = vunpack.c.l.b16 %v615
    %v696 = vunpack.c.l.b16 %v616
    %v697 = vunpack.c.l.b16 %v617
    %v698 = vunpack.c.l.b16 %v618
    %v699 = vunpack.c.l.b16 %v619
    %v700 = vunpack.c.l.b16 %v620
    %v701 = vunpack.c.l.b16 %v621
    %v702 = vunpack.c.l.b16 %v622
    %v703 = vunpack.c.l.b16 %v623
    %v704 = vunpack.c.l.b16 %v624
    %v705 = vunpack.c.l.b16 %v625
    %v706 = vunpack.c.l.b16 %v626
    %v707 = vunpack.c.l.b16 %v627
    %v708 = vunpack.c.l.b16 %v628
    %v709 = vunpack.c.l.b16 %v629
    %v710 = vunpack.c.l.b16 %v630
    %v711 = vpack.c.b16 %v696, %v695
    %v712 = vpack.c.b16 %v698, %v697
    %v713 = vpack.c.b16 %v700, %v699
    %v714 = vpack.c.b16 %v702, %v701
    %v715 = vpack.c.b16 %v704, %v703
    %v716 = vpack.c.b16 %v706, %v705
    %v717 = vpack.c.b16 %v708, %v707
    %v718 = vpack.c.b16 %v710, %v709
    %727 = vmatprep.subr.bf16.mxu0 0
    %728 = vmatpush1.bf16.msra.mxu0 %v711
    %729 = vmatprep.subr.bf16.mxu0 0
    %730 = vmatpush1.bf16.msra.mxu0 %v712
    %731 = vmatprep.subr.bf16.mxu0 0
    %732 = vmatpush1.bf16.msra.mxu0 %v713
    %733 = vmatprep.subr.bf16.mxu0 0
    %734 = vmatpush1.bf16.msra.mxu0 %v714
    %735 = vmatprep.subr.bf16.mxu0 0
    %736 = vmatpush1.bf16.msra.mxu0 %v715
    %737 = vmatprep.subr.bf16.mxu0 0
    %738 = vmatpush1.bf16.msra.mxu0 %v716
    %739 = vmatprep.subr.bf16.mxu0 0
    %740 = vmatpush1.bf16.msra.mxu0 %v717
    %741 = vmatprep.subr.bf16.mxu0 0
    %742 = vmatpush1.bf16.msra.mxu0 %v718
    %743 = vmatprep.subr.bf16.mxu0 0
    %744 = vmatpush1.bf16.msra.mxu0 0
    %745 = vmatprep.subr.bf16.mxu0 0
    %746 = vmatpush1.bf16.msra.mxu0 0
    %747 = vmatprep.subr.bf16.mxu0 0
    %748 = vmatpush1.bf16.msra.mxu0 0
    %749 = vmatprep.subr.bf16.mxu0 0
    %750 = vmatpush1.bf16.msra.mxu0 0
    %751 = vmatprep.subr.bf16.mxu0 0
    %752 = vmatpush1.bf16.msra.mxu0 0
    %753 = vmatprep.subr.bf16.mxu0 0
    %754 = vmatpush1.bf16.msra.mxu0 0
    %755 = vmatprep.subr.bf16.mxu0 0
    %756 = vmatpush1.bf16.msra.mxu0 0
    %757 = vmatprep.subr.bf16.mxu0 0
    %758 = vmatpush1.bf16.msra.mxu0 0
    %759 = vmatprep.mubr.bf16.mxu0 0
    %760 = vmatmul.mubr.bf16.gmra.mrb[0].mxu0 %v663
    %v761 = vpop.f32.mrb[0].mxu0
    %v762 = vadd.f32 0.0, %v761
    %v763 = vpop.f32.mrb[0].mxu0
    %v764 = vpop.f32.mrb[0].mxu0
    %v765 = vadd.f32 0.0, %v764
    %v766 = vpop.f32.mrb[0].mxu0
    %767 = vmatprep.mubr.bf16.mxu0 0
    %768 = vmatmul.mubr.bf16.gmra.mrb[0].mxu0 %v664
    %v769 = vpop.f32.mrb[0].mxu0
    %v770 = vadd.f32 0.0, %v769
    %v771 = vpop.f32.mrb[0].mxu0
    %v772 = vpop.f32.mrb[0].mxu0
    %v773 = vadd.f32 0.0, %v772
    %v774 = vpop.f32.mrb[0].mxu0
    %775 = vmatprep.mubr.bf16.mxu0 0
    %776 = vmatmul.mubr.bf16.gmra.mrb[0].mxu0 %v665
    %v777 = vpop.f32.mrb[0].mxu0
    %v778 = vadd.f32 0.0, %v777
    %v779 = vpop.f32.mrb[0].mxu0
    %v780 = vpop.f32.mrb[0].mxu0
    %v781 = vadd.f32 0.0, %v780
    %v782 = vpop.f32.mrb[0].mxu0
    %783 = vmatprep.mubr.bf16.mxu0 0
    %784 = vmatmul.mubr.bf16.gmra.mrb[0].mxu0 %v666
    %v785 = vpop.f32.mrb[0].mxu0
    %v786 = vadd.f32 0.0, %v785
    %v787 = vpop.f32.mrb[0].mxu0
    %v788 = vpop.f32.mrb[0].mxu0
    %v789 = vadd.f32 0.0, %v788
    %v790 = vpop.f32.mrb[0].mxu0
    %791 = vmatprep.mubr.bf16.mxu0 0
    %792 = vmatmul.mubr.bf16.gmra.mrb[0].mxu0 %v667
    %v793 = vpop.f32.mrb[0].mxu0
    %v794 = vadd.f32 0.0, %v793
    %v795 = vpop.f32.mrb[0].mxu0
    %v796 = vpop.f32.mrb[0].mxu0
    %v797 = vadd.f32 0.0, %v796
    %v798 = vpop.f32.mrb[0].mxu0
    %799 = vmatprep.mubr.bf16.mxu0 0
    %800 = vmatmul.mubr.bf16.gmra.mrb[0].mxu0 %v668
    %v801 = vpop.f32.mrb[0].mxu0
    %v802 = vadd.f32 0.0, %v801
    %v803 = vpop.f32.mrb[0].mxu0
    %v804 = vpop.f32.mrb[0].mxu0
    %v805 = vadd.f32 0.0, %v804
    %v806 = vpop.f32.mrb[0].mxu0
    %807 = vmatprep.mubr.bf16.mxu0 0
    %808 = vmatmul.mubr.bf16.gmra.mrb[0].mxu0 %v669
    %v809 = vpop.f32.mrb[0].mxu0
    %v810 = vadd.f32 0.0, %v809
    %v811 = vpop.f32.mrb[0].mxu0
    %v812 = vpop.f32.mrb[0].mxu0
    %v813 = vadd.f32 0.0, %v812
    %v814 = vpop.f32.mrb[0].mxu0
    %815 = vmatprep.mubr.bf16.mxu0 0
    %816 = vmatmul.mubr.bf16.gmra.mrb[0].mxu0 %v670
    %v817 = vpop.f32.mrb[0].mxu0
    %v818 = vadd.f32 0.0, %v817
    %v819 = vpop.f32.mrb[0].mxu0
    %v820 = vpop.f32.mrb[0].mxu0
    %v821 = vadd.f32 0.0, %v820
    %v822 = vpop.f32.mrb[0].mxu0
    %823 = vdwg.mxu0
    %v824 = vadd.f32 %v762, %v765
    %v825 = vadd.f32 %v824, %v770
    %v826 = vadd.f32 %v825, %v773
    %v827 = vadd.f32 %v826, %v778
    %v828 = vadd.f32 %v827, %v781
    %v829 = vadd.f32 %v828, %v786
    %v830 = vadd.f32 %v829, %v789
    %v831 = vadd.f32 %v830, %v794
    %v832 = vadd.f32 %v831, %v797
    %v833 = vadd.f32 %v832, %v802
    %v834 = vadd.f32 %v833, %v805
    %v835 = vadd.f32 %v834, %v810
    %v836 = vadd.f32 %v835, %v813
    %v837 = vadd.f32 %v836, %v818
    %v838 = vadd.f32 %v837, %v821
    %v839 = vrot.slane %v838, 4
    %v840 = vadd.f32 %v838, %v839
    %v841 = vrot.slane %v840, 2
    %v842 = vadd.f32 %v840, %v841
    %v843 = vrot.slane %v842, 1
    %v844 = vadd.f32 %v842, %v843
    %845 = vst [vmem:[%s4] sm:$0x1] %v844
    %v846 = vmul.f32 %v762, %v762
    %v847 = vmul.f32 %v765, %v765
    %v848 = vmul.f32 %v770, %v770
    %v849 = vmul.f32 %v773, %v773
    %v850 = vmul.f32 %v778, %v778
    %v851 = vmul.f32 %v781, %v781
    %v852 = vmul.f32 %v786, %v786
    %v853 = vmul.f32 %v789, %v789
    %v854 = vmul.f32 %v794, %v794
    %v855 = vmul.f32 %v797, %v797
    %v856 = vmul.f32 %v802, %v802
    %v857 = vmul.f32 %v805, %v805
    %v858 = vmul.f32 %v810, %v810
    %v859 = vmul.f32 %v813, %v813
    %v860 = vmul.f32 %v818, %v818
    %v861 = vmul.f32 %v821, %v821
    %v862 = vadd.f32 %v846, %v847
    %v863 = vadd.f32 %v862, %v848
    %v864 = vadd.f32 %v863, %v849
    %v865 = vadd.f32 %v864, %v850
    %v866 = vadd.f32 %v865, %v851
    %v867 = vadd.f32 %v866, %v852
    %v868 = vadd.f32 %v867, %v853
    %v869 = vadd.f32 %v868, %v854
    %v870 = vadd.f32 %v869, %v855
    %v871 = vadd.f32 %v870, %v856
    %v872 = vadd.f32 %v871, %v857
    %v873 = vadd.f32 %v872, %v858
    %v874 = vadd.f32 %v873, %v859
    %v875 = vadd.f32 %v874, %v860
    %v876 = vadd.f32 %v875, %v861
    %v877 = vrot.slane %v876, 4
    %v878 = vadd.f32 %v876, %v877
    %v879 = vrot.slane %v878, 2
    %v880 = vadd.f32 %v878, %v879
    %v881 = vrot.slane %v880, 1
    %v882 = vadd.f32 %v880, %v881
    %883 = vst [vmem:[%s4 + $0x1] sm:$0x1] %v882
    %v884 = vpack.c.bf16 %v765, %v762
    %v885 = vpack.c.bf16 %v773, %v770
    %v886 = vpack.c.bf16 %v781, %v778
    %v887 = vpack.c.bf16 %v789, %v786
    %v888 = vpack.c.bf16 %v797, %v794
    %v889 = vpack.c.bf16 %v805, %v802
    %v890 = vpack.c.bf16 %v813, %v810
    %v891 = vpack.c.bf16 %v821, %v818
    %v900 = vunpack.c.l.b16 %v884
    %v901 = vunpack.c.h.b16 %v884
    %v902 = vunpack.c.l.b16 %v885
    %v903 = vunpack.c.h.b16 %v885
    %v904 = vunpack.c.l.b16 %v886
    %v905 = vunpack.c.h.b16 %v886
    %v906 = vunpack.c.l.b16 %v887
    %v907 = vunpack.c.h.b16 %v887
    %v908 = vunpack.c.l.b16 %v888
    %v909 = vunpack.c.h.b16 %v888
    %v910 = vunpack.c.l.b16 %v889
    %v911 = vunpack.c.h.b16 %v889
    %v912 = vunpack.c.l.b16 %v890
    %v913 = vunpack.c.h.b16 %v890
    %v914 = vunpack.c.l.b16 %v891
    %v915 = vunpack.c.h.b16 %v891
    %v916 = vpack.c.b16 %v900, %v900
    %v917 = vpack.c.b16 %v901, %v901
    %v918 = vpack.c.b16 %v902, %v902
    %v919 = vpack.c.b16 %v903, %v903
    %v920 = vpack.c.b16 %v904, %v904
    %v921 = vpack.c.b16 %v905, %v905
    %v922 = vpack.c.b16 %v906, %v906
    %v923 = vpack.c.b16 %v907, %v907
    %v924 = vpack.c.b16 %v908, %v908
    %v925 = vpack.c.b16 %v909, %v909
    %v926 = vpack.c.b16 %v910, %v910
    %v927 = vpack.c.b16 %v911, %v911
    %v928 = vpack.c.b16 %v912, %v912
    %v929 = vpack.c.b16 %v913, %v913
    %v930 = vpack.c.b16 %v914, %v914
    %v931 = vpack.c.b16 %v915, %v915
    %948 = vst [vmem:[%s3] sm:$0xf] %v916
    %949 = vst [vmem:[%s3 + $0x4] sm:$0xf] %v917
    %950 = vst [vmem:[%s3 + $0x8] sm:$0xf] %v918
    %951 = vst [vmem:[%s3 + $0xc] sm:$0xf] %v919
    %952 = vst [vmem:[%s3 + $0x10] sm:$0xf] %v920
    %953 = vst [vmem:[%s3 + $0x14] sm:$0xf] %v921
    %954 = vst [vmem:[%s3 + $0x18] sm:$0xf] %v922
    %955 = vst [vmem:[%s3 + $0x1c] sm:$0xf] %v923
    %956 = vst [vmem:[%s3 + $0x20] sm:$0xf] %v924
    %957 = vst [vmem:[%s3 + $0x24] sm:$0xf] %v925
    %958 = vst [vmem:[%s3 + $0x28] sm:$0xf] %v926
    %959 = vst [vmem:[%s3 + $0x2c] sm:$0xf] %v927
    %960 = vst [vmem:[%s3 + $0x30] sm:$0xf] %v928
    %961 = vst [vmem:[%s3 + $0x34] sm:$0xf] %v929
    %962 = vst [vmem:[%s3 + $0x38] sm:$0xf] %v930
    %963 = vst [vmem:[%s3 + $0x3c] sm:$0xf] %v931
    // Predicated region
    $region10: #{_lambda_.13} parent=1 // pred_check
      _
    $region11: #{_lambda_.13} parent=1 // pred_check_branch
      %965 = sbr.rel (0) target = $region13
    $region12: #{_lambda_.13} parent=1 // pred_region
      _
    $region13: #{_lambda_.13} parent=1 // pred_fallthru
      _
    // Predicated region
    $region14: #{_lambda_.13} parent=1 // pred_check
      _
    $region15: #{_lambda_.13} parent=1 // pred_check_branch
      %967 = sbr.rel (0) target = $region17
    $region16: #{_lambda_.13} parent=1 // pred_region
      _
    $region17: #{_lambda_.13} parent=1 // pred_fallthru
      _
    // Predicated region
    $region18: #{_lambda_.13} parent=1 // pred_check
      _
    $region19: #{_lambda_.13} parent=1 // pred_check_branch
      %969 = sbr.rel (0) target = $region21
    $region20: #{_lambda_.13} parent=1 // pred_region
      _
    $region21: #{_lambda_.13} parent=1 // pred_fallthru
      _
    // Predicated region
    $region22: #{_lambda_.13} parent=1 // pred_check
      _
    $region23: #{_lambda_.13} parent=1 // pred_check_branch
      %971 = sbr.rel (0) target = $region25
    $region24: #{_lambda_.13} parent=1 // pred_region
      _
    $region25: #{_lambda_.13} parent=1 // pred_fallthru
      _

// kernel: _lambda_.15
$region0: #{_lambda_.15}
  #allocation0 [shape = 'u32[]', space=smem, size = 0x4, offset = 0x4, fixed_abs, tag = 'smem constant byte address 0x4 - core index']
  #allocation1 [shape = 'u32[144,128]{1,0:T(1,128)}', space=vmem, size = 0x12000, scoped, tag = 'internal scratch']
  #allocation2 [shape = 'u32[2048]{0}', space=vmem, size = 0x2000, scoped, tag = 'scoped memory for _lambda_.15']
  #allocation3 [shape = 'u32[2048]{0}', space=vmem, size = 0x2000, scoped, tag = 'scoped memory for _lambda_.15']
  #allocation4 [shape = 'u32[2048]{0}', space=vmem, size = 0x2000, scoped, tag = 'scoped memory for _lambda_.15']
  #allocation5 [shape = 'u32[2048]{0}', space=vmem, size = 0x2000, scoped, tag = 'scoped memory for _lambda_.15']
  #allocation6 [shape = 'u32[2048]{0}', space=vmem, size = 0x2000, scoped, tag = 'scoped memory for _lambda_.15']
  #allocation7 [shape = 'u32[2048]{0}', space=vmem, size = 0x2000, scoped, tag = 'scoped memory for _lambda_.15']
  #allocation8 [shape = 'u32[2048]{0}', space=vmem, size = 0x2000, scoped, tag = 'scoped memory for _lambda_.15']
  #allocation9 [shape = 'u32[2048]{0}', space=vmem, size = 0x2000, scoped, tag = 'scoped memory for _lambda_.15']
  #allocation10 [shape = 'u32[2048]{0}', space=vmem, size = 0x2000, scoped, tag = 'scoped memory for _lambda_.15']
  #allocation11 [shape = 'u32[2048]{0}', space=vmem, size = 0x2000, scoped, tag = 'scoped memory for _lambda_.15']
  #allocation12 [shape = 'u32[2048]{0}', space=vmem, size = 0x2000, scoped, tag = 'scoped memory for _lambda_.15']
  #allocation13 [shape = 'u32[2048]{0}', space=vmem, size = 0x2000, scoped, tag = 'scoped memory for _lambda_.15']
  #allocation14 [shape = 'u32[2048]{0}', space=vmem, size = 0x2000, scoped, tag = 'scoped memory for _lambda_.15']
  #allocation15 [shape = 'u32[2048]{0}', space=vmem, size = 0x2000, scoped, tag = 'scoped memory for _lambda_.15']
  #allocation16 [shape = 'u32[2048]{0}', space=vmem, size = 0x2000, scoped, tag = 'scoped memory for _lambda_.15']
  #allocation17 [shape = 'u32[2048]{0}', space=vmem, size = 0x2000, scoped, tag = 'scoped memory for _lambda_.15']
  #allocation18 [shape = 'u32[2048]{0}', space=vmem, size = 0x2000, scoped, tag = 'scoped memory for _lambda_.15']
  #allocation19 [shape = 'u32[2048]{0}', space=vmem, size = 0x2000, scoped, tag = 'scoped memory for _lambda_.15']
  #allocation20 [shape = 'u32[2048]{0}', space=vmem, size = 0x2000, scoped, tag = 'scoped memory for _lambda_.15']
  #allocation21 [shape = 'u32[2048]{0}', space=vmem, size = 0x2000, scoped, tag = 'scoped memory for _lambda_.15']
  #allocation22 [shape = 'u32[2048]{0}', space=vmem, size = 0x2000, scoped, tag = 'scoped memory for _lambda_.15']
  #allocation23 [shape = 'u32[2048]{0}', space=vmem, size = 0x2000, scoped, tag = 'scoped memory for _lambda_.15']
  #allocation24 [shape = 'u32[2048]{0}', space=vmem, size = 0x2000, scoped, tag = 'scoped memory for _lambda_.15']
  #allocation25 [shape = 'u32[2048]{0}', space=vmem, size = 0x2000, scoped, tag = 'scoped memory for _lambda_.15']
  #allocation26 [shape = 'u32[2048]{0}', space=vmem, size = 0x2000, scoped, tag = 'scoped memory for _lambda_.15']
  #allocation27 [shape = 'u32[2048]{0}', space=vmem, size = 0x2000, scoped, tag = 'scoped memory for _lambda_.15']
  #allocation28 [shape = 'u32[2048]{0}', space=vmem, size = 0x2000, scoped, tag = 'scoped memory for _lambda_.15']
  #allocation29 [shape = 'u32[2048]{0}', space=vmem, size = 0x2000, scoped, tag = 'scoped memory for _lambda_.15']
  #allocation30 [shape = 'u32[2048]{0}', space=vmem, size = 0x2000, scoped, tag = 'scoped memory for _lambda_.15']
  #allocation31 [shape = 'u32[2048]{0}', space=vmem, size = 0x2000, scoped, tag = 'scoped memory for _lambda_.15']
  #allocation32 [shape = 'u32[2048]{0}', space=vmem, size = 0x2000, scoped, tag = 'scoped memory for _lambda_.15']
  #allocation33 [shape = 'u32[2048]{0}', space=vmem, size = 0x2000, scoped, tag = 'scoped memory for _lambda_.15']
  #allocation34 [shape = 'u32[2048]{0}', space=vmem, size = 0x2000, scoped, tag = 'scoped memory for _lambda_.15']
  #allocation35 [shape = 'u32[2048]{0}', space=vmem, size = 0x2000, scoped, tag = 'scoped memory for _lambda_.15']
  #allocation36 [shape = 'u32[2048]{0}', space=vmem, size = 0x2000, scoped, tag = 'scoped memory for _lambda_.15']
  %s0 = inlined_call_operand.vmem [shape: bf16[128,128], index: 0, kind: input, shape index: {}]
  %s1 = inlined_call_operand.vmem [shape: f32[8], index: 1, kind: input, shape index: {}]
  %s2 = inlined_call_operand.<no memory space> [shape: f32[], index: 2, kind: input, shape index: {}]
  %s3 = inlined_call_operand.vmem [shape: f32[8], index: 3, kind: input, shape index: {}]
  %s4 = inlined_call_operand.vmem [shape: f32[1,8,128], index: 4, kind: input, shape index: {}]
  %s5 = inlined_call_operand.<no memory space> [shape: f32[], index: 5, kind: input, shape index: {}]
  %s6 = inlined_call_operand.<no memory space> [shape: f32[], index: 6, kind: input, shape index: {}]
  %s7 = inlined_call_operand.vmem [shape: bf16[128,128], index: 7, kind: output, shape index: {}]
  %s8 = sld [smem:[#allocation0]]
  $region42: #{_lambda_.15} parent=0
    _
  %s10 = ssub.s32 1, %s8
  %s11 = scalar_select 0, %s10, %s8
  %v12 = vstv %s2
  %v13 = vstv %s2
  %v14 = vstv %s5
  %v15 = vstv %s6
  %v16 = vstv %s2
  %v17 = vstv %s2
  %v18 = vstv %s2
  %v19 = vstv %s5
  %v20 = vstv %s6
  $region1: #{_lambda_.15} parent=0
    #allocation37 [shape = 'u8[512]{0}', space=vmem, size = 0x400, dematerialized = true, scoped, tag = 'FusionAdapter Buffer %fusion.11 = f32[1,128]{1,0:T(1,128)} fusion(%param_3.42, %param_2.93, %param_4.51, %param_5.58, %param_6.46), kind=kLoop, calls=%fused_computation.21.clone, metadata={op_name="jit(<lambda>)/reshape" stack_frame_id=95}']
    #allocation38 [shape = 'u8[512]{0}', space=vmem, size = 0x400, dematerialized = true, scoped, tag = 'FusionAdapter Buffer %fusion.10 = f32[1,128]{1,0:T(1,128)} fusion(%param_1.138, %param_2.93, %param_3.42, %param_4.51, %param_5.58, %param_6.46), kind=kLoop, calls=%fused_computation.20.clone, metadata={op_name="jit(<lambda>)/reshape" stack_frame_id=96}']
    // Predicated region
    $region2: #{_lambda_.15} parent=1 // pred_check
      _
    $region3: #{_lambda_.15} parent=1 // pred_check_branch
      %22 = sbr.rel (0) target = $region5
    $region4: #{_lambda_.15} parent=1 // pred_region
      _
    $region5: #{_lambda_.15} parent=1 // pred_fallthru
      _
    // Predicated region
    $region6: #{_lambda_.15} parent=1 // pred_check
      _
    $region7: #{_lambda_.15} parent=1 // pred_check_branch
      %24 = sbr.rel (0) target = $region9
    $region8: #{_lambda_.15} parent=1 // pred_region
      _
    $region9: #{_lambda_.15} parent=1 // pred_fallthru
      _
    // Predicated region
    $region10: #{_lambda_.15} parent=1 // pred_check
      _
    $region11: #{_lambda_.15} parent=1 // pred_check_branch
      %26 = sbr.rel (0) target = $region13
    $region12: #{_lambda_.15} parent=1 // pred_region
      _
    $region13: #{_lambda_.15} parent=1 // pred_fallthru
      _
    // Predicated region
    $region14: #{_lambda_.15} parent=1 // pred_check
      _
    $region15: #{_lambda_.15} parent=1 // pred_check_branch
      %28 = sbr.rel (0) target = $region17
    $region16: #{_lambda_.15} parent=1 // pred_region
      _
    $region17: #{_lambda_.15} parent=1 // pred_fallthru
      _
    // Predicated region
    $region18: #{_lambda_.15} parent=1 // pred_check
      _
    $region19: #{_lambda_.15} parent=1 // pred_check_branch
      %30 = sbr.rel (0) target = $region21
    $region20: #{_lambda_.15} parent=1 // pred_region
      _
    $region21: #{_lambda_.15} parent=1 // pred_fallthru
      _
    // Predicated region
    $region22: #{_lambda_.15} parent=1 // pred_check
      _
    $region23: #{_lambda_.15} parent=1 // pred_check_branch
      %32 = sbr.rel (0) target = $region25
    $region24: #{_lambda_.15} parent=1 // pred_region
      _
    $region25: #{_lambda_.15} parent=1 // pred_fallthru
      _
    // Predicated region
    $region26: #{_lambda_.15} parent=1 // pred_check
      _
    $region27: #{_lambda_.15} parent=1 // pred_check_branch
      %34 = sbr.rel (0) target = $region29
    $region28: #{_lambda_.15} parent=1 // pred_region
      _
    $region29: #{_lambda_.15} parent=1 // pred_fallthru
      _
    // Predicated region
    $region30: #{_lambda_.15} parent=1 // pred_check
      _
    $region31: #{_lambda_.15} parent=1 // pred_check_branch
      %36 = sbr.rel (0) target = $region33
    $region32: #{_lambda_.15} parent=1 // pred_region
      _
    $region33: #{_lambda_.15} parent=1 // pred_fallthru
      _
    %v37 = vld [vmem:[%s3] sm:$0x1]
    %v38 = vlaneseq
    %vm40 = vcmp.lt.s32.totalorder %v38, 8
    %v41 = vsel %vm40, %v37, %v12
    %v42 = vld [vmem:[%s4] sm:$0xff]
    %vm43 = vcmask 1040384
    %v44 = vsel %vm43, 0, %v42
    %v45 = vrot.slane %v44, 1
    %v46 = vld [vmem:[%s4] sm:$0xff]
    %47 = xla_tuple %v45, %v14
    %48 = xla_tuple %47
    %v49 = vmul.f32 %v45, %v14
    %50 = xla_tuple %v49
    %51 = xla_tuple %v46, %v14
    %52 = xla_tuple %51
    %v53 = vmul.f32 %v46, %v14
    %54 = xla_tuple %v53
    %55 = xla_tuple %v53, %v53
    %56 = xla_tuple %55
    %v57 = vmul.f32 %v53, %v53
    %58 = xla_tuple %v57
    %59 = xla_tuple %v49, %v57
    %60 = xla_tuple %59
    %v61 = vsub.f32 %v49, %v57
    %62 = xla_tuple %v61
    %63 = xla_tuple %v61, %v13
    %64 = xla_tuple %63
    %v65 = vmax.f32 %v61, %v13
    %66 = xla_tuple %v65
    %67 = xla_tuple %v65, %v15
    %68 = xla_tuple %67
    %v69 = vadd.f32 %v65, %v15
    %70 = xla_tuple %v69
    %v71 = vrsqrt.pop %v69
    %72 = xla_tuple %v41, %v71
    %73 = xla_tuple %72
    %v74 = vmul.f32 %v41, %v71
    %75 = xla_tuple %v74
    %77 = vst [vmem:[#allocation37] sm:$0x1] %v74
    %v78 = vld [vmem:[%s1] sm:$0x1]
    %v79 = vlaneseq
    %vm81 = vcmp.lt.s32.totalorder %v79, 8
    %v82 = vsel %vm81, %v78, %v16
    %v83 = vld [vmem:[%s3] sm:$0x1]
    %v84 = vlaneseq
    %vm86 = vcmp.lt.s32.totalorder %v84, 8
    %v87 = vsel %vm86, %v83, %v18
    %v88 = vld [vmem:[%s4] sm:$0xff]
    %vm89 = vcmask 1040384
    %v90 = vsel %vm89, 0, %v88
    %v91 = vrot.slane %v90, 1
    %v92 = vld [vmem:[%s4] sm:$0xff]
    %93 = xla_tuple %v92, %v19
    %94 = xla_tuple %93
    %v95 = vmul.f32 %v92, %v19
    %96 = xla_tuple %v95
    %97 = xla_tuple %v91, %v19
    %98 = xla_tuple %97
    %v99 = vmul.f32 %v91, %v19
    %100 = xla_tuple %v99
    %101 = xla_tuple %v95, %v95
    %102 = xla_tuple %101
    %v103 = vmul.f32 %v95, %v95
    %104 = xla_tuple %v103
    %105 = xla_tuple %v99, %v103
    %106 = xla_tuple %105
    %v107 = vsub.f32 %v99, %v103
    %108 = xla_tuple %v107
    %109 = xla_tuple %v107, %v17
    %110 = xla_tuple %109
    %v111 = vmax.f32 %v107, %v17
    %112 = xla_tuple %v111
    %113 = xla_tuple %v111, %v20
    %114 = xla_tuple %113
    %v115 = vadd.f32 %v111, %v20
    %116 = xla_tuple %v115
    %v117 = vrsqrt.pop %v115
    %118 = xla_tuple %v87, %v117
    %119 = xla_tuple %118
    %v120 = vmul.f32 %v87, %v117
    %121 = xla_tuple %v120
    %122 = xla_tuple %v95, %v120
    %123 = xla_tuple %122
    %v124 = vmul.f32 %v95, %v120
    %125 = xla_tuple %v124
    %126 = xla_tuple %v82, %v124
    %127 = xla_tuple %126
    %v128 = vsub.f32 %v82, %v124
    %129 = xla_tuple %v128
    %131 = vst [vmem:[#allocation38] sm:$0x1] %v128
    %v132 = vld [vmem:[%s0] sm:$0xf]
    %v133 = vld [vmem:[%s0 + $0x4] sm:$0xf]
    %v134 = vld [vmem:[%s0 + $0x8] sm:$0xf]
    %v135 = vld [vmem:[%s0 + $0xc] sm:$0xf]
    %v136 = vld [vmem:[%s0 + $0x10] sm:$0xf]
    %v137 = vld [vmem:[%s0 + $0x14] sm:$0xf]
    %v138 = vld [vmem:[%s0 + $0x18] sm:$0xf]
    %v139 = vld [vmem:[%s0 + $0x1c] sm:$0xf]
    %v140 = vld [vmem:[%s0 + $0x20] sm:$0xf]
    %v141 = vld [vmem:[%s0 + $0x24] sm:$0xf]
    %v142 = vld [vmem:[%s0 + $0x28] sm:$0xf]
    %v143 = vld [vmem:[%s0 + $0x2c] sm:$0xf]
    %v144 = vld [vmem:[%s0 + $0x30] sm:$0xf]
    %v145 = vld [vmem:[%s0 + $0x34] sm:$0xf]
    %v146 = vld [vmem:[%s0 + $0x38] sm:$0xf]
    %v147 = vld [vmem:[%s0 + $0x3c] sm:$0xf]
    %v148 = vunpack.c.l.bf16 %v132
    %v149 = vunpack.c.l.bf16 %v133
    %v150 = vunpack.c.l.bf16 %v134
    %v151 = vunpack.c.l.bf16 %v135
    %v152 = vunpack.c.l.bf16 %v136
    %v153 = vunpack.c.l.bf16 %v137
    %v154 = vunpack.c.l.bf16 %v138
    %v155 = vunpack.c.l.bf16 %v139
    %v156 = vunpack.c.l.bf16 %v140
    %v157 = vunpack.c.l.bf16 %v141
    %v158 = vunpack.c.l.bf16 %v142
    %v159 = vunpack.c.l.bf16 %v143
    %v160 = vunpack.c.l.bf16 %v144
    %v161 = vunpack.c.l.bf16 %v145
    %v162 = vunpack.c.l.bf16 %v146
    %v163 = vunpack.c.l.bf16 %v147
    %v164 = vld [vmem:[#allocation37] sm:$0x1]
    %v166 = vlaneseq
    %v167 = vshrl.u32 %v166, 7
    %v168 = vsub.s32 0, %v167
    %v169 = vrot.slane %v164, %v168
    %v171 = vmul.f32 %v148, %v169
    %v172 = vmul.f32 %v149, %v169
    %v173 = vmul.f32 %v150, %v169
    %v174 = vmul.f32 %v151, %v169
    %v175 = vmul.f32 %v152, %v169
    %v176 = vmul.f32 %v153, %v169
    %v177 = vmul.f32 %v154, %v169
    %v178 = vmul.f32 %v155, %v169
    %v179 = vmul.f32 %v156, %v169
    %v180 = vmul.f32 %v157, %v169
    %v181 = vmul.f32 %v158, %v169
    %v182 = vmul.f32 %v159, %v169
    %v183 = vmul.f32 %v160, %v169
    %v184 = vmul.f32 %v161, %v169
    %v185 = vmul.f32 %v162, %v169
    %v186 = vmul.f32 %v163, %v169
    %v187 = vld [vmem:[#allocation38] sm:$0x1]
    %v189 = vlaneseq
    %v190 = vshrl.u32 %v189, 7
    %v191 = vsub.s32 0, %v190
    %v192 = vrot.slane %v187, %v191
    %v194 = vadd.f32 %v171, %v192
    %v195 = vadd.f32 %v172, %v192
    %v196 = vadd.f32 %v173, %v192
    %v197 = vadd.f32 %v174, %v192
    %v198 = vadd.f32 %v175, %v192
    %v199 = vadd.f32 %v176, %v192
    %v200 = vadd.f32 %v177, %v192
    %v201 = vadd.f32 %v178, %v192
    %v202 = vadd.f32 %v179, %v192
    %v203 = vadd.f32 %v180, %v192
    %v204 = vadd.f32 %v181, %v192
    %v205 = vadd.f32 %v182, %v192
    %v206 = vadd.f32 %v183, %v192
    %v207 = vadd.f32 %v184, %v192
    %v208 = vadd.f32 %v185, %v192
    %v209 = vadd.f32 %v186, %v192
    %v210 = vpack.c.bf16 %v195, %v194
    %v211 = vpack.c.bf16 %v197, %v196
    %v212 = vpack.c.bf16 %v199, %v198
    %v213 = vpack.c.bf16 %v201, %v200
    %v214 = vpack.c.bf16 %v203, %v202
    %v215 = vpack.c.bf16 %v205, %v204
    %v216 = vpack.c.bf16 %v207, %v206
    %v217 = vpack.c.bf16 %v209, %v208
    %v226 = vunpack.c.l.b16 %v210
    %v227 = vunpack.c.h.b16 %v210
    %v228 = vunpack.c.l.b16 %v211
    %v229 = vunpack.c.h.b16 %v211
    %v230 = vunpack.c.l.b16 %v212
    %v231 = vunpack.c.h.b16 %v212
    %v232 = vunpack.c.l.b16 %v213
    %v233 = vunpack.c.h.b16 %v213
    %v234 = vunpack.c.l.b16 %v214
    %v235 = vunpack.c.h.b16 %v214
    %v236 = vunpack.c.l.b16 %v215
    %v237 = vunpack.c.h.b16 %v215
    %v238 = vunpack.c.l.b16 %v216
    %v239 = vunpack.c.h.b16 %v216
    %v240 = vunpack.c.l.b16 %v217
    %v241 = vunpack.c.h.b16 %v217
    %v242 = vpack.c.b16 %v226, %v226
    %v243 = vpack.c.b16 %v227, %v227
    %v244 = vpack.c.b16 %v228, %v228
    %v245 = vpack.c.b16 %v229, %v229
    %v246 = vpack.c.b16 %v230, %v230
    %v247 = vpack.c.b16 %v231, %v231
    %v248 = vpack.c.b16 %v232, %v232
    %v249 = vpack.c.b16 %v233, %v233
    %v250 = vpack.c.b16 %v234, %v234
    %v251 = vpack.c.b16 %v235, %v235
    %v252 = vpack.c.b16 %v236, %v236
    %v253 = vpack.c.b16 %v237, %v237
    %v254 = vpack.c.b16 %v238, %v238
    %v255 = vpack.c.b16 %v239, %v239
    %v256 = vpack.c.b16 %v240, %v240
    %v257 = vpack.c.b16 %v241, %v241
    %274 = vst [vmem:[%s7] sm:$0xf] %v242
    %275 = vst [vmem:[%s7 + $0x4] sm:$0xf] %v243
    %276 = vst [vmem:[%s7 + $0x8] sm:$0xf] %v244
    %277 = vst [vmem:[%s7 + $0xc] sm:$0xf] %v245
    %278 = vst [vmem:[%s7 + $0x10] sm:$0xf] %v246
    %279 = vst [vmem:[%s7 + $0x14] sm:$0xf] %v247
    %280 = vst [vmem:[%s7 + $0x18] sm:$0xf] %v248
    %281 = vst [vmem:[%s7 + $0x1c] sm:$0xf] %v249
    %282 = vst [vmem:[%s7 + $0x20] sm:$0xf] %v250
    %283 = vst [vmem:[%s7 + $0x24] sm:$0xf] %v251
    %284 = vst [vmem:[%s7 + $0x28] sm:$0xf] %v252
    %285 = vst [vmem:[%s7 + $0x2c] sm:$0xf] %v253
    %286 = vst [vmem:[%s7 + $0x30] sm:$0xf] %v254
    %287 = vst [vmem:[%s7 + $0x34] sm:$0xf] %v255
    %288 = vst [vmem:[%s7 + $0x38] sm:$0xf] %v256
    %289 = vst [vmem:[%s7 + $0x3c] sm:$0xf] %v257
    // Predicated region
    $region34: #{_lambda_.15} parent=1 // pred_check
      _
    $region35: #{_lambda_.15} parent=1 // pred_check_branch
      %291 = sbr.rel (0) target = $region37
    $region36: #{_lambda_.15} parent=1 // pred_region
      _
    $region37: #{_lambda_.15} parent=1 // pred_fallthru
      _
    // Predicated region
    $region38: #{_lambda_.15} parent=1 // pred_check
      _
    $region39: #{_lambda_.15} parent=1 // pred_check_branch
      %293 = sbr.rel (0) target = $region41
    $region40: #{_lambda_.15} parent=1 // pred_region
      _
    $region41: #{_lambda_.15} parent=1 // pred_fallthru
      _

// kernel: _lambda_.12
$region0: #{_lambda_.12}
  #allocation0 [shape = 'u32[]', space=smem, size = 0x4, offset = 0x4, fixed_abs, tag = 'smem constant byte address 0x4 - core index']
  #allocation1 [shape = 'u32[144,128]{1,0:T(1,128)}', space=vmem, size = 0x12000, scoped, tag = 'internal scratch']
  #allocation2 [shape = 'u32[2048]{0}', space=vmem, size = 0x2000, scoped, tag = 'scoped memory for _lambda_.12']
  #allocation3 [shape = 'u32[2048]{0}', space=vmem, size = 0x2000, scoped, tag = 'scoped memory for _lambda_.12']
  #allocation4 [shape = 'u32[2048]{0}', space=vmem, size = 0x2000, scoped, tag = 'scoped memory for _lambda_.12']
  #allocation5 [shape = 'u32[2048]{0}', space=vmem, size = 0x2000, scoped, tag = 'scoped memory for _lambda_.12']
  #allocation6 [shape = 'u32[2048]{0}', space=vmem, size = 0x2000, scoped, tag = 'scoped memory for _lambda_.12']
  #allocation7 [shape = 'u32[2048]{0}', space=vmem, size = 0x2000, scoped, tag = 'scoped memory for _lambda_.12']
  #allocation8 [shape = 'u32[2048]{0}', space=vmem, size = 0x2000, scoped, tag = 'scoped memory for _lambda_.12']
  #allocation9 [shape = 'u32[2048]{0}', space=vmem, size = 0x2000, scoped, tag = 'scoped memory for _lambda_.12']
  #allocation10 [shape = 'u32[2048]{0}', space=vmem, size = 0x2000, scoped, tag = 'scoped memory for _lambda_.12']
  #allocation11 [shape = 'u32[2048]{0}', space=vmem, size = 0x2000, scoped, tag = 'scoped memory for _lambda_.12']
  %s0 = inlined_call_operand.vmem [shape: bf16[4,8], index: 0, kind: input, shape index: {}]
  %s1 = inlined_call_operand.<no memory space> [shape: bf16[], index: 1, kind: input, shape index: {}]
  %s2 = inlined_call_operand.vmem [shape: bf16[128,4], index: 2, kind: input, shape index: {}]
  %s3 = inlined_call_operand.vmem [shape: bf16[128,128], index: 3, kind: output, shape index: {0}]
  %s4 = inlined_call_operand.vmem [shape: f32[8,128], index: 4, kind: output, shape index: {1}]
  %5 = xla_tuple %s3, %s4
  %s6 = sld [smem:[#allocation0]]
  $region26: #{_lambda_.12} parent=0
    _
  %s8 = ssub.s32 1, %s6
  %s9 = scalar_select 0, %s8, %s6
  %v10 = vstv %s1
  %v11 = vunpack.i.l.bf16 %v10
  %v13 = vunpack.i.h.bf16 %v10
  %v15 = vstv %s1
  %v16 = vunpack.i.l.bf16 %v15
  %v18 = vunpack.i.h.bf16 %v15
  $region1: #{_lambda_.12} parent=0
    #allocation12 [shape = 'u8[32768]{0}', space=vmem, size = 0x8000, dematerialized = true, scoped, tag = 'FusionAdapter Buffer %fusion.2 = bf16[128,128]{1,0:T(8,128)(2,1)} fusion(%param_2.1, %param_1.11), kind=kLoop, calls=%fused_computation.11.clone, metadata={op_name="jit(<lambda>)/jit(_pad)/pad" stack_frame_id=72}']
    #allocation13 [shape = 'u8[32768]{0}', space=vmem, size = 0x8000, dematerialized = true, scoped, tag = 'FusionAdapter Buffer %fusion.1 = bf16[128,128]{1,0:T(8,128)(2,1)} fusion(%param_0.20, %param_1.11), kind=kLoop, calls=%fused_computation.10.clone, metadata={op_name="jit(<lambda>)/jit(_pad)/pad" stack_frame_id=75}']
    // Predicated region
    $region2: #{_lambda_.12} parent=1 // pred_check
      _
    $region3: #{_lambda_.12} parent=1 // pred_check_branch
      %21 = sbr.rel (0) target = $region5
    $region4: #{_lambda_.12} parent=1 // pred_region
      _
    $region5: #{_lambda_.12} parent=1 // pred_fallthru
      _
    // Predicated region
    $region6: #{_lambda_.12} parent=1 // pred_check
      _
    $region7: #{_lambda_.12} parent=1 // pred_check_branch
      %23 = sbr.rel (0) target = $region9
    $region8: #{_lambda_.12} parent=1 // pred_region
      _
    $region9: #{_lambda_.12} parent=1 // pred_fallthru
      _
    %s25 = sor.u32 255, 127
    %s26 = sand.u32 %s25, 85
    %s27 = sshrl.u32 %s26, 1
    %s28 = sor.u32 %s26, %s27
    %s29 = sand.u32 51, %s28
    %s30 = sshrl.u32 %s29, 2
    %s31 = sor.u32 %s29, %s30
    %s32 = sand.u32 15, %s31
    %v33 = vld [vmem:[%s2] sm:%s32]
    %v34 = vunpack.c.l.bf16 %v33
    %v35 = vunpack.c.h.bf16 %v33
    %v36 = vlaneseq
    %v37 = vand.u32 %v36, 127
    %vm39 = vcmp.lt.s32.totalorder %v37, 4
    %v40 = vsel %vm39, %v34, %v11
    %v41 = vpack.c.bf16 0.0, %v40
    %43 = vst [vmem:[#allocation12] sm:$0xf] %v41
    %s44 = scalar_lea.vmem %s2, 4
    %s46 = sor.u32 255, 127
    %s47 = sand.u32 %s46, 85
    %s48 = sshrl.u32 %s47, 1
    %s49 = sor.u32 %s47, %s48
    %s50 = sand.u32 51, %s49
    %s51 = sshrl.u32 %s50, 2
    %s52 = sor.u32 %s50, %s51
    %s53 = sand.u32 15, %s52
    %v54 = vld [vmem:[%s44] sm:%s53]
    %v55 = vunpack.c.l.bf16 %v54
    %v56 = vunpack.c.h.bf16 %v54
    %v57 = vlaneseq
    %v58 = vand.u32 %v57, 127
    %vm60 = vcmp.lt.s32.totalorder %v58, 4
    %v61 = vsel %vm60, %v55, %v11
    %s62 = scalar_lea.vmem [#allocation12], 4
    %v63 = vpack.c.bf16 0.0, %v61
    %65 = vst [vmem:[%s62] sm:$0xf] %v63
    %s66 = scalar_lea.vmem %s2, 8
    %s68 = sor.u32 255, 127
    %s69 = sand.u32 %s68, 85
    %s70 = sshrl.u32 %s69, 1
    %s71 = sor.u32 %s69, %s70
    %s72 = sand.u32 51, %s71
    %s73 = sshrl.u32 %s72, 2
    %s74 = sor.u32 %s72, %s73
    %s75 = sand.u32 15, %s74
    %v76 = vld [vmem:[%s66] sm:%s75]
    %v77 = vunpack.c.l.bf16 %v76
    %v78 = vunpack.c.h.bf16 %v76
    %v79 = vlaneseq
    %v80 = vand.u32 %v79, 127
    %vm82 = vcmp.lt.s32.totalorder %v80, 4
    %v83 = vsel %vm82, %v77, %v11
    %s84 = scalar_lea.vmem [#allocation12], 8
    %v85 = vpack.c.bf16 0.0, %v83
    %87 = vst [vmem:[%s84] sm:$0xf] %v85
    %s88 = scalar_lea.vmem %s2, 12
    %s90 = sor.u32 255, 127
    %s91 = sand.u32 %s90, 85
    %s92 = sshrl.u32 %s91, 1
    %s93 = sor.u32 %s91, %s92
    %s94 = sand.u32 51, %s93
    %s95 = sshrl.u32 %s94, 2
    %s96 = sor.u32 %s94, %s95
    %s97 = sand.u32 15, %s96
    %v98 = vld [vmem:[%s88] sm:%s97]
    %v99 = vunpack.c.l.bf16 %v98
    %v100 = vunpack.c.h.bf16 %v98
    %v101 = vlaneseq
    %v102 = vand.u32 %v101, 127
    %vm104 = vcmp.lt.s32.totalorder %v102, 4
    %v105 = vsel %vm104, %v99, %v11
    %s106 = scalar_lea.vmem [#allocation12], 12
    %v107 = vpack.c.bf16 0.0, %v105
    %109 = vst [vmem:[%s106] sm:$0xf] %v107
    %s110 = scalar_lea.vmem %s2, 16
    %s112 = sor.u32 255, 127
    %s113 = sand.u32 %s112, 85
    %s114 = sshrl.u32 %s113, 1
    %s115 = sor.u32 %s113, %s114
    %s116 = sand.u32 51, %s115
    %s117 = sshrl.u32 %s116, 2
    %s118 = sor.u32 %s116, %s117
    %s119 = sand.u32 15, %s118
    %v120 = vld [vmem:[%s110] sm:%s119]
    %v121 = vunpack.c.l.bf16 %v120
    %v122 = vunpack.c.h.bf16 %v120
    %v123 = vlaneseq
    %v124 = vand.u32 %v123, 127
    %vm126 = vcmp.lt.s32.totalorder %v124, 4
    %v127 = vsel %vm126, %v121, %v11
    %s128 = scalar_lea.vmem [#allocation12], 16
    %v129 = vpack.c.bf16 0.0, %v127
    %131 = vst [vmem:[%s128] sm:$0xf] %v129
    %s132 = scalar_lea.vmem %s2, 20
    %s134 = sor.u32 255, 127
    %s135 = sand.u32 %s134, 85
    %s136 = sshrl.u32 %s135, 1
    %s137 = sor.u32 %s135, %s136
    %s138 = sand.u32 51, %s137
    %s139 = sshrl.u32 %s138, 2
    %s140 = sor.u32 %s138, %s139
    %s141 = sand.u32 15, %s140
    %v142 = vld [vmem:[%s132] sm:%s141]
    %v143 = vunpack.c.l.bf16 %v142
    %v144 = vunpack.c.h.bf16 %v142
    %v145 = vlaneseq
    %v146 = vand.u32 %v145, 127
    %vm148 = vcmp.lt.s32.totalorder %v146, 4
    %v149 = vsel %vm148, %v143, %v11
    %s150 = scalar_lea.vmem [#allocation12], 20
    %v151 = vpack.c.bf16 0.0, %v149
    %153 = vst [vmem:[%s150] sm:$0xf] %v151
    %s154 = scalar_lea.vmem %s2, 24
    %s156 = sor.u32 255, 127
    %s157 = sand.u32 %s156, 85
    %s158 = sshrl.u32 %s157, 1
    %s159 = sor.u32 %s157, %s158
    %s160 = sand.u32 51, %s159
    %s161 = sshrl.u32 %s160, 2
    %s162 = sor.u32 %s160, %s161
    %s163 = sand.u32 15, %s162
    %v164 = vld [vmem:[%s154] sm:%s163]
    %v165 = vunpack.c.l.bf16 %v164
    %v166 = vunpack.c.h.bf16 %v164
    %v167 = vlaneseq
    %v168 = vand.u32 %v167, 127
    %vm170 = vcmp.lt.s32.totalorder %v168, 4
    %v171 = vsel %vm170, %v165, %v11
    %s172 = scalar_lea.vmem [#allocation12], 24
    %v173 = vpack.c.bf16 0.0, %v171
    %175 = vst [vmem:[%s172] sm:$0xf] %v173
    %s176 = scalar_lea.vmem %s2, 28
    %s178 = sor.u32 255, 127
    %s179 = sand.u32 %s178, 85
    %s180 = sshrl.u32 %s179, 1
    %s181 = sor.u32 %s179, %s180
    %s182 = sand.u32 51, %s181
    %s183 = sshrl.u32 %s182, 2
    %s184 = sor.u32 %s182, %s183
    %s185 = sand.u32 15, %s184
    %v186 = vld [vmem:[%s176] sm:%s185]
    %v187 = vunpack.c.l.bf16 %v186
    %v188 = vunpack.c.h.bf16 %v186
    %v189 = vlaneseq
    %v190 = vand.u32 %v189, 127
    %vm192 = vcmp.lt.s32.totalorder %v190, 4
    %v193 = vsel %vm192, %v187, %v11
    %s194 = scalar_lea.vmem [#allocation12], 28
    %v195 = vpack.c.bf16 0.0, %v193
    %197 = vst [vmem:[%s194] sm:$0xf] %v195
    %s198 = scalar_lea.vmem %s2, 32
    %s200 = sor.u32 255, 127
    %s201 = sand.u32 %s200, 85
    %s202 = sshrl.u32 %s201, 1
    %s203 = sor.u32 %s201, %s202
    %s204 = sand.u32 51, %s203
    %s205 = sshrl.u32 %s204, 2
    %s206 = sor.u32 %s204, %s205
    %s207 = sand.u32 15, %s206
    %v208 = vld [vmem:[%s198] sm:%s207]
    %v209 = vunpack.c.l.bf16 %v208
    %v210 = vunpack.c.h.bf16 %v208
    %v211 = vlaneseq
    %v212 = vand.u32 %v211, 127
    %vm214 = vcmp.lt.s32.totalorder %v212, 4
    %v215 = vsel %vm214, %v209, %v11
    %s216 = scalar_lea.vmem [#allocation12], 32
    %v217 = vpack.c.bf16 0.0, %v215
    %219 = vst [vmem:[%s216] sm:$0xf] %v217
    %s220 = scalar_lea.vmem %s2, 36
    %s222 = sor.u32 255, 127
    %s223 = sand.u32 %s222, 85
    %s224 = sshrl.u32 %s223, 1
    %s225 = sor.u32 %s223, %s224
    %s226 = sand.u32 51, %s225
    %s227 = sshrl.u32 %s226, 2
    %s228 = sor.u32 %s226, %s227
    %s229 = sand.u32 15, %s228
    %v230 = vld [vmem:[%s220] sm:%s229]
    %v231 = vunpack.c.l.bf16 %v230
    %v232 = vunpack.c.h.bf16 %v230
    %v233 = vlaneseq
    %v234 = vand.u32 %v233, 127
    %vm236 = vcmp.lt.s32.totalorder %v234, 4
    %v237 = vsel %vm236, %v231, %v11
    %s238 = scalar_lea.vmem [#allocation12], 36
    %v239 = vpack.c.bf16 0.0, %v237
    %241 = vst [vmem:[%s238] sm:$0xf] %v239
    %s242 = scalar_lea.vmem %s2, 40
    %s244 = sor.u32 255, 127
    %s245 = sand.u32 %s244, 85
    %s246 = sshrl.u32 %s245, 1
    %s247 = sor.u32 %s245, %s246
    %s248 = sand.u32 51, %s247
    %s249 = sshrl.u32 %s248, 2
    %s250 = sor.u32 %s248, %s249
    %s251 = sand.u32 15, %s250
    %v252 = vld [vmem:[%s242] sm:%s251]
    %v253 = vunpack.c.l.bf16 %v252
    %v254 = vunpack.c.h.bf16 %v252
    %v255 = vlaneseq
    %v256 = vand.u32 %v255, 127
    %vm258 = vcmp.lt.s32.totalorder %v256, 4
    %v259 = vsel %vm258, %v253, %v11
    %s260 = scalar_lea.vmem [#allocation12], 40
    %v261 = vpack.c.bf16 0.0, %v259
    %263 = vst [vmem:[%s260] sm:$0xf] %v261
    %s264 = scalar_lea.vmem %s2, 44
    %s266 = sor.u32 255, 127
    %s267 = sand.u32 %s266, 85
    %s268 = sshrl.u32 %s267, 1
    %s269 = sor.u32 %s267, %s268
    %s270 = sand.u32 51, %s269
    %s271 = sshrl.u32 %s270, 2
    %s272 = sor.u32 %s270, %s271
    %s273 = sand.u32 15, %s272
    %v274 = vld [vmem:[%s264] sm:%s273]
    %v275 = vunpack.c.l.bf16 %v274
    %v276 = vunpack.c.h.bf16 %v274
    %v277 = vlaneseq
    %v278 = vand.u32 %v277, 127
    %vm280 = vcmp.lt.s32.totalorder %v278, 4
    %v281 = vsel %vm280, %v275, %v11
    %s282 = scalar_lea.vmem [#allocation12], 44
    %v283 = vpack.c.bf16 0.0, %v281
    %285 = vst [vmem:[%s282] sm:$0xf] %v283
    %s286 = scalar_lea.vmem %s2, 48
    %s288 = sor.u32 255, 127
    %s289 = sand.u32 %s288, 85
    %s290 = sshrl.u32 %s289, 1
    %s291 = sor.u32 %s289, %s290
    %s292 = sand.u32 51, %s291
    %s293 = sshrl.u32 %s292, 2
    %s294 = sor.u32 %s292, %s293
    %s295 = sand.u32 15, %s294
    %v296 = vld [vmem:[%s286] sm:%s295]
    %v297 = vunpack.c.l.bf16 %v296
    %v298 = vunpack.c.h.bf16 %v296
    %v299 = vlaneseq
    %v300 = vand.u32 %v299, 127
    %vm302 = vcmp.lt.s32.totalorder %v300, 4
    %v303 = vsel %vm302, %v297, %v11
    %s304 = scalar_lea.vmem [#allocation12], 48
    %v305 = vpack.c.bf16 0.0, %v303
    %307 = vst [vmem:[%s304] sm:$0xf] %v305
    %s308 = scalar_lea.vmem %s2, 52
    %s310 = sor.u32 255, 127
    %s311 = sand.u32 %s310, 85
    %s312 = sshrl.u32 %s311, 1
    %s313 = sor.u32 %s311, %s312
    %s314 = sand.u32 51, %s313
    %s315 = sshrl.u32 %s314, 2
    %s316 = sor.u32 %s314, %s315
    %s317 = sand.u32 15, %s316
    %v318 = vld [vmem:[%s308] sm:%s317]
    %v319 = vunpack.c.l.bf16 %v318
    %v320 = vunpack.c.h.bf16 %v318
    %v321 = vlaneseq
    %v322 = vand.u32 %v321, 127
    %vm324 = vcmp.lt.s32.totalorder %v322, 4
    %v325 = vsel %vm324, %v319, %v11
    %s326 = scalar_lea.vmem [#allocation12], 52
    %v327 = vpack.c.bf16 0.0, %v325
    %329 = vst [vmem:[%s326] sm:$0xf] %v327
    %s330 = scalar_lea.vmem %s2, 56
    %s332 = sor.u32 255, 127
    %s333 = sand.u32 %s332, 85
    %s334 = sshrl.u32 %s333, 1
    %s335 = sor.u32 %s333, %s334
    %s336 = sand.u32 51, %s335
    %s337 = sshrl.u32 %s336, 2
    %s338 = sor.u32 %s336, %s337
    %s339 = sand.u32 15, %s338
    %v340 = vld [vmem:[%s330] sm:%s339]
    %v341 = vunpack.c.l.bf16 %v340
    %v342 = vunpack.c.h.bf16 %v340
    %v343 = vlaneseq
    %v344 = vand.u32 %v343, 127
    %vm346 = vcmp.lt.s32.totalorder %v344, 4
    %v347 = vsel %vm346, %v341, %v11
    %s348 = scalar_lea.vmem [#allocation12], 56
    %v349 = vpack.c.bf16 0.0, %v347
    %351 = vst [vmem:[%s348] sm:$0xf] %v349
    %s352 = scalar_lea.vmem %s2, 60
    %s354 = sor.u32 255, 127
    %s355 = sand.u32 %s354, 85
    %s356 = sshrl.u32 %s355, 1
    %s357 = sor.u32 %s355, %s356
    %s358 = sand.u32 51, %s357
    %s359 = sshrl.u32 %s358, 2
    %s360 = sor.u32 %s358, %s359
    %s361 = sand.u32 15, %s360
    %v362 = vld [vmem:[%s352] sm:%s361]
    %v363 = vunpack.c.l.bf16 %v362
    %v364 = vunpack.c.h.bf16 %v362
    %v365 = vlaneseq
    %v366 = vand.u32 %v365, 127
    %vm368 = vcmp.lt.s32.totalorder %v366, 4
    %v369 = vsel %vm368, %v363, %v11
    %s370 = scalar_lea.vmem [#allocation12], 60
    %v371 = vpack.c.bf16 0.0, %v369
    %373 = vst [vmem:[%s370] sm:$0xf] %v371
    %s375 = sor.u32 15, 7
    %s376 = sand.u32 %s375, 5
    %s377 = sshrl.u32 %s376, 1
    %s378 = sor.u32 %s376, %s377
    %s379 = sand.u32 3, %s378
    %v380 = vld [vmem:[%s0] sm:%s379]
    %v381 = vunpack.c.l.bf16 %v380
    %v382 = vunpack.c.h.bf16 %v380
    %v383 = vlaneseq
    %v384 = vshrl.u32 %v383, 7
    %vm386 = vcmp.lt.s32.totalorder %v384, 4
    %v387 = vsel %vm386, %v381, %v16
    %v388 = vlaneseq
    %v389 = vand.u32 %v388, 127
    %vm391 = vcmp.lt.s32.totalorder %v389, 8
    %v392 = vsel %vm391, %v387, %v16
    %v393 = vpack.c.bf16 0.0, %v392
    %395 = vst [vmem:[#allocation13] sm:$0xf] %v393
    %s396 = scalar_lea.vmem [#allocation13], 4
    %v397 = vpack.c.bf16 0.0, %v16
    %399 = vst [vmem:[%s396] sm:$0xf] %v397
    %s400 = scalar_lea.vmem [#allocation13], 8
    %v401 = vpack.c.bf16 0.0, %v16
    %403 = vst [vmem:[%s400] sm:$0xf] %v401
    %s404 = scalar_lea.vmem [#allocation13], 12
    %v405 = vpack.c.bf16 0.0, %v16
    %407 = vst [vmem:[%s404] sm:$0xf] %v405
    %s408 = scalar_lea.vmem [#allocation13], 16
    %v409 = vpack.c.bf16 0.0, %v16
    %411 = vst [vmem:[%s408] sm:$0xf] %v409
    %s412 = scalar_lea.vmem [#allocation13], 20
    %v413 = vpack.c.bf16 0.0, %v16
    %415 = vst [vmem:[%s412] sm:$0xf] %v413
    %s416 = scalar_lea.vmem [#allocation13], 24
    %v417 = vpack.c.bf16 0.0, %v16
    %419 = vst [vmem:[%s416] sm:$0xf] %v417
    %s420 = scalar_lea.vmem [#allocation13], 28
    %v421 = vpack.c.bf16 0.0, %v16
    %423 = vst [vmem:[%s420] sm:$0xf] %v421
    %s424 = scalar_lea.vmem [#allocation13], 32
    %v425 = vpack.c.bf16 0.0, %v16
    %427 = vst [vmem:[%s424] sm:$0xf] %v425
    %s428 = scalar_lea.vmem [#allocation13], 36
    %v429 = vpack.c.bf16 0.0, %v16
    %431 = vst [vmem:[%s428] sm:$0xf] %v429
    %s432 = scalar_lea.vmem [#allocation13], 40
    %v433 = vpack.c.bf16 0.0, %v16
    %435 = vst [vmem:[%s432] sm:$0xf] %v433
    %s436 = scalar_lea.vmem [#allocation13], 44
    %v437 = vpack.c.bf16 0.0, %v16
    %439 = vst [vmem:[%s436] sm:$0xf] %v437
    %s440 = scalar_lea.vmem [#allocation13], 48
    %v441 = vpack.c.bf16 0.0, %v16
    %443 = vst [vmem:[%s440] sm:$0xf] %v441
    %s444 = scalar_lea.vmem [#allocation13], 52
    %v445 = vpack.c.bf16 0.0, %v16
    %447 = vst [vmem:[%s444] sm:$0xf] %v445
    %s448 = scalar_lea.vmem [#allocation13], 56
    %v449 = vpack.c.bf16 0.0, %v16
    %451 = vst [vmem:[%s448] sm:$0xf] %v449
    %s452 = scalar_lea.vmem [#allocation13], 60
    %v453 = vpack.c.bf16 0.0, %v16
    %455 = vst [vmem:[%s452] sm:$0xf] %v453
    %v457 = vld [vmem:[#allocation12] sm:$0xf]
    %v458 = vld [vmem:[#allocation12 + $0x4] sm:$0xf]
    %v459 = vld [vmem:[#allocation12 + $0x8] sm:$0xf]
    %v460 = vld [vmem:[#allocation12 + $0xc] sm:$0xf]
    %v461 = vld [vmem:[#allocation12 + $0x10] sm:$0xf]
    %v462 = vld [vmem:[#allocation12 + $0x14] sm:$0xf]
    %v463 = vld [vmem:[#allocation12 + $0x18] sm:$0xf]
    %v464 = vld [vmem:[#allocation12 + $0x1c] sm:$0xf]
    %v465 = vld [vmem:[#allocation12 + $0x20] sm:$0xf]
    %v466 = vld [vmem:[#allocation12 + $0x24] sm:$0xf]
    %v467 = vld [vmem:[#allocation12 + $0x28] sm:$0xf]
    %v468 = vld [vmem:[#allocation12 + $0x2c] sm:$0xf]
    %v469 = vld [vmem:[#allocation12 + $0x30] sm:$0xf]
    %v470 = vld [vmem:[#allocation12 + $0x34] sm:$0xf]
    %v471 = vld [vmem:[#allocation12 + $0x38] sm:$0xf]
    %v472 = vld [vmem:[#allocation12 + $0x3c] sm:$0xf]
    %v473 = vld [vmem:[#allocation13] sm:$0xf]
    %v474 = vld [vmem:[#allocation13 + $0x4] sm:$0xf]
    %v475 = vld [vmem:[#allocation13 + $0x8] sm:$0xf]
    %v476 = vld [vmem:[#allocation13 + $0xc] sm:$0xf]
    %v477 = vld [vmem:[#allocation13 + $0x10] sm:$0xf]
    %v478 = vld [vmem:[#allocation13 + $0x14] sm:$0xf]
    %v479 = vld [vmem:[#allocation13 + $0x18] sm:$0xf]
    %v480 = vld [vmem:[#allocation13 + $0x1c] sm:$0xf]
    %v481 = vld [vmem:[#allocation13 + $0x20] sm:$0xf]
    %v482 = vld [vmem:[#allocation13 + $0x24] sm:$0xf]
    %v483 = vld [vmem:[#allocation13 + $0x28] sm:$0xf]
    %v484 = vld [vmem:[#allocation13 + $0x2c] sm:$0xf]
    %v485 = vld [vmem:[#allocation13 + $0x30] sm:$0xf]
    %v486 = vld [vmem:[#allocation13 + $0x34] sm:$0xf]
    %v487 = vld [vmem:[#allocation13 + $0x38] sm:$0xf]
    %v488 = vld [vmem:[#allocation13 + $0x3c] sm:$0xf]
    %v505 = vunpack.c.l.b16 %v457
    %v506 = vunpack.c.l.b16 %v458
    %v507 = vunpack.c.l.b16 %v459
    %v508 = vunpack.c.l.b16 %v460
    %v509 = vunpack.c.l.b16 %v461
    %v510 = vunpack.c.l.b16 %v462
    %v511 = vunpack.c.l.b16 %v463
    %v512 = vunpack.c.l.b16 %v464
    %v513 = vunpack.c.l.b16 %v465
    %v514 = vunpack.c.l.b16 %v466
    %v515 = vunpack.c.l.b16 %v467
    %v516 = vunpack.c.l.b16 %v468
    %v517 = vunpack.c.l.b16 %v469
    %v518 = vunpack.c.l.b16 %v470
    %v519 = vunpack.c.l.b16 %v471
    %v520 = vunpack.c.l.b16 %v472
    %v521 = vpack.c.b16 %v506, %v505
    %v522 = vpack.c.b16 %v508, %v507
    %v523 = vpack.c.b16 %v510, %v509
    %v524 = vpack.c.b16 %v512, %v511
    %v525 = vpack.c.b16 %v514, %v513
    %v526 = vpack.c.b16 %v516, %v515
    %v527 = vpack.c.b16 %v518, %v517
    %v528 = vpack.c.b16 %v520, %v519
    %v553 = vunpack.c.l.b16 %v473
    %v554 = vunpack.c.l.b16 %v474
    %v555 = vunpack.c.l.b16 %v475
    %v556 = vunpack.c.l.b16 %v476
    %v557 = vunpack.c.l.b16 %v477
    %v558 = vunpack.c.l.b16 %v478
    %v559 = vunpack.c.l.b16 %v479
    %v560 = vunpack.c.l.b16 %v480
    %v561 = vunpack.c.l.b16 %v481
    %v562 = vunpack.c.l.b16 %v482
    %v563 = vunpack.c.l.b16 %v483
    %v564 = vunpack.c.l.b16 %v484
    %v565 = vunpack.c.l.b16 %v485
    %v566 = vunpack.c.l.b16 %v486
    %v567 = vunpack.c.l.b16 %v487
    %v568 = vunpack.c.l.b16 %v488
    %v569 = vpack.c.b16 %v554, %v553
    %v570 = vpack.c.b16 %v556, %v555
    %v571 = vpack.c.b16 %v558, %v557
    %v572 = vpack.c.b16 %v560, %v559
    %v573 = vpack.c.b16 %v562, %v561
    %v574 = vpack.c.b16 %v564, %v563
    %v575 = vpack.c.b16 %v566, %v565
    %v576 = vpack.c.b16 %v568, %v567
    %585 = vmatprep.subr.bf16.mxu0 0
    %586 = vmatpush1.bf16.msra.mxu0 %v569
    %587 = vmatprep.subr.bf16.mxu0 0
    %588 = vmatpush1.bf16.msra.mxu0 %v570
    %589 = vmatprep.subr.bf16.mxu0 0
    %590 = vmatpush1.bf16.msra.mxu0 %v571
    %591 = vmatprep.subr.bf16.mxu0 0
    %592 = vmatpush1.bf16.msra.mxu0 %v572
    %593 = vmatprep.subr.bf16.mxu0 0
    %594 = vmatpush1.bf16.msra.mxu0 %v573
    %595 = vmatprep.subr.bf16.mxu0 0
    %596 = vmatpush1.bf16.msra.mxu0 %v574
    %597 = vmatprep.subr.bf16.mxu0 0
    %598 = vmatpush1.bf16.msra.mxu0 %v575
    %599 = vmatprep.subr.bf16.mxu0 0
    %600 = vmatpush1.bf16.msra.mxu0 %v576
    %601 = vmatprep.subr.bf16.mxu0 0
    %602 = vmatpush1.bf16.msra.mxu0 0
    %603 = vmatprep.subr.bf16.mxu0 0
    %604 = vmatpush1.bf16.msra.mxu0 0
    %605 = vmatprep.subr.bf16.mxu0 0
    %606 = vmatpush1.bf16.msra.mxu0 0
    %607 = vmatprep.subr.bf16.mxu0 0
    %608 = vmatpush1.bf16.msra.mxu0 0
    %609 = vmatprep.subr.bf16.mxu0 0
    %610 = vmatpush1.bf16.msra.mxu0 0
    %611 = vmatprep.subr.bf16.mxu0 0
    %612 = vmatpush1.bf16.msra.mxu0 0
    %613 = vmatprep.subr.bf16.mxu0 0
    %614 = vmatpush1.bf16.msra.mxu0 0
    %615 = vmatprep.subr.bf16.mxu0 0
    %616 = vmatpush1.bf16.msra.mxu0 0
    %617 = vmatprep.mubr.bf16.mxu0 0
    %618 = vmatmul.mubr.bf16.gmra.mrb[0].mxu0 %v521
    %v619 = vpop.f32.mrb[0].mxu0
    %v620 = vadd.f32 0.0, %v619
    %v621 = vpop.f32.mrb[0].mxu0
    %v622 = vpop.f32.mrb[0].mxu0
    %v623 = vadd.f32 0.0, %v622
    %v624 = vpop.f32.mrb[0].mxu0
    %625 = vmatprep.mubr.bf16.mxu0 0
    %626 = vmatmul.mubr.bf16.gmra.mrb[0].mxu0 %v522
    %v627 = vpop.f32.mrb[0].mxu0
    %v628 = vadd.f32 0.0, %v627
    %v629 = vpop.f32.mrb[0].mxu0
    %v630 = vpop.f32.mrb[0].mxu0
    %v631 = vadd.f32 0.0, %v630
    %v632 = vpop.f32.mrb[0].mxu0
    %633 = vmatprep.mubr.bf16.mxu0 0
    %634 = vmatmul.mubr.bf16.gmra.mrb[0].mxu0 %v523
    %v635 = vpop.f32.mrb[0].mxu0
    %v636 = vadd.f32 0.0, %v635
    %v637 = vpop.f32.mrb[0].mxu0
    %v638 = vpop.f32.mrb[0].mxu0
    %v639 = vadd.f32 0.0, %v638
    %v640 = vpop.f32.mrb[0].mxu0
    %641 = vmatprep.mubr.bf16.mxu0 0
    %642 = vmatmul.mubr.bf16.gmra.mrb[0].mxu0 %v524
    %v643 = vpop.f32.mrb[0].mxu0
    %v644 = vadd.f32 0.0, %v643
    %v645 = vpop.f32.mrb[0].mxu0
    %v646 = vpop.f32.mrb[0].mxu0
    %v647 = vadd.f32 0.0, %v646
    %v648 = vpop.f32.mrb[0].mxu0
    %649 = vmatprep.mubr.bf16.mxu0 0
    %650 = vmatmul.mubr.bf16.gmra.mrb[0].mxu0 %v525
    %v651 = vpop.f32.mrb[0].mxu0
    %v652 = vadd.f32 0.0, %v651
    %v653 = vpop.f32.mrb[0].mxu0
    %v654 = vpop.f32.mrb[0].mxu0
    %v655 = vadd.f32 0.0, %v654
    %v656 = vpop.f32.mrb[0].mxu0
    %657 = vmatprep.mubr.bf16.mxu0 0
    %658 = vmatmul.mubr.bf16.gmra.mrb[0].mxu0 %v526
    %v659 = vpop.f32.mrb[0].mxu0
    %v660 = vadd.f32 0.0, %v659
    %v661 = vpop.f32.mrb[0].mxu0
    %v662 = vpop.f32.mrb[0].mxu0
    %v663 = vadd.f32 0.0, %v662
    %v664 = vpop.f32.mrb[0].mxu0
    %665 = vmatprep.mubr.bf16.mxu0 0
    %666 = vmatmul.mubr.bf16.gmra.mrb[0].mxu0 %v527
    %v667 = vpop.f32.mrb[0].mxu0
    %v668 = vadd.f32 0.0, %v667
    %v669 = vpop.f32.mrb[0].mxu0
    %v670 = vpop.f32.mrb[0].mxu0
    %v671 = vadd.f32 0.0, %v670
    %v672 = vpop.f32.mrb[0].mxu0
    %673 = vmatprep.mubr.bf16.mxu0 0
    %674 = vmatmul.mubr.bf16.gmra.mrb[0].mxu0 %v528
    %v675 = vpop.f32.mrb[0].mxu0
    %v676 = vadd.f32 0.0, %v675
    %v677 = vpop.f32.mrb[0].mxu0
    %v678 = vpop.f32.mrb[0].mxu0
    %v679 = vadd.f32 0.0, %v678
    %v680 = vpop.f32.mrb[0].mxu0
    %681 = vdwg.mxu0
    %v682 = vadd.f32 %v620, %v623
    %v683 = vadd.f32 %v682, %v628
    %v684 = vadd.f32 %v683, %v631
    %v685 = vadd.f32 %v684, %v636
    %v686 = vadd.f32 %v685, %v639
    %v687 = vadd.f32 %v686, %v644
    %v688 = vadd.f32 %v687, %v647
    %v689 = vadd.f32 %v688, %v652
    %v690 = vadd.f32 %v689, %v655
    %v691 = vadd.f32 %v690, %v660
    %v692 = vadd.f32 %v691, %v663
    %v693 = vadd.f32 %v692, %v668
    %v694 = vadd.f32 %v693, %v671
    %v695 = vadd.f32 %v694, %v676
    %v696 = vadd.f32 %v695, %v679
    %v697 = vrot.slane %v696, 4
    %v698 = vadd.f32 %v696, %v697
    %v699 = vrot.slane %v698, 2
    %v700 = vadd.f32 %v698, %v699
    %v701 = vrot.slane %v700, 1
    %v702 = vadd.f32 %v700, %v701
    %703 = vst [vmem:[%s4] sm:$0x1] %v702
    %v704 = vmul.f32 %v620, %v620
    %v705 = vmul.f32 %v623, %v623
    %v706 = vmul.f32 %v628, %v628
    %v707 = vmul.f32 %v631, %v631
    %v708 = vmul.f32 %v636, %v636
    %v709 = vmul.f32 %v639, %v639
    %v710 = vmul.f32 %v644, %v644
    %v711 = vmul.f32 %v647, %v647
    %v712 = vmul.f32 %v652, %v652
    %v713 = vmul.f32 %v655, %v655
    %v714 = vmul.f32 %v660, %v660
    %v715 = vmul.f32 %v663, %v663
    %v716 = vmul.f32 %v668, %v668
    %v717 = vmul.f32 %v671, %v671
    %v718 = vmul.f32 %v676, %v676
    %v719 = vmul.f32 %v679, %v679
    %v720 = vadd.f32 %v704, %v705
    %v721 = vadd.f32 %v720, %v706
    %v722 = vadd.f32 %v721, %v707
    %v723 = vadd.f32 %v722, %v708
    %v724 = vadd.f32 %v723, %v709
    %v725 = vadd.f32 %v724, %v710
    %v726 = vadd.f32 %v725, %v711
    %v727 = vadd.f32 %v726, %v712
    %v728 = vadd.f32 %v727, %v713
    %v729 = vadd.f32 %v728, %v714
    %v730 = vadd.f32 %v729, %v715
    %v731 = vadd.f32 %v730, %v716
    %v732 = vadd.f32 %v731, %v717
    %v733 = vadd.f32 %v732, %v718
    %v734 = vadd.f32 %v733, %v719
    %v735 = vrot.slane %v734, 4
    %v736 = vadd.f32 %v734, %v735
    %v737 = vrot.slane %v736, 2
    %v738 = vadd.f32 %v736, %v737
    %v739 = vrot.slane %v738, 1
    %v740 = vadd.f32 %v738, %v739
    %741 = vst [vmem:[%s4 + $0x1] sm:$0x1] %v740
    %v742 = vpack.c.bf16 %v623, %v620
    %v743 = vpack.c.bf16 %v631, %v628
    %v744 = vpack.c.bf16 %v639, %v636
    %v745 = vpack.c.bf16 %v647, %v644
    %v746 = vpack.c.bf16 %v655, %v652
    %v747 = vpack.c.bf16 %v663, %v660
    %v748 = vpack.c.bf16 %v671, %v668
    %v749 = vpack.c.bf16 %v679, %v676
    %v758 = vunpack.c.l.b16 %v742
    %v759 = vunpack.c.h.b16 %v742
    %v760 = vunpack.c.l.b16 %v743
    %v761 = vunpack.c.h.b16 %v743
    %v762 = vunpack.c.l.b16 %v744
    %v763 = vunpack.c.h.b16 %v744
    %v764 = vunpack.c.l.b16 %v745
    %v765 = vunpack.c.h.b16 %v745
    %v766 = vunpack.c.l.b16 %v746
    %v767 = vunpack.c.h.b16 %v746
    %v768 = vunpack.c.l.b16 %v747
    %v769 = vunpack.c.h.b16 %v747
    %v770 = vunpack.c.l.b16 %v748
    %v771 = vunpack.c.h.b16 %v748
    %v772 = vunpack.c.l.b16 %v749
    %v773 = vunpack.c.h.b16 %v749
    %v774 = vpack.c.b16 %v758, %v758
    %v775 = vpack.c.b16 %v759, %v759
    %v776 = vpack.c.b16 %v760, %v760
    %v777 = vpack.c.b16 %v761, %v761
    %v778 = vpack.c.b16 %v762, %v762
    %v779 = vpack.c.b16 %v763, %v763
    %v780 = vpack.c.b16 %v764, %v764
    %v781 = vpack.c.b16 %v765, %v765
    %v782 = vpack.c.b16 %v766, %v766
    %v783 = vpack.c.b16 %v767, %v767
    %v784 = vpack.c.b16 %v768, %v768
    %v785 = vpack.c.b16 %v769, %v769
    %v786 = vpack.c.b16 %v770, %v770
    %v787 = vpack.c.b16 %v771, %v771
    %v788 = vpack.c.b16 %v772, %v772
    %v789 = vpack.c.b16 %v773, %v773
    %806 = vst [vmem:[%s3] sm:$0xf] %v774
    %807 = vst [vmem:[%s3 + $0x4] sm:$0xf] %v775
    %808 = vst [vmem:[%s3 + $0x8] sm:$0xf] %v776
    %809 = vst [vmem:[%s3 + $0xc] sm:$0xf] %v777
    %810 = vst [vmem:[%s3 + $0x10] sm:$0xf] %v778
    %811 = vst [vmem:[%s3 + $0x14] sm:$0xf] %v779
    %812 = vst [vmem:[%s3 + $0x18] sm:$0xf] %v780
    %813 = vst [vmem:[%s3 + $0x1c] sm:$0xf] %v781
    %814 = vst [vmem:[%s3 + $0x20] sm:$0xf] %v782
    %815 = vst [vmem:[%s3 + $0x24] sm:$0xf] %v783
    %816 = vst [vmem:[%s3 + $0x28] sm:$0xf] %v784
    %817 = vst [vmem:[%s3 + $0x2c] sm:$0xf] %v785
    %818 = vst [vmem:[%s3 + $0x30] sm:$0xf] %v786
    %819 = vst [vmem:[%s3 + $0x34] sm:$0xf] %v787
    %820 = vst [vmem:[%s3 + $0x38] sm:$0xf] %v788
    %821 = vst [vmem:[%s3 + $0x3c] sm:$0xf] %v789
    // Predicated region
    $region10: #{_lambda_.12} parent=1 // pred_check
      _
    $region11: #{_lambda_.12} parent=1 // pred_check_branch
      %823 = sbr.rel (0) target = $region13
    $region12: #{_lambda_.12} parent=1 // pred_region
      _
    $region13: #{_lambda_.12} parent=1 // pred_fallthru
      _
    // Predicated region
    $region14: #{_lambda_.12} parent=1 // pred_check
      _
    $region15: #{_lambda_.12} parent=1 // pred_check_branch
      %825 = sbr.rel (0) target = $region17
    $region16: #{_lambda_.12} parent=1 // pred_region
      _
    $region17: #{_lambda_.12} parent=1 // pred_fallthru
      _
    // Predicated region
    $region18: #{_lambda_.12} parent=1 // pred_check
      _
    $region19: #{_lambda_.12} parent=1 // pred_check_branch
      %827 = sbr.rel (0) target = $region21
    $region20: #{_lambda_.12} parent=1 // pred_region
      _
    $region21: #{_lambda_.12} parent=1 // pred_fallthru
      _
    // Predicated region
    $region22: #{_lambda_.12} parent=1 // pred_check
      _
    $region23: #{_lambda_.12} parent=1 // pred_check_branch
      %829 = sbr.rel (0) target = $region25
    $region24: #{_lambda_.12} parent=1 // pred_region
      _
    $region25: #{_lambda_.12} parent=1 // pred_fallthru
      _

// kernel: _lambda_.16
$region0: #{_lambda_.16}
  #allocation0 [shape = 'u32[]', space=smem, size = 0x4, offset = 0x4, fixed_abs, tag = 'smem constant byte address 0x4 - core index']
  #allocation1 [shape = 'u32[144,128]{1,0:T(1,128)}', space=vmem, size = 0x12000, scoped, tag = 'internal scratch']
  #allocation2 [shape = 'u32[2048]{0}', space=vmem, size = 0x2000, scoped, tag = 'scoped memory for _lambda_.16']
  #allocation3 [shape = 'u32[2048]{0}', space=vmem, size = 0x2000, scoped, tag = 'scoped memory for _lambda_.16']
  #allocation4 [shape = 'u32[2048]{0}', space=vmem, size = 0x2000, scoped, tag = 'scoped memory for _lambda_.16']
  #allocation5 [shape = 'u32[2048]{0}', space=vmem, size = 0x2000, scoped, tag = 'scoped memory for _lambda_.16']
  #allocation6 [shape = 'u32[2048]{0}', space=vmem, size = 0x2000, scoped, tag = 'scoped memory for _lambda_.16']
  #allocation7 [shape = 'u32[2048]{0}', space=vmem, size = 0x2000, scoped, tag = 'scoped memory for _lambda_.16']
  #allocation8 [shape = 'u32[2048]{0}', space=vmem, size = 0x2000, scoped, tag = 'scoped memory for _lambda_.16']
  #allocation9 [shape = 'u32[2048]{0}', space=vmem, size = 0x2000, scoped, tag = 'scoped memory for _lambda_.16']
  #allocation10 [shape = 'u32[2048]{0}', space=vmem, size = 0x2000, scoped, tag = 'scoped memory for _lambda_.16']
  #allocation11 [shape = 'u32[2048]{0}', space=vmem, size = 0x2000, scoped, tag = 'scoped memory for _lambda_.16']
  #allocation12 [shape = 'u32[2048]{0}', space=vmem, size = 0x2000, scoped, tag = 'scoped memory for _lambda_.16']
  #allocation13 [shape = 'u32[2048]{0}', space=vmem, size = 0x2000, scoped, tag = 'scoped memory for _lambda_.16']
  #allocation14 [shape = 'u32[2048]{0}', space=vmem, size = 0x2000, scoped, tag = 'scoped memory for _lambda_.16']
  #allocation15 [shape = 'u32[2048]{0}', space=vmem, size = 0x2000, scoped, tag = 'scoped memory for _lambda_.16']
  #allocation16 [shape = 'u32[2048]{0}', space=vmem, size = 0x2000, scoped, tag = 'scoped memory for _lambda_.16']
  #allocation17 [shape = 'u32[2048]{0}', space=vmem, size = 0x2000, scoped, tag = 'scoped memory for _lambda_.16']
  #allocation18 [shape = 'u32[2048]{0}', space=vmem, size = 0x2000, scoped, tag = 'scoped memory for _lambda_.16']
  #allocation19 [shape = 'u32[2048]{0}', space=vmem, size = 0x2000, scoped, tag = 'scoped memory for _lambda_.16']
  #allocation20 [shape = 'u32[2048]{0}', space=vmem, size = 0x2000, scoped, tag = 'scoped memory for _lambda_.16']
  #allocation21 [shape = 'u32[2048]{0}', space=vmem, size = 0x2000, scoped, tag = 'scoped memory for _lambda_.16']
  #allocation22 [shape = 'u32[2048]{0}', space=vmem, size = 0x2000, scoped, tag = 'scoped memory for _lambda_.16']
  #allocation23 [shape = 'u32[2048]{0}', space=vmem, size = 0x2000, scoped, tag = 'scoped memory for _lambda_.16']
  #allocation24 [shape = 'u32[2048]{0}', space=vmem, size = 0x2000, scoped, tag = 'scoped memory for _lambda_.16']
  #allocation25 [shape = 'u32[2048]{0}', space=vmem, size = 0x2000, scoped, tag = 'scoped memory for _lambda_.16']
  #allocation26 [shape = 'u32[2048]{0}', space=vmem, size = 0x2000, scoped, tag = 'scoped memory for _lambda_.16']
  #allocation27 [shape = 'u32[2048]{0}', space=vmem, size = 0x2000, scoped, tag = 'scoped memory for _lambda_.16']
  #allocation28 [shape = 'u32[2048]{0}', space=vmem, size = 0x2000, scoped, tag = 'scoped memory for _lambda_.16']
  #allocation29 [shape = 'u32[2048]{0}', space=vmem, size = 0x2000, scoped, tag = 'scoped memory for _lambda_.16']
  #allocation30 [shape = 'u32[2048]{0}', space=vmem, size = 0x2000, scoped, tag = 'scoped memory for _lambda_.16']
  #allocation31 [shape = 'u32[2048]{0}', space=vmem, size = 0x2000, scoped, tag = 'scoped memory for _lambda_.16']
  #allocation32 [shape = 'u32[2048]{0}', space=vmem, size = 0x2000, scoped, tag = 'scoped memory for _lambda_.16']
  #allocation33 [shape = 'u32[2048]{0}', space=vmem, size = 0x2000, scoped, tag = 'scoped memory for _lambda_.16']
  #allocation34 [shape = 'u32[2048]{0}', space=vmem, size = 0x2000, scoped, tag = 'scoped memory for _lambda_.16']
  #allocation35 [shape = 'u32[2048]{0}', space=vmem, size = 0x2000, scoped, tag = 'scoped memory for _lambda_.16']
  #allocation36 [shape = 'u32[2048]{0}', space=vmem, size = 0x2000, scoped, tag = 'scoped memory for _lambda_.16']
  %s0 = inlined_call_operand.vmem [shape: bf16[128,128], index: 0, kind: input, shape index: {}]
  %s1 = inlined_call_operand.vmem [shape: bf16[128,128], index: 1, kind: input, shape index: {}]
  %s2 = inlined_call_operand.vmem [shape: f32[8], index: 2, kind: input, shape index: {}]
  %s3 = inlined_call_operand.<no memory space> [shape: f32[], index: 3, kind: input, shape index: {}]
  %s4 = inlined_call_operand.vmem [shape: f32[8], index: 4, kind: input, shape index: {}]
  %s5 = inlined_call_operand.vmem [shape: f32[1,8,128], index: 5, kind: input, shape index: {}]
  %s6 = inlined_call_operand.<no memory space> [shape: f32[], index: 6, kind: input, shape index: {}]
  %s7 = inlined_call_operand.<no memory space> [shape: f32[], index: 7, kind: input, shape index: {}]
  %s8 = inlined_call_operand.vmem [shape: f32[128,128], index: 8, kind: output, shape index: {}]
  %s9 = sld [smem:[#allocation0]]
  $region46: #{_lambda_.16} parent=0
    _
  %s11 = ssub.s32 1, %s9
  %s12 = scalar_select 0, %s11, %s9
  %v13 = vstv %s3
  %v14 = vstv %s3
  %v15 = vstv %s6
  %v16 = vstv %s7
  %v17 = vstv %s3
  %v18 = vstv %s3
  %v19 = vstv %s3
  %v20 = vstv %s6
  %v21 = vstv %s7
  $region1: #{_lambda_.16} parent=0
    #allocation37 [shape = 'u8[512]{0}', space=vmem, size = 0x400, dematerialized = true, scoped, tag = 'FusionAdapter Buffer %fusion.18 = f32[1,128]{1,0:T(1,128)} fusion(%param_4.19, %param_3.32, %param_5.60, %param_6.47, %param_7.26), kind=kLoop, calls=%fused_computation.29.clone, metadata={op_name="jit(<lambda>)/reshape" stack_frame_id=131}']
    #allocation38 [shape = 'u8[512]{0}', space=vmem, size = 0x400, dematerialized = true, scoped, tag = 'FusionAdapter Buffer %fusion.17 = f32[1,128]{1,0:T(1,128)} fusion(%param_2.84, %param_3.32, %param_4.19, %param_5.60, %param_6.47, %param_7.26), kind=kLoop, calls=%fused_computation.28.clone, metadata={op_name="jit(<lambda>)/reshape" stack_frame_id=132}']
    // Predicated region
    $region2: #{_lambda_.16} parent=1 // pred_check
      _
    $region3: #{_lambda_.16} parent=1 // pred_check_branch
      %23 = sbr.rel (0) target = $region5
    $region4: #{_lambda_.16} parent=1 // pred_region
      _
    $region5: #{_lambda_.16} parent=1 // pred_fallthru
      _
    // Predicated region
    $region6: #{_lambda_.16} parent=1 // pred_check
      _
    $region7: #{_lambda_.16} parent=1 // pred_check_branch
      %25 = sbr.rel (0) target = $region9
    $region8: #{_lambda_.16} parent=1 // pred_region
      _
    $region9: #{_lambda_.16} parent=1 // pred_fallthru
      _
    // Predicated region
    $region10: #{_lambda_.16} parent=1 // pred_check
      _
    $region11: #{_lambda_.16} parent=1 // pred_check_branch
      %27 = sbr.rel (0) target = $region13
    $region12: #{_lambda_.16} parent=1 // pred_region
      _
    $region13: #{_lambda_.16} parent=1 // pred_fallthru
      _
    // Predicated region
    $region14: #{_lambda_.16} parent=1 // pred_check
      _
    $region15: #{_lambda_.16} parent=1 // pred_check_branch
      %29 = sbr.rel (0) target = $region17
    $region16: #{_lambda_.16} parent=1 // pred_region
      _
    $region17: #{_lambda_.16} parent=1 // pred_fallthru
      _
    // Predicated region
    $region18: #{_lambda_.16} parent=1 // pred_check
      _
    $region19: #{_lambda_.16} parent=1 // pred_check_branch
      %31 = sbr.rel (0) target = $region21
    $region20: #{_lambda_.16} parent=1 // pred_region
      _
    $region21: #{_lambda_.16} parent=1 // pred_fallthru
      _
    // Predicated region
    $region22: #{_lambda_.16} parent=1 // pred_check
      _
    $region23: #{_lambda_.16} parent=1 // pred_check_branch
      %33 = sbr.rel (0) target = $region25
    $region24: #{_lambda_.16} parent=1 // pred_region
      _
    $region25: #{_lambda_.16} parent=1 // pred_fallthru
      _
    // Predicated region
    $region26: #{_lambda_.16} parent=1 // pred_check
      _
    $region27: #{_lambda_.16} parent=1 // pred_check_branch
      %35 = sbr.rel (0) target = $region29
    $region28: #{_lambda_.16} parent=1 // pred_region
      _
    $region29: #{_lambda_.16} parent=1 // pred_fallthru
      _
    // Predicated region
    $region30: #{_lambda_.16} parent=1 // pred_check
      _
    $region31: #{_lambda_.16} parent=1 // pred_check_branch
      %37 = sbr.rel (0) target = $region33
    $region32: #{_lambda_.16} parent=1 // pred_region
      _
    $region33: #{_lambda_.16} parent=1 // pred_fallthru
      _
    // Predicated region
    $region34: #{_lambda_.16} parent=1 // pred_check
      _
    $region35: #{_lambda_.16} parent=1 // pred_check_branch
      %39 = sbr.rel (0) target = $region37
    $region36: #{_lambda_.16} parent=1 // pred_region
      _
    $region37: #{_lambda_.16} parent=1 // pred_fallthru
      _
    %v40 = vld [vmem:[%s4] sm:$0x1]
    %v41 = vlaneseq
    %vm43 = vcmp.lt.s32.totalorder %v41, 8
    %v44 = vsel %vm43, %v40, %v13
    %v45 = vld [vmem:[%s5] sm:$0xff]
    %vm46 = vcmask 1040384
    %v47 = vsel %vm46, 0, %v45
    %v48 = vrot.slane %v47, 1
    %v49 = vld [vmem:[%s5] sm:$0xff]
    %50 = xla_tuple %v48, %v15
    %51 = xla_tuple %50
    %v52 = vmul.f32 %v48, %v15
    %53 = xla_tuple %v52
    %54 = xla_tuple %v49, %v15
    %55 = xla_tuple %54
    %v56 = vmul.f32 %v49, %v15
    %57 = xla_tuple %v56
    %58 = xla_tuple %v56, %v56
    %59 = xla_tuple %58
    %v60 = vmul.f32 %v56, %v56
    %61 = xla_tuple %v60
    %62 = xla_tuple %v52, %v60
    %63 = xla_tuple %62
    %v64 = vsub.f32 %v52, %v60
    %65 = xla_tuple %v64
    %66 = xla_tuple %v64, %v14
    %67 = xla_tuple %66
    %v68 = vmax.f32 %v64, %v14
    %69 = xla_tuple %v68
    %70 = xla_tuple %v68, %v16
    %71 = xla_tuple %70
    %v72 = vadd.f32 %v68, %v16
    %73 = xla_tuple %v72
    %v74 = vrsqrt.pop %v72
    %75 = xla_tuple %v44, %v74
    %76 = xla_tuple %75
    %v77 = vmul.f32 %v44, %v74
    %78 = xla_tuple %v77
    %80 = vst [vmem:[#allocation37] sm:$0x1] %v77
    %v81 = vld [vmem:[%s2] sm:$0x1]
    %v82 = vlaneseq
    %vm84 = vcmp.lt.s32.totalorder %v82, 8
    %v85 = vsel %vm84, %v81, %v17
    %v86 = vld [vmem:[%s4] sm:$0x1]
    %v87 = vlaneseq
    %vm89 = vcmp.lt.s32.totalorder %v87, 8
    %v90 = vsel %vm89, %v86, %v19
    %v91 = vld [vmem:[%s5] sm:$0xff]
    %vm92 = vcmask 1040384
    %v93 = vsel %vm92, 0, %v91
    %v94 = vrot.slane %v93, 1
    %v95 = vld [vmem:[%s5] sm:$0xff]
    %96 = xla_tuple %v95, %v20
    %97 = xla_tuple %96
    %v98 = vmul.f32 %v95, %v20
    %99 = xla_tuple %v98
    %100 = xla_tuple %v94, %v20
    %101 = xla_tuple %100
    %v102 = vmul.f32 %v94, %v20
    %103 = xla_tuple %v102
    %104 = xla_tuple %v98, %v98
    %105 = xla_tuple %104
    %v106 = vmul.f32 %v98, %v98
    %107 = xla_tuple %v106
    %108 = xla_tuple %v102, %v106
    %109 = xla_tuple %108
    %v110 = vsub.f32 %v102, %v106
    %111 = xla_tuple %v110
    %112 = xla_tuple %v110, %v18
    %113 = xla_tuple %112
    %v114 = vmax.f32 %v110, %v18
    %115 = xla_tuple %v114
    %116 = xla_tuple %v114, %v21
    %117 = xla_tuple %116
    %v118 = vadd.f32 %v114, %v21
    %119 = xla_tuple %v118
    %v120 = vrsqrt.pop %v118
    %121 = xla_tuple %v90, %v120
    %122 = xla_tuple %121
    %v123 = vmul.f32 %v90, %v120
    %124 = xla_tuple %v123
    %125 = xla_tuple %v98, %v123
    %126 = xla_tuple %125
    %v127 = vmul.f32 %v98, %v123
    %128 = xla_tuple %v127
    %129 = xla_tuple %v85, %v127
    %130 = xla_tuple %129
    %v131 = vsub.f32 %v85, %v127
    %132 = xla_tuple %v131
    %134 = vst [vmem:[#allocation38] sm:$0x1] %v131
    %v135 = vld [vmem:[%s0] sm:$0xf]
    %v136 = vld [vmem:[%s0 + $0x4] sm:$0xf]
    %v137 = vld [vmem:[%s0 + $0x8] sm:$0xf]
    %v138 = vld [vmem:[%s0 + $0xc] sm:$0xf]
    %v139 = vld [vmem:[%s0 + $0x10] sm:$0xf]
    %v140 = vld [vmem:[%s0 + $0x14] sm:$0xf]
    %v141 = vld [vmem:[%s0 + $0x18] sm:$0xf]
    %v142 = vld [vmem:[%s0 + $0x1c] sm:$0xf]
    %v143 = vld [vmem:[%s0 + $0x20] sm:$0xf]
    %v144 = vld [vmem:[%s0 + $0x24] sm:$0xf]
    %v145 = vld [vmem:[%s0 + $0x28] sm:$0xf]
    %v146 = vld [vmem:[%s0 + $0x2c] sm:$0xf]
    %v147 = vld [vmem:[%s0 + $0x30] sm:$0xf]
    %v148 = vld [vmem:[%s0 + $0x34] sm:$0xf]
    %v149 = vld [vmem:[%s0 + $0x38] sm:$0xf]
    %v150 = vld [vmem:[%s0 + $0x3c] sm:$0xf]
    %v151 = vunpack.c.l.bf16 %v135
    %v152 = vunpack.c.l.bf16 %v136
    %v153 = vunpack.c.l.bf16 %v137
    %v154 = vunpack.c.l.bf16 %v138
    %v155 = vunpack.c.l.bf16 %v139
    %v156 = vunpack.c.l.bf16 %v140
    %v157 = vunpack.c.l.bf16 %v141
    %v158 = vunpack.c.l.bf16 %v142
    %v159 = vunpack.c.l.bf16 %v143
    %v160 = vunpack.c.l.bf16 %v144
    %v161 = vunpack.c.l.bf16 %v145
    %v162 = vunpack.c.l.bf16 %v146
    %v163 = vunpack.c.l.bf16 %v147
    %v164 = vunpack.c.l.bf16 %v148
    %v165 = vunpack.c.l.bf16 %v149
    %v166 = vunpack.c.l.bf16 %v150
    %v167 = vld [vmem:[#allocation37] sm:$0x1]
    %v169 = vlaneseq
    %v170 = vshrl.u32 %v169, 7
    %v171 = vsub.s32 0, %v170
    %v172 = vrot.slane %v167, %v171
    %v174 = vmul.f32 %v151, %v172
    %v175 = vmul.f32 %v152, %v172
    %v176 = vmul.f32 %v153, %v172
    %v177 = vmul.f32 %v154, %v172
    %v178 = vmul.f32 %v155, %v172
    %v179 = vmul.f32 %v156, %v172
    %v180 = vmul.f32 %v157, %v172
    %v181 = vmul.f32 %v158, %v172
    %v182 = vmul.f32 %v159, %v172
    %v183 = vmul.f32 %v160, %v172
    %v184 = vmul.f32 %v161, %v172
    %v185 = vmul.f32 %v162, %v172
    %v186 = vmul.f32 %v163, %v172
    %v187 = vmul.f32 %v164, %v172
    %v188 = vmul.f32 %v165, %v172
    %v189 = vmul.f32 %v166, %v172
    %v190 = vld [vmem:[#allocation38] sm:$0x1]
    %v192 = vlaneseq
    %v193 = vshrl.u32 %v192, 7
    %v194 = vsub.s32 0, %v193
    %v195 = vrot.slane %v190, %v194
    %v197 = vadd.f32 %v174, %v195
    %v198 = vadd.f32 %v175, %v195
    %v199 = vadd.f32 %v176, %v195
    %v200 = vadd.f32 %v177, %v195
    %v201 = vadd.f32 %v178, %v195
    %v202 = vadd.f32 %v179, %v195
    %v203 = vadd.f32 %v180, %v195
    %v204 = vadd.f32 %v181, %v195
    %v205 = vadd.f32 %v182, %v195
    %v206 = vadd.f32 %v183, %v195
    %v207 = vadd.f32 %v184, %v195
    %v208 = vadd.f32 %v185, %v195
    %v209 = vadd.f32 %v186, %v195
    %v210 = vadd.f32 %v187, %v195
    %v211 = vadd.f32 %v188, %v195
    %v212 = vadd.f32 %v189, %v195
    %v213 = vld [vmem:[%s1] sm:$0xf]
    %v214 = vld [vmem:[%s1 + $0x4] sm:$0xf]
    %v215 = vld [vmem:[%s1 + $0x8] sm:$0xf]
    %v216 = vld [vmem:[%s1 + $0xc] sm:$0xf]
    %v217 = vld [vmem:[%s1 + $0x10] sm:$0xf]
    %v218 = vld [vmem:[%s1 + $0x14] sm:$0xf]
    %v219 = vld [vmem:[%s1 + $0x18] sm:$0xf]
    %v220 = vld [vmem:[%s1 + $0x1c] sm:$0xf]
    %v221 = vld [vmem:[%s1 + $0x20] sm:$0xf]
    %v222 = vld [vmem:[%s1 + $0x24] sm:$0xf]
    %v223 = vld [vmem:[%s1 + $0x28] sm:$0xf]
    %v224 = vld [vmem:[%s1 + $0x2c] sm:$0xf]
    %v225 = vld [vmem:[%s1 + $0x30] sm:$0xf]
    %v226 = vld [vmem:[%s1 + $0x34] sm:$0xf]
    %v227 = vld [vmem:[%s1 + $0x38] sm:$0xf]
    %v228 = vld [vmem:[%s1 + $0x3c] sm:$0xf]
    %v229 = vunpack.c.l.bf16 %v213
    %v230 = vunpack.c.l.bf16 %v214
    %v231 = vunpack.c.l.bf16 %v215
    %v232 = vunpack.c.l.bf16 %v216
    %v233 = vunpack.c.l.bf16 %v217
    %v234 = vunpack.c.l.bf16 %v218
    %v235 = vunpack.c.l.bf16 %v219
    %v236 = vunpack.c.l.bf16 %v220
    %v237 = vunpack.c.l.bf16 %v221
    %v238 = vunpack.c.l.bf16 %v222
    %v239 = vunpack.c.l.bf16 %v223
    %v240 = vunpack.c.l.bf16 %v224
    %v241 = vunpack.c.l.bf16 %v225
    %v242 = vunpack.c.l.bf16 %v226
    %v243 = vunpack.c.l.bf16 %v227
    %v244 = vunpack.c.l.bf16 %v228
    %v245 = vadd.f32 %v197, %v229
    %v246 = vadd.f32 %v198, %v230
    %v247 = vadd.f32 %v199, %v231
    %v248 = vadd.f32 %v200, %v232
    %v249 = vadd.f32 %v201, %v233
    %v250 = vadd.f32 %v202, %v234
    %v251 = vadd.f32 %v203, %v235
    %v252 = vadd.f32 %v204, %v236
    %v253 = vadd.f32 %v205, %v237
    %v254 = vadd.f32 %v206, %v238
    %v255 = vadd.f32 %v207, %v239
    %v256 = vadd.f32 %v208, %v240
    %v257 = vadd.f32 %v209, %v241
    %v258 = vadd.f32 %v210, %v242
    %v259 = vadd.f32 %v211, %v243
    %v260 = vadd.f32 %v212, %v244
    %v261 = vmax.f32 %v245, 0.0
    %v262 = vmax.f32 %v246, 0.0
    %v263 = vmax.f32 %v247, 0.0
    %v264 = vmax.f32 %v248, 0.0
    %v265 = vmax.f32 %v249, 0.0
    %v266 = vmax.f32 %v250, 0.0
    %v267 = vmax.f32 %v251, 0.0
    %v268 = vmax.f32 %v252, 0.0
    %v269 = vmax.f32 %v253, 0.0
    %v270 = vmax.f32 %v254, 0.0
    %v271 = vmax.f32 %v255, 0.0
    %v272 = vmax.f32 %v256, 0.0
    %v273 = vmax.f32 %v257, 0.0
    %v274 = vmax.f32 %v258, 0.0
    %v275 = vmax.f32 %v259, 0.0
    %v276 = vmax.f32 %v260, 0.0
    %277 = vst [vmem:[%s8] sm:$0xff] %v261
    %278 = vst [vmem:[%s8 + $0x8] sm:$0xff] %v262
    %279 = vst [vmem:[%s8 + $0x10] sm:$0xff] %v263
    %280 = vst [vmem:[%s8 + $0x18] sm:$0xff] %v264
    %281 = vst [vmem:[%s8 + $0x20] sm:$0xff] %v265
    %282 = vst [vmem:[%s8 + $0x28] sm:$0xff] %v266
    %283 = vst [vmem:[%s8 + $0x30] sm:$0xff] %v267
    %284 = vst [vmem:[%s8 + $0x38] sm:$0xff] %v268
    %285 = vst [vmem:[%s8 + $0x40] sm:$0xff] %v269
    %286 = vst [vmem:[%s8 + $0x48] sm:$0xff] %v270
    %287 = vst [vmem:[%s8 + $0x50] sm:$0xff] %v271
    %288 = vst [vmem:[%s8 + $0x58] sm:$0xff] %v272
    %289 = vst [vmem:[%s8 + $0x60] sm:$0xff] %v273
    %290 = vst [vmem:[%s8 + $0x68] sm:$0xff] %v274
    %291 = vst [vmem:[%s8 + $0x70] sm:$0xff] %v275
    %292 = vst [vmem:[%s8 + $0x78] sm:$0xff] %v276
    // Predicated region
    $region38: #{_lambda_.16} parent=1 // pred_check
      _
    $region39: #{_lambda_.16} parent=1 // pred_check_branch
      %294 = sbr.rel (0) target = $region41
    $region40: #{_lambda_.16} parent=1 // pred_region
      _
    $region41: #{_lambda_.16} parent=1 // pred_fallthru
      _
    // Predicated region
    $region42: #{_lambda_.16} parent=1 // pred_check
      _
    $region43: #{_lambda_.16} parent=1 // pred_check_branch
      %296 = sbr.rel (0) target = $region45
    $region44: #{_lambda_.16} parent=1 // pred_region
      _
    $region45: #{_lambda_.16} parent=1 // pred_fallthru
      _

</llo_original>
